<compile_context>
chip_gen: v5e
topology: v5e:2x2
jax: 0.10.0
libtpu: 0.0.40
codegen_flags: <defaults>
</compile_context>

<pallas_src>
import functools

import jax
import jax.numpy as jnp
from jax import lax
from jax.experimental import pallas as pl
from jax.experimental.pallas import tpu as pltpu

LEAKY_SLOPE = 0.01   # PyTorch nn.LeakyReLU default
LANE = 128


def _round_up(x, m):
    return ((int(x) + m - 1) // m) * m


def _lane(n):
    return _round_up(max(int(n), 1), LANE)


def _sub(n):
    return _round_up(max(int(n), 1), 8)


# ---------------------------------------------------------------------------
# Fused kernel: SIREN encoders + outer product + deep chain + final contraction.
# ---------------------------------------------------------------------------
def _dro_tff_fused_kernel(
    a_in_ref, a_w1_ref, a_b1_ref, a_w2_ref, a_b2_ref,
    b_in_ref, b_w1_ref, b_b1_ref, b_w2_ref, b_b2_ref,
    h_in_ref, h_w1_ref, h_b1_ref, h_w2_ref, h_b2_ref,
    wdeep_ref, out_ref, *, omega, num_layers, mxu_dtype, act_dtype):

    def feature(in_ref, w1_ref, b1_ref, w2_ref, b2_ref):
        x = in_ref[...]                                              # (n, 1)  f32
        # Linear(1, mid): x @ W1.T + b1 == x * w1t + b1  (contracting dim is 1)
        h = jnp.sin(omega * (x * w1_ref[...] + b1_ref[...]))         # VPU + EUP, f32
        y = jnp.dot(h.astype(mxu_dtype), w2_ref[...],                # (n, r_pad)
                    preferred_element_type=jnp.float32)
        return y + b2_ref[...]                                       # f32

    a = feature(a_in_ref, a_w1_ref, a_b1_ref, a_w2_ref, a_b2_ref)    # (tm, r_pad)
    b = feature(b_in_ref, b_w1_ref, b_b1_ref, b_w2_ref, b_b2_ref)    # (n2, r_pad)
    hn = feature(h_in_ref, h_w1_ref, h_b1_ref, h_w2_ref, h_b2_ref)   # (n3, r_pad)

    tm, r_pad = a.shape
    n2 = b.shape[0]

    # x[i, j, :] = A[i, :] * B[j, :], flattened to (tm*n2, r_pad) for MXU matmuls.
    # Elementwise work in act_dtype (bf16 on v6e/v7x which have a bf16 VPU, f32 on
    # v5e) -- halves the largest live activation where supported.
    a_e = a.astype(act_dtype)
    b_e = b.astype(act_dtype)
    x = (a_e[:, None, :] * b_e[None, :, :]).reshape(tm * n2, r_pad)

    # Deep chain: Linear(r, r, bias=False) -> LeakyReLU, num_layers times.
    # num_deep_layer is small & static -> Python unroll.
    for l in range(num_layers):
        y = lax.dot_general(
            x.astype(mxu_dtype), wdeep_ref[l],
            dimension_numbers=(((1,), (1,)), ((), ())),              # x @ W_l.T
            preferred_element_type=jnp.float32)
        # LeakyReLU as max(y, slope*y): 2 VPU ops instead of cmp+select+mul.
        x = jnp.maximum(y, LEAKY_SLOPE * y).astype(act_dtype)

    # out = x @ H with H = Hn.T  (contract on Hn's last axis; no transpose).
    # Only the real n3 columns are produced and stored -> exact HBM writeback.
    out = lax.dot_general(
        x.astype(mxu_dtype), hn.astype(mxu_dtype),
        dimension_numbers=(((1,), (1,)), ((), ())),
        preferred_element_type=jnp.float32)                          # (tm*n2, n3)
    out_ref[...] = out.astype(out_ref.dtype)


# ---------------------------------------------------------------------------
# Parameter init (PyTorch-style) and one-time padding / layout prep.
# ---------------------------------------------------------------------------
def init_params(key, n_1, n_2, n_3, r, num_deep_layer,
                a_mid=300, b_mid=300, h_mid=100):
    ks = jax.random.split(key, 16)

    def u(k, shape, scale):
        return jax.random.uniform(k, shape, jnp.float32, -scale, scale)

    params = {
        # A_net: SineLayer(1, a_mid) then Linear(a_mid, r)
        "A_w1": u(ks[0], (a_mid, 1), 1.0), "A_b1": u(ks[1], (a_mid,), 1.0),
        "A_w2": u(ks[2], (r, a_mid), 1.0 / a_mid**0.5), "A_b2": u(ks[3], (r,), 1.0 / a_mid**0.5),
        # B_net
        "B_w1": u(ks[4], (b_mid, 1), 1.0), "B_b1": u(ks[5], (b_mid,), 1.0),
        "B_w2": u(ks[6], (r, b_mid), 1.0 / b_mid**0.5), "B_b2": u(ks[7], (r,), 1.0 / b_mid**0.5),
        # H_net
        "H_w1": u(ks[8], (h_mid, 1), 1.0), "H_b1": u(ks[9], (h_mid,), 1.0),
        "H_w2": u(ks[10], (r, h_mid), 1.0 / h_mid**0.5), "H_b2": u(ks[11], (r,), 1.0 / h_mid**0.5),
        # depth layers: Linear(r, r, bias=False), stacked
        "W_deep": u(ks[12], (num_deep_layer, r, r), 1.0 / r**0.5),
    }
    # coordinate inputs 1..n (float32), shape (n, 1)
    params["A_in"] = jnp.arange(1, n_1 + 1, dtype=jnp.float32).reshape(n_1, 1)
    params["B_in"] = jnp.arange(1, n_2 + 1, dtype=jnp.float32).reshape(n_2, 1)
    params["H_in"] = jnp.arange(1, n_3 + 1, dtype=jnp.float32).reshape(n_3, 1)
    return params


def prepare_params(p, mxu_dtype=jnp.bfloat16):
    """One-time zero-padding to lane width + bf16 cast of MXU weights.

    Done OUTSIDE the hot forward.  Padded weight/bias entries are zero, so
    padded r / mid channels stay exactly zero through the whole network.
    """
    r = p["A_w2"].shape[0]
    num_layers = p["W_deep"].shape[0]
    r_pad = _round_up(r, LANE)

    def prep_feat(prefix):
        w1, b1 = p[f"{prefix}_w1"], p[f"{prefix}_b1"]
        w2, b2 = p[f"{prefix}_w2"], p[f"{prefix}_b2"]
        mid = w1.shape[0]
        mid_pad = _round_up(mid, LANE)
        w1t = jnp.zeros((1, mid_pad), jnp.float32).at[0, :mid].set(w1[:, 0])
        b1r = jnp.zeros((1, mid_pad), jnp.float32).at[0, :mid].set(b1)
        w2t = jnp.zeros((mid_pad, r_pad), jnp.float32).at[:mid, :r].set(w2.T)
        b2r = jnp.zeros((1, r_pad), jnp.float32).at[0, :r].set(b2)
        return w1t, b1r, w2t.astype(mxu_dtype), b2r

    a_w1, a_b1, a_w2, a_b2 = prep_feat("A")
    b_w1, b_b1, b_w2, b_b2 = prep_feat("B")
    h_w1, h_b1, h_w2, h_b2 = prep_feat("H")

    wdeep = jnp.zeros((num_layers, r_pad, r_pad), jnp.float32)
    wdeep = wdeep.at[:, :r, :r].set(p["W_deep"]).astype(mxu_dtype)

    return dict(
        A_in=p["A_in"], B_in=p["B_in"], H_in=p["H_in"],
        A_w1=a_w1, A_b1=a_b1, A_w2=a_w2, A_b2=a_b2,
        B_w1=b_w1, B_b1=b_b1, B_w2=b_w2, B_b2=b_b2,
        H_w1=h_w1, H_b1=h_b1, H_w2=h_w2, H_b2=h_b2,
        W_deep=wdeep, r_pad=r_pad,
    )


# ---------------------------------------------------------------------------
# Generation-aware VMEM model and tile selection.
# ---------------------------------------------------------------------------
def _has_bf16_vpu():
    """v6e / v7x have a bf16 VPU; older generations (<= v5e) do not."""
    try:
        kind = jax.devices()[0].device_kind.lower()
    except Exception:
        return False
    if "tpu" not in kind:
        return False
    for old in ("v2", "v3", "v4", "v5"):
        if old in kind:
            return False
    return True


def _vmem_caps():
    cap = 64 << 20                                    # conservative (v7x per-TC)
    try:
        info = pltpu.get_tpu_info()
        c = int(getattr(info, "vmem_capacity_bytes", 0) or 0)
        if c > 0:
            cap = c
    except Exception:
        pass
    limit = max(32 << 20, min(cap - (8 << 20), 112 << 20))
    return cap, limit


def _resident_vmem_bytes(n2, n3, r_pad, mid_pads, num_layers):
    """Double-buffered footprint of all constant-index (resident) blocks."""
    total = 0
    for mid in mid_pads:
        total += 2 * (_sub(1) * mid * 4) * 2          # w1 row + b1 row (f32)
        total += 2 * (mid * r_pad * 2)                # w2 (bf16)
        total += 2 * (_sub(1) * r_pad * 4)            # b2 (f32)
    total += 2 * (_sub(n2) * LANE * 4)                # B_in block
    total += 2 * (_sub(n3) * LANE * 4)                # H_in block
    total += 2 * (num_layers * r_pad * r_pad * 2)     # W_deep (bf16)
    # NOTE: these residents are small; single-buffering them (pl.Buffered(1))
    # could reclaim half but is skipped to keep lowering maximally portable.
    return total


def _tile_vmem_bytes(tm, n2, n3, r_pad, mid_max, act_bytes, out_bytes):
    """Per-tile working set, counting lane-padded physical footprints."""
    M = tm * n2
    x_act = M * r_pad * act_bytes                     # activation after outer product
    x_cast = M * r_pad * 2 if act_bytes == 4 else 0   # bf16 copy fed to the MXU
    y_f32 = M * r_pad * 4                             # per-layer f32 accumulator
    out_f32 = M * _lane(n3) * 4                       # final f32 result (lane-padded)
    out_cast = M * _lane(n3) * out_bytes if out_bytes != 4 else 0
    out_blk = 2 * M * _lane(n3) * out_bytes           # double-buffered output block
    a_in_blk = 2 * _sub(tm) * LANE * 4                # double-buffered A_in block
    feats = 4 * (_sub(tm) + _sub(n2) + _sub(n3)) * (_lane(mid_max) + r_pad) * 2
    return x_act + x_cast + y_f32 + out_f32 + out_cast + out_blk + a_in_blk + feats


def _choose_tm(n1, n2, n3, r_pad, mid_max, act_bytes, out_bytes, budget):
    n1_ceil = _round_up(n1, 8)
    # Always target >=2 grid steps when n1 allows: keeps both v7x TensorCores busy
    # under dimension_semantics=("parallel",); near-free on 1-TC chips.
    tm_cap = n1_ceil if n1_ceil <= 8 else _round_up(-(-n1 // 2), 8)
    for tm in (1024, 512, 256, 128, 64, 32, 16, 8):
        if tm <= tm_cap and _tile_vmem_bytes(
                tm, n2, n3, r_pad, mid_max, act_bytes, out_bytes) <= budget:
            return tm
    return 8


# ---------------------------------------------------------------------------
# Forward.
# ---------------------------------------------------------------------------
def dro_tff_forward(prep, omega, *, tm=None, out_dtype=jnp.float32):
    n1 = prep["A_in"].shape[0]
    n2 = prep["B_in"].shape[0]
    n3 = prep["H_in"].shape[0]
    r_pad = prep["r_pad"]
    num_layers = prep["W_deep"].shape[0]
    mid_a = prep["A_w1"].shape[1]
    mid_b = prep["B_w1"].shape[1]
    mid_h = prep["H_w1"].shape[1]
    mid_max = max(mid_a, mid_b, mid_h)
    mxu_dtype = prep["W_deep"].dtype

    act_dtype = jnp.bfloat16 if _has_bf16_vpu() else jnp.float32
    act_bytes = 2 if act_dtype == jnp.bfloat16 else 4
    out_bytes = jnp.dtype(out_dtype).itemsize

    cap, vmem_limit = _vmem_caps()
    resident = _resident_vmem_bytes(n2, n3, r_pad, (mid_a, mid_b, mid_h), num_layers)
    budget = max(8 << 20, vmem_limit - resident - (4 << 20))

    if tm is None:
        tm = _choose_tm(n1, n2, n3, r_pad, mid_max, act_bytes, out_bytes, budget)
    tm = max(8, min(_round_up(tm, 8), _round_up(n1, 8)))

    grid_steps = -(-n1 // tm)
    n1_pad = grid_steps * tm

    a_in = prep["A_in"]
    if n1_pad != n1:
        a_in = jnp.zeros((n1_pad, 1), jnp.float32).at[:n1].set(a_in)

    kern = functools.partial(
        _dro_tff_fused_kernel, omega=omega, num_layers=num_layers,
        mxu_dtype=mxu_dtype, act_dtype=act_dtype)

    full2 = lambda i: (0, 0)
    full3 = lambda i: (0, 0, 0)

    in_specs = [
        pl.BlockSpec((tm, 1), lambda i: (i, 0)),            # A_in (tiled over n1)
        pl.BlockSpec((1, mid_a), full2),                    # A_w1t
        pl.BlockSpec((1, mid_a), full2),                    # A_b1
        pl.BlockSpec((mid_a, r_pad), full2),                # A_w2t (bf16)
        pl.BlockSpec((1, r_pad), full2),                    # A_b2
        pl.BlockSpec((n2, 1), full2),                       # B_in  (resident)
        pl.BlockSpec((1, mid_b), full2),
        pl.BlockSpec((1, mid_b), full2),
        pl.BlockSpec((mid_b, r_pad), full2),
        pl.BlockSpec((1, r_pad), full2),
        pl.BlockSpec((n3, 1), full2),                       # H_in  (resident)
        pl.BlockSpec((1, mid_h), full2),
        pl.BlockSpec((1, mid_h), full2),
        pl.BlockSpec((mid_h, r_pad), full2),
        pl.BlockSpec((1, r_pad), full2),
        pl.BlockSpec((num_layers, r_pad, r_pad), full3),    # W_deep (resident, bf16)
    ]
    # Exact (un-padded) output columns: last dim n3 == full array dim, so the spec
    # is legal for any n3 and HBM writeback is exactly n1_pad*n2*n3*out_bytes.
    out_spec = pl.BlockSpec((tm * n2, n3), lambda i: (i, 0))

    operands = [a_in,
                prep["A_w1"], prep["A_b1"], prep["A_w2"], prep["A_b2"],
                prep["B_in"], prep["B_w1"], prep["B_b1"], prep["B_w2"], prep["B_b2"],
                prep["H_in"], prep["H_w1"], prep["H_b1"], prep["H_w2"], prep["H_b2"],
                prep["W_deep"]]

    # Advisory cost estimate so XLA schedules the surrounding (tiny) ops sensibly.
    flops = (2 * n1_pad * mid_a * r_pad
             + 2 * grid_steps * (n2 * mid_b + n3 * mid_h) * r_pad
             + 2 * n1_pad * n2 * r_pad * (num_layers * r_pad + n3))
    transcendentals = n1_pad * mid_a + grid_steps * (n2 * mid_b + n3 * mid_h)
    bytes_accessed = sum(int(o.size) * o.dtype.itemsize for o in operands)
    bytes_accessed += n1_pad * n2 * n3 * out_bytes

    out_flat = pl.pallas_call(
        kern,
        out_shape=jax.ShapeDtypeStruct((n1_pad * n2, n3), out_dtype),
        grid_spec=pltpu.PrefetchScalarGridSpec(
            num_scalar_prefetch=0, grid=(grid_steps,),
            in_specs=in_specs, out_specs=out_spec),
        compiler_params=pltpu.CompilerParams(
            dimension_semantics=("parallel",),      # v7x: shard n1 tiles across 2 TCs
            vmem_limit_bytes=int(vmem_limit)),
        cost_estimate=pl.CostEstimate(
            flops=int(flops), transcendentals=int(transcendentals),
            bytes_accessed=int(bytes_accessed)),
    )(*operands)

    # Free metadata reshape outside the kernel; drop padded n1 rows.
    return out_flat.reshape(n1_pad, n2, n3)[:n1]


# ---------------------------------------------------------------------------
# Pure-JAX f32 reference mirroring the PyTorch forward.
# ---------------------------------------------------------------------------
def dro_tff_reference(p, omega):
    def feat(x, w1, b1, w2, b2):
        h = jnp.sin(omega * (x @ w1.T + b1))
        return h @ w2.T + b2

    A = feat(p["A_in"], p["A_w1"], p["A_b1"], p["A_w2"], p["A_b2"])    # (n1, r)
    B = feat(p["B_in"], p["B_w1"], p["B_b1"], p["B_w2"], p["B_b2"])    # (n2, r)
    H = feat(p["H_in"], p["H_w1"], p["H_b1"], p["H_w2"], p["H_b2"]).T  # (r, n3)
    x = A[:, None, :] * B[None, :, :]                                  # (n1, n2, r)
    for l in range(p["W_deep"].shape[0]):
        x = x @ p["W_deep"][l].T
        x = jnp.where(x >= 0, x, LEAKY_SLOPE * x)
    return x @ H                                                       # (n1, n2, n3)


if __name__ == "__main__":
    # small but representative shapes
    n_1, n_2, n_3 = 16, 16, 8
    r = 32
    omega = 30.0
    num_deep_layer = 2

    key = jax.random.PRNGKey(0)
    params = init_params(key, n_1, n_2, n_3, r, num_deep_layer)
    ref = dro_tff_reference(params, omega)

    prep = prepare_params(params, mxu_dtype=jnp.bfloat16)

    # Auto tile selection (gives grid >= 2 here -> exercises the tiled path).
    out = jax.block_until_ready(dro_tff_forward(prep, omega))
    assert out.shape == (n_1, n_2, n_3), out.shape
    assert jnp.allclose(out, ref, atol=5e-2, rtol=5e-2), \
        float(jnp.max(jnp.abs(out - ref)))

    # Single-tile path (tm == n1, grid = 1) as well.
    out_one = jax.block_until_ready(dro_tff_forward(prep, omega, tm=16))
    assert out_one.shape == (n_1, n_2, n_3), out_one.shape
    assert jnp.allclose(out_one, ref, atol=5e-2, rtol=5e-2), \
        float(jnp.max(jnp.abs(out_one - ref)))

    print("KERNEL_OK")
</pallas_src>

<mosaic_0001>
module attributes {stable_mosaic.version = 11 : i64} {
  func.func @_dro_tff_fused_kernel(%arg0: i32, %arg1: memref<8x1xf32, #tpu.memory_space<vmem>>, %arg2: memref<1x384xf32, #tpu.memory_space<vmem>>, %arg3: memref<1x384xf32, #tpu.memory_space<vmem>>, %arg4: memref<384x128xbf16, #tpu.memory_space<vmem>>, %arg5: memref<1x128xf32, #tpu.memory_space<vmem>>, %arg6: memref<16x1xf32, #tpu.memory_space<vmem>>, %arg7: memref<1x384xf32, #tpu.memory_space<vmem>>, %arg8: memref<1x384xf32, #tpu.memory_space<vmem>>, %arg9: memref<384x128xbf16, #tpu.memory_space<vmem>>, %arg10: memref<1x128xf32, #tpu.memory_space<vmem>>, %arg11: memref<8x1xf32, #tpu.memory_space<vmem>>, %arg12: memref<1x128xf32, #tpu.memory_space<vmem>>, %arg13: memref<1x128xf32, #tpu.memory_space<vmem>>, %arg14: memref<128x128xbf16, #tpu.memory_space<vmem>>, %arg15: memref<1x128xf32, #tpu.memory_space<vmem>>, %arg16: memref<2x128x128xbf16, #tpu.memory_space<vmem>>, %arg17: memref<128x8xf32, #tpu.memory_space<vmem>>) attributes {dimension_semantics = [#tpu.dimension_semantics<parallel>], iteration_bounds = array<i64: 2>, scalar_prefetch = 0 : i64, scratch_operands = 0 : i64, tpu.core_type = #tpu.core_type<tc>, window_params = [{transform_indices = @transform_0, window_bounds = array<i64: 8, 1>}, {pipeline_mode = #tpu.pipeline_mode<synchronous>, transform_indices = @transform_1, window_bounds = array<i64: 1, 384>}, {pipeline_mode = #tpu.pipeline_mode<synchronous>, transform_indices = @transform_2, window_bounds = array<i64: 1, 384>}, {pipeline_mode = #tpu.pipeline_mode<synchronous>, transform_indices = @transform_3, window_bounds = array<i64: 384, 128>}, {pipeline_mode = #tpu.pipeline_mode<synchronous>, transform_indices = @transform_4, window_bounds = array<i64: 1, 128>}, {pipeline_mode = #tpu.pipeline_mode<synchronous>, transform_indices = @transform_5, window_bounds = array<i64: 16, 1>}, {pipeline_mode = #tpu.pipeline_mode<synchronous>, transform_indices = @transform_6, window_bounds = array<i64: 1, 384>}, {pipeline_mode = #tpu.pipeline_mode<synchronous>, transform_indices = @transform_7, window_bounds = array<i64: 1, 384>}, {pipeline_mode = #tpu.pipeline_mode<synchronous>, transform_indices = @transform_8, window_bounds = array<i64: 384, 128>}, {pipeline_mode = #tpu.pipeline_mode<synchronous>, transform_indices = @transform_9, window_bounds = array<i64: 1, 128>}, {pipeline_mode = #tpu.pipeline_mode<synchronous>, transform_indices = @transform_10, window_bounds = array<i64: 8, 1>}, {pipeline_mode = #tpu.pipeline_mode<synchronous>, transform_indices = @transform_11, window_bounds = array<i64: 1, 128>}, {pipeline_mode = #tpu.pipeline_mode<synchronous>, transform_indices = @transform_12, window_bounds = array<i64: 1, 128>}, {pipeline_mode = #tpu.pipeline_mode<synchronous>, transform_indices = @transform_13, window_bounds = array<i64: 128, 128>}, {pipeline_mode = #tpu.pipeline_mode<synchronous>, transform_indices = @transform_14, window_bounds = array<i64: 1, 128>}, {pipeline_mode = #tpu.pipeline_mode<synchronous>, transform_indices = @transform_15, window_bounds = array<i64: 2, 128, 128>}, {transform_indices = @transform_16, window_bounds = array<i64: 128, 8>}]} {
    %c0 = arith.constant 0 : index
    %c0_0 = arith.constant 0 : index
    %0 = vector.load %arg1[%c0, %c0_0] : memref<8x1xf32, #tpu.memory_space<vmem>>, vector<8x1xf32>
    %c0_1 = arith.constant 0 : index
    %c0_2 = arith.constant 0 : index
    %1 = vector.load %arg2[%c0_1, %c0_2] : memref<1x384xf32, #tpu.memory_space<vmem>>, vector<1x384xf32>
    %2 = vector.broadcast %0 : vector<8x1xf32> to vector<8x384xf32>
    %3 = vector.broadcast %1 : vector<1x384xf32> to vector<8x384xf32>
    %4 = arith.mulf %2, %3 : vector<8x384xf32>
    %c0_3 = arith.constant 0 : index
    %c0_4 = arith.constant 0 : index
    %5 = vector.load %arg3[%c0_3, %c0_4] : memref<1x384xf32, #tpu.memory_space<vmem>>, vector<1x384xf32>
    %6 = vector.broadcast %5 : vector<1x384xf32> to vector<8x384xf32>
    %7 = arith.addf %4, %6 : vector<8x384xf32>
    %cst = arith.constant 3.000000e+01 : f32
    %8 = vector.broadcast %cst : f32 to vector<8x384xf32>
    %9 = arith.mulf %8, %7 : vector<8x384xf32>
    %10 = math.sin %9 : vector<8x384xf32>
    %11 = arith.truncf %10 : vector<8x384xf32> to vector<8x384xbf16>
    %c0_5 = arith.constant 0 : index
    %c0_6 = arith.constant 0 : index
    %12 = vector.load %arg4[%c0_5, %c0_6] : memref<384x128xbf16, #tpu.memory_space<vmem>>, vector<384x128xbf16>
    %cst_7 = arith.constant dense<0.000000e+00> : vector<8x128xf32>
    %13 = tpu.matmul %11, %12, %cst_7 {dimension_numbers = #tpu.dot_dimension_numbers<[1], [0], [0], [1], [0, 0, 1, 1], [], []>} : vector<8x384xbf16>, vector<384x128xbf16>, vector<8x128xf32> -> vector<8x128xf32>
    %c0_8 = arith.constant 0 : index
    %c0_9 = arith.constant 0 : index
    %14 = vector.load %arg5[%c0_8, %c0_9] : memref<1x128xf32, #tpu.memory_space<vmem>>, vector<1x128xf32>
    %15 = vector.broadcast %14 : vector<1x128xf32> to vector<8x128xf32>
    %16 = arith.addf %13, %15 : vector<8x128xf32>
    %c0_10 = arith.constant 0 : index
    %c0_11 = arith.constant 0 : index
    %17 = vector.load %arg6[%c0_10, %c0_11] : memref<16x1xf32, #tpu.memory_space<vmem>>, vector<16x1xf32>
    %c0_12 = arith.constant 0 : index
    %c0_13 = arith.constant 0 : index
    %18 = vector.load %arg7[%c0_12, %c0_13] : memref<1x384xf32, #tpu.memory_space<vmem>>, vector<1x384xf32>
    %19 = vector.broadcast %17 : vector<16x1xf32> to vector<16x384xf32>
    %20 = vector.broadcast %18 : vector<1x384xf32> to vector<16x384xf32>
    %21 = arith.mulf %19, %20 : vector<16x384xf32>
    %c0_14 = arith.constant 0 : index
    %c0_15 = arith.constant 0 : index
    %22 = vector.load %arg8[%c0_14, %c0_15] : memref<1x384xf32, #tpu.memory_space<vmem>>, vector<1x384xf32>
    %23 = vector.broadcast %22 : vector<1x384xf32> to vector<16x384xf32>
    %24 = arith.addf %21, %23 : vector<16x384xf32>
    %cst_16 = arith.constant 3.000000e+01 : f32
    %25 = vector.broadcast %cst_16 : f32 to vector<16x384xf32>
    %26 = arith.mulf %25, %24 : vector<16x384xf32>
    %27 = math.sin %26 : vector<16x384xf32>
    %28 = arith.truncf %27 : vector<16x384xf32> to vector<16x384xbf16>
    %c0_17 = arith.constant 0 : index
    %c0_18 = arith.constant 0 : index
    %29 = vector.load %arg9[%c0_17, %c0_18] : memref<384x128xbf16, #tpu.memory_space<vmem>>, vector<384x128xbf16>
    %cst_19 = arith.constant dense<0.000000e+00> : vector<16x128xf32>
    %30 = tpu.matmul %28, %29, %cst_19 {dimension_numbers = #tpu.dot_dimension_numbers<[1], [0], [0], [1], [0, 0, 1, 1], [], []>} : vector<16x384xbf16>, vector<384x128xbf16>, vector<16x128xf32> -> vector<16x128xf32>
    %c0_20 = arith.constant 0 : index
    %c0_21 = arith.constant 0 : index
    %31 = vector.load %arg10[%c0_20, %c0_21] : memref<1x128xf32, #tpu.memory_space<vmem>>, vector<1x128xf32>
    %32 = vector.broadcast %31 : vector<1x128xf32> to vector<16x128xf32>
    %33 = arith.addf %30, %32 : vector<16x128xf32>
    %c0_22 = arith.constant 0 : index
    %c0_23 = arith.constant 0 : index
    %34 = vector.load %arg11[%c0_22, %c0_23] : memref<8x1xf32, #tpu.memory_space<vmem>>, vector<8x1xf32>
    %c0_24 = arith.constant 0 : index
    %c0_25 = arith.constant 0 : index
    %35 = vector.load %arg12[%c0_24, %c0_25] : memref<1x128xf32, #tpu.memory_space<vmem>>, vector<1x128xf32>
    %36 = vector.broadcast %34 : vector<8x1xf32> to vector<8x128xf32>
    %37 = vector.broadcast %35 : vector<1x128xf32> to vector<8x128xf32>
    %38 = arith.mulf %36, %37 : vector<8x128xf32>
    %c0_26 = arith.constant 0 : index
    %c0_27 = arith.constant 0 : index
    %39 = vector.load %arg13[%c0_26, %c0_27] : memref<1x128xf32, #tpu.memory_space<vmem>>, vector<1x128xf32>
    %40 = vector.broadcast %39 : vector<1x128xf32> to vector<8x128xf32>
    %41 = arith.addf %38, %40 : vector<8x128xf32>
    %cst_28 = arith.constant 3.000000e+01 : f32
    %42 = vector.broadcast %cst_28 : f32 to vector<8x128xf32>
    %43 = arith.mulf %42, %41 : vector<8x128xf32>
    %44 = math.sin %43 : vector<8x128xf32>
    %45 = arith.truncf %44 : vector<8x128xf32> to vector<8x128xbf16>
    %c0_29 = arith.constant 0 : index
    %c0_30 = arith.constant 0 : index
    %46 = vector.load %arg14[%c0_29, %c0_30] : memref<128x128xbf16, #tpu.memory_space<vmem>>, vector<128x128xbf16>
    %cst_31 = arith.constant dense<0.000000e+00> : vector<8x128xf32>
    %47 = tpu.matmul %45, %46, %cst_31 {dimension_numbers = #tpu.dot_dimension_numbers<[1], [0], [0], [1], [0, 0, 1, 1], [], []>} : vector<8x128xbf16>, vector<128x128xbf16>, vector<8x128xf32> -> vector<8x128xf32>
    %c0_32 = arith.constant 0 : index
    %c0_33 = arith.constant 0 : index
    %48 = vector.load %arg15[%c0_32, %c0_33] : memref<1x128xf32, #tpu.memory_space<vmem>>, vector<1x128xf32>
    %49 = vector.broadcast %48 : vector<1x128xf32> to vector<8x128xf32>
    %50 = arith.addf %47, %49 : vector<8x128xf32>
    %51 = vector.shape_cast %16 : vector<8x128xf32> to vector<8x1x128xf32>
    %52 = vector.shape_cast %33 : vector<16x128xf32> to vector<1x16x128xf32>
    %53 = vector.broadcast %51 : vector<8x1x128xf32> to vector<8x16x128xf32>
    %54 = vector.broadcast %52 : vector<1x16x128xf32> to vector<8x16x128xf32>
    %55 = arith.mulf %53, %54 : vector<8x16x128xf32>
    %56 = vector.shape_cast %55 : vector<8x16x128xf32> to vector<128x128xf32>
    %57 = arith.truncf %56 : vector<128x128xf32> to vector<128x128xbf16>
    %c0_34 = arith.constant 0 : index
    %c0_35 = arith.constant 0 : index
    %c0_36 = arith.constant 0 : index
    %58 = vector.load %arg16[%c0_34, %c0_35, %c0_36] : memref<2x128x128xbf16, #tpu.memory_space<vmem>>, vector<1x128x128xbf16>
    %59 = vector.shape_cast %58 : vector<1x128x128xbf16> to vector<128x128xbf16>
    %cst_37 = arith.constant dense<0.000000e+00> : vector<128x128xf32>
    %60 = tpu.matmul %57, %59, %cst_37 {dimension_numbers = #tpu.dot_dimension_numbers<[1], [1], [0], [0], [0, 0, 1, 0], [], []>} : vector<128x128xbf16>, vector<128x128xbf16>, vector<128x128xf32> -> vector<128x128xf32>
    %cst_38 = arith.constant 0.00999999977 : f32
    %61 = vector.broadcast %cst_38 : f32 to vector<128x128xf32>
    %62 = arith.mulf %61, %60 : vector<128x128xf32>
    %63 = arith.maximumf %60, %62 : vector<128x128xf32>
    %64 = arith.truncf %63 : vector<128x128xf32> to vector<128x128xbf16>
    %c1 = arith.constant 1 : index
    %c0_39 = arith.constant 0 : index
    %c0_40 = arith.constant 0 : index
    %65 = vector.load %arg16[%c1, %c0_39, %c0_40] : memref<2x128x128xbf16, #tpu.memory_space<vmem>>, vector<1x128x128xbf16>
    %66 = vector.shape_cast %65 : vector<1x128x128xbf16> to vector<128x128xbf16>
    %cst_41 = arith.constant dense<0.000000e+00> : vector<128x128xf32>
    %67 = tpu.matmul %64, %66, %cst_41 {dimension_numbers = #tpu.dot_dimension_numbers<[1], [1], [0], [0], [0, 0, 1, 0], [], []>} : vector<128x128xbf16>, vector<128x128xbf16>, vector<128x128xf32> -> vector<128x128xf32>
    %cst_42 = arith.constant 0.00999999977 : f32
    %68 = vector.broadcast %cst_42 : f32 to vector<128x128xf32>
    %69 = arith.mulf %68, %67 : vector<128x128xf32>
    %70 = arith.maximumf %67, %69 : vector<128x128xf32>
    %71 = arith.truncf %70 : vector<128x128xf32> to vector<128x128xbf16>
    %72 = arith.truncf %50 : vector<8x128xf32> to vector<8x128xbf16>
    %cst_43 = arith.constant dense<0.000000e+00> : vector<128x8xf32>
    %73 = tpu.matmul %71, %72, %cst_43 {dimension_numbers = #tpu.dot_dimension_numbers<[1], [1], [0], [0], [0, 0, 1, 0], [], []>} : vector<128x128xbf16>, vector<8x128xbf16>, vector<128x8xf32> -> vector<128x8xf32>
    %c0_44 = arith.constant 0 : index
    %c0_45 = arith.constant 0 : index
    %74 = vector.load %arg17[%c0_44, %c0_45] : memref<128x8xf32, #tpu.memory_space<vmem>>, vector<128x8xf32>
    tpu.vector_store %arg17[%c0_44, %c0_45], %73 {strides = array<i32>} : memref<128x8xf32, #tpu.memory_space<vmem>>, vector<128x8xf32>,
    return
  }
  func.func @transform_0(%arg0: i32) -> (i32, i32) {
    %c0_i32 = arith.constant 0 : i32
    %c0_i32_0 = arith.constant 0 : i32
    return %arg0, %c0_i32 : i32, i32
  }
  func.func @transform_1(%arg0: i32) -> (i32, i32) {
    %c0_i32 = arith.constant 0 : i32
    %c0_i32_0 = arith.constant 0 : i32
    %c0_i32_1 = arith.constant 0 : i32
    return %c0_i32, %c0_i32_0 : i32, i32
  }
  func.func @transform_2(%arg0: i32) -> (i32, i32) {
    %c0_i32 = arith.constant 0 : i32
    %c0_i32_0 = arith.constant 0 : i32
    %c0_i32_1 = arith.constant 0 : i32
    return %c0_i32, %c0_i32_0 : i32, i32
  }
  func.func @transform_3(%arg0: i32) -> (i32, i32) {
    %c0_i32 = arith.constant 0 : i32
    %c0_i32_0 = arith.constant 0 : i32
    %c0_i32_1 = arith.constant 0 : i32
    return %c0_i32, %c0_i32_0 : i32, i32
  }
  func.func @transform_4(%arg0: i32) -> (i32, i32) {
    %c0_i32 = arith.constant 0 : i32
    %c0_i32_0 = arith.constant 0 : i32
    %c0_i32_1 = arith.constant 0 : i32
    return %c0_i32, %c0_i32_0 : i32, i32
  }
  func.func @transform_5(%arg0: i32) -> (i32, i32) {
    %c0_i32 = arith.constant 0 : i32
    %c0_i32_0 = arith.constant 0 : i32
    %c0_i32_1 = arith.constant 0 : i32
    return %c0_i32, %c0_i32_0 : i32, i32
  }
  func.func @transform_6(%arg0: i32) -> (i32, i32) {
    %c0_i32 = arith.constant 0 : i32
    %c0_i32_0 = arith.constant 0 : i32
    %c0_i32_1 = arith.constant 0 : i32
    return %c0_i32, %c0_i32_0 : i32, i32
  }
  func.func @transform_7(%arg0: i32) -> (i32, i32) {
    %c0_i32 = arith.constant 0 : i32
    %c0_i32_0 = arith.constant 0 : i32
    %c0_i32_1 = arith.constant 0 : i32
    return %c0_i32, %c0_i32_0 : i32, i32
  }
  func.func @transform_8(%arg0: i32) -> (i32, i32) {
    %c0_i32 = arith.constant 0 : i32
    %c0_i32_0 = arith.constant 0 : i32
    %c0_i32_1 = arith.constant 0 : i32
    return %c0_i32, %c0_i32_0 : i32, i32
  }
  func.func @transform_9(%arg0: i32) -> (i32, i32) {
    %c0_i32 = arith.constant 0 : i32
    %c0_i32_0 = arith.constant 0 : i32
    %c0_i32_1 = arith.constant 0 : i32
    return %c0_i32, %c0_i32_0 : i32, i32
  }
  func.func @transform_10(%arg0: i32) -> (i32, i32) {
    %c0_i32 = arith.constant 0 : i32
    %c0_i32_0 = arith.constant 0 : i32
    %c0_i32_1 = arith.constant 0 : i32
    return %c0_i32, %c0_i32_0 : i32, i32
  }
  func.func @transform_11(%arg0: i32) -> (i32, i32) {
    %c0_i32 = arith.constant 0 : i32
    %c0_i32_0 = arith.constant 0 : i32
    %c0_i32_1 = arith.constant 0 : i32
    return %c0_i32, %c0_i32_0 : i32, i32
  }
  func.func @transform_12(%arg0: i32) -> (i32, i32) {
    %c0_i32 = arith.constant 0 : i32
    %c0_i32_0 = arith.constant 0 : i32
    %c0_i32_1 = arith.constant 0 : i32
    return %c0_i32, %c0_i32_0 : i32, i32
  }
  func.func @transform_13(%arg0: i32) -> (i32, i32) {
    %c0_i32 = arith.constant 0 : i32
    %c0_i32_0 = arith.constant 0 : i32
    %c0_i32_1 = arith.constant 0 : i32
    return %c0_i32, %c0_i32_0 : i32, i32
  }
  func.func @transform_14(%arg0: i32) -> (i32, i32) {
    %c0_i32 = arith.constant 0 : i32
    %c0_i32_0 = arith.constant 0 : i32
    %c0_i32_1 = arith.constant 0 : i32
    return %c0_i32, %c0_i32_0 : i32, i32
  }
  func.func @transform_15(%arg0: i32) -> (i32, i32, i32) {
    %c0_i32 = arith.constant 0 : i32
    %c0_i32_0 = arith.constant 0 : i32
    %c0_i32_1 = arith.constant 0 : i32
    %c0_i32_2 = arith.constant 0 : i32
    return %c0_i32, %c0_i32_0, %c0_i32_1 : i32, i32, i32
  }
  func.func @transform_16(%arg0: i32) -> (i32, i32) {
    %c0_i32 = arith.constant 0 : i32
    %c0_i32_0 = arith.constant 0 : i32
    return %arg0, %c0_i32 : i32, i32
  }
}

</mosaic_0001>

<llo_original>
// kernel: tpu_custom_call.1
$region0: #{tpu_custom_call.1}
  #allocation0 [shape = 'u32[]', space=smem, size = 0x4, offset = 0x4, fixed_abs, tag = 'smem constant byte address 0x4 - core index']
  #allocation1 [shape = 'u32[72,128]{1,0:T(1,128)}', space=vmem, size = 0x9000, scoped, tag = 'internal scratch']
  %s0 = inlined_call_operand.vmem [shape: f32[16,1], index: 0, kind: input, shape index: {}]
  %s1 = inlined_call_operand.vmem [shape: f32[1,384], index: 1, kind: input, shape index: {}]
  %s2 = inlined_call_operand.vmem [shape: f32[1,384], index: 2, kind: input, shape index: {}]
  %s3 = inlined_call_operand.hbm [shape: bf16[384,128], index: 3, kind: input, shape index: {}]
  %s4 = inlined_call_operand.vmem [shape: f32[1,128], index: 4, kind: input, shape index: {}]
  %s5 = inlined_call_operand.vmem [shape: f32[16,1], index: 5, kind: input, shape index: {}]
  %s6 = inlined_call_operand.vmem [shape: f32[1,384], index: 6, kind: input, shape index: {}]
  %s7 = inlined_call_operand.vmem [shape: f32[1,384], index: 7, kind: input, shape index: {}]
  %s8 = inlined_call_operand.hbm [shape: bf16[384,128], index: 8, kind: input, shape index: {}]
  %s9 = inlined_call_operand.vmem [shape: f32[1,128], index: 9, kind: input, shape index: {}]
  %s10 = inlined_call_operand.vmem [shape: f32[8,1], index: 10, kind: input, shape index: {}]
  %s11 = inlined_call_operand.vmem [shape: f32[1,128], index: 11, kind: input, shape index: {}]
  %s12 = inlined_call_operand.vmem [shape: f32[1,128], index: 12, kind: input, shape index: {}]
  %s13 = inlined_call_operand.hbm [shape: bf16[128,128], index: 13, kind: input, shape index: {}]
  %s14 = inlined_call_operand.vmem [shape: f32[1,128], index: 14, kind: input, shape index: {}]
  %s15 = inlined_call_operand.hbm [shape: bf16[2,128,128], index: 15, kind: input, shape index: {}]
  %s16 = inlined_call_operand.vmem [shape: f32[256,8], index: 16, kind: output, shape index: {}]
  %s17 = sld [smem:[#allocation0]]
  $region113: #{tpu_custom_call.1} parent=0
    _
  %s19 = ssub.s32 1, %s17
  %s20 = scalar_select 0, %s19, %s17
  $region1: #{tpu_custom_call.1} parent=0
    #allocation2 [shape = 'u8[98304]{0}', space=vmem, size = 0x18000, scoped, tag = 'input window, operand 3, single buffered']
    #allocation3 [shape = 's32[2]{0}', space=sflag, size = 0x8, scoped, tag = 'scoped memory for tpu_custom_call.1']
    #allocation4 [shape = 'u8[98304]{0}', space=vmem, size = 0x18000, scoped, tag = 'input window, operand 8, single buffered']
    #allocation5 [shape = 's32[1]{0}', space=sflag, size = 0x4, scoped, tag = 'scoped memory for tpu_custom_call.1']
    #allocation6 [shape = 'u8[32768]{0}', space=vmem, size = 0x8000, scoped, tag = 'input window, operand 13, single buffered']
    #allocation7 [shape = 'u8[65536]{0}', space=vmem, size = 0x10000, scoped, tag = 'input window, operand 15, single buffered']
    #allocation8 [shape = 's32[1]{0}', space=sflag, size = 0x4, scoped, tag = 'scoped memory for tpu_custom_call.1']
    %21 = vsyncpa [#allocation3], 0
    %22 = vsyncpa [#allocation5], 0
    %23 = vsyncpa [#allocation8], 0
    loop: start=0, step=1, limit=4
    $region2: #{tpu_custom_call.1} parent=1 // loop_pre_header
      _
    $region3: #{tpu_custom_call.1} parent=1 // loop_header
      %s25 = sphi 0, %s29
      %p26 = scmp.ge.s32.totalorder %s25, 4
      %s35 = sphi 0, %s37
      %s38 = sphi 0, %s35
      %s39 = sphi 0, %s38
      %s55 = sphi 0, %s39
      %s59 = sphi 0, %s59
      %s61 = sphi 0, %s59
      %s62 = sphi 0, %s61
      %s76 = sphi 0, %s62
      %s80 = sphi 0, %s80
      %s82 = sphi 0, %s80
      %s83 = sphi 0, %s82
      %s97 = sphi 0, %s83
      %s101 = sphi 0, %s101
      %s103 = sphi 0, %s101
      %s104 = sphi 0, %s103
      %s118 = sphi 0, %s104
      %s122 = sphi 0, %s122
      %s124 = sphi 0, %s122
      %s125 = sphi 0, %s124
      %s139 = sphi 0, %s125
      %s143 = sphi 0, %s143
      %s145 = sphi 0, %s143
      %s146 = sphi 0, %s145
      %s160 = sphi 0, %s146
      %s164 = sphi 0, %s164
      %s166 = sphi 0, %s164
      %s167 = sphi 0, %s166
      %s181 = sphi 0, %s167
      %s185 = sphi 0, %s185
      %s187 = sphi 0, %s185
      %s188 = sphi 0, %s187
      %s202 = sphi 0, %s188
      %s206 = sphi 0, %s206
      %s208 = sphi 0, %s206
      %s209 = sphi 0, %s208
      %s223 = sphi 0, %s209
      %s227 = sphi 0, %s227
      %s229 = sphi 0, %s227
      %s230 = sphi 0, %s229
      %s244 = sphi 0, %s230
      %s248 = sphi 0, %s248
      %s250 = sphi 0, %s248
      %s251 = sphi 0, %s250
      %s265 = sphi 0, %s251
      %s269 = sphi 0, %s269
      %s271 = sphi 0, %s269
      %s272 = sphi 0, %s271
      %s286 = sphi 0, %s272
      %s290 = sphi 0, %s290
      %s292 = sphi 0, %s290
      %s293 = sphi 0, %s292
      %s307 = sphi 0, %s293
      %s311 = sphi 0, %s311
      %s313 = sphi 0, %s311
      %s314 = sphi 0, %s313
      %s328 = sphi 0, %s314
      %s332 = sphi 0, %s332
      %s334 = sphi 0, %s332
      %s335 = sphi 0, %s334
      %s349 = sphi 0, %s335
      %s353 = sphi 0, %s353
      %s355 = sphi 0, %s353
      %s356 = sphi 0, %s355
      %s370 = sphi 0, %s356
      %s376 = sphi 0, %s378
      %s379 = sphi 0, %s376
      %s380 = sphi 0, %s379
      %s396 = sphi 0, %s380
    $region4: #{tpu_custom_call.1} parent=1 // loop_header_branch
      %28 = sbr.rel (%p26) target = $region8
    $region5: #{tpu_custom_call.1} parent=1 // loop_body
      %s30 = ssub.s32 %s25, 1
      %s31 = ssub.s32 %s25, 2
      %s32 = sadd.s32 %s25, 1
      %s33 = ssub.s32 %s25, %s32
      %p34 = scmp.eq.s32.totalorder %s33, 0
      %s36 = sadd.s32 %s35, 1
      %s37 = scalar_select %p34, %s35, %s36
      %p40 = pneg %p34
      %p41 = scmp.eq.s32.totalorder %s25, 1
      %p42 = por %p40, %p41
      %p43 = scmp.ne.s32.totalorder %s35, %s38
      %p44 = scmp.eq.s32.totalorder %s25, 0
      %p45 = por %p43, %p44
      %p46 = scmp.ne.s32.totalorder %s35, %s38
      %p47 = scmp.eq.s32.totalorder %s30, 1
      %p48 = por %p46, %p47
      %p49 = scmp.ne.s32.totalorder %s38, %s39
      %p50 = scmp.eq.s32.totalorder %s30, 0
      %p51 = por %p49, %p50
      %p52 = scmp.ne.s32.totalorder %s38, %s39
      %p53 = scmp.eq.s32.totalorder %s31, 1
      %p54 = por %p52, %p53
      %p56 = scmp.ne.s32.totalorder %s39, %s55
      %p57 = scmp.eq.s32.totalorder %s31, 0
      %p58 = por %p56, %p57
      %s60 = sadd.s32 %s59, 1
      %p63 = scmp.eq.s32.totalorder %s25, 1
      %p64 = scmp.ne.s32.totalorder %s59, %s61
      %p65 = scmp.eq.s32.totalorder %s25, 0
      %p66 = por %p64, %p65
      %p67 = scmp.ne.s32.totalorder %s59, %s61
      %p68 = scmp.eq.s32.totalorder %s30, 1
      %p69 = por %p67, %p68
      %p70 = scmp.ne.s32.totalorder %s61, %s62
      %p71 = scmp.eq.s32.totalorder %s30, 0
      %p72 = por %p70, %p71
      %p73 = scmp.ne.s32.totalorder %s61, %s62
      %p74 = scmp.eq.s32.totalorder %s31, 1
      %p75 = por %p73, %p74
      %p77 = scmp.ne.s32.totalorder %s62, %s76
      %p78 = scmp.eq.s32.totalorder %s31, 0
      %p79 = por %p77, %p78
      %s81 = sadd.s32 %s80, 1
      %p84 = scmp.eq.s32.totalorder %s25, 1
      %p85 = scmp.ne.s32.totalorder %s80, %s82
      %p86 = scmp.eq.s32.totalorder %s25, 0
      %p87 = por %p85, %p86
      %p88 = scmp.ne.s32.totalorder %s80, %s82
      %p89 = scmp.eq.s32.totalorder %s30, 1
      %p90 = por %p88, %p89
      %p91 = scmp.ne.s32.totalorder %s82, %s83
      %p92 = scmp.eq.s32.totalorder %s30, 0
      %p93 = por %p91, %p92
      %p94 = scmp.ne.s32.totalorder %s82, %s83
      %p95 = scmp.eq.s32.totalorder %s31, 1
      %p96 = por %p94, %p95
      %p98 = scmp.ne.s32.totalorder %s83, %s97
      %p99 = scmp.eq.s32.totalorder %s31, 0
      %p100 = por %p98, %p99
      %s102 = sadd.s32 %s101, 1
      %p105 = scmp.eq.s32.totalorder %s25, 1
      %p106 = scmp.ne.s32.totalorder %s101, %s103
      %p107 = scmp.eq.s32.totalorder %s25, 0
      %p108 = por %p106, %p107
      %p109 = scmp.ne.s32.totalorder %s101, %s103
      %p110 = scmp.eq.s32.totalorder %s30, 1
      %p111 = por %p109, %p110
      %p112 = scmp.ne.s32.totalorder %s103, %s104
      %p113 = scmp.eq.s32.totalorder %s30, 0
      %p114 = por %p112, %p113
      %p115 = scmp.ne.s32.totalorder %s103, %s104
      %p116 = scmp.eq.s32.totalorder %s31, 1
      %p117 = por %p115, %p116
      %p119 = scmp.ne.s32.totalorder %s104, %s118
      %p120 = scmp.eq.s32.totalorder %s31, 0
      %p121 = por %p119, %p120
      %s123 = sadd.s32 %s122, 1
      %p126 = scmp.eq.s32.totalorder %s25, 1
      %p127 = scmp.ne.s32.totalorder %s122, %s124
      %p128 = scmp.eq.s32.totalorder %s25, 0
      %p129 = por %p127, %p128
      %p130 = scmp.ne.s32.totalorder %s122, %s124
      %p131 = scmp.eq.s32.totalorder %s30, 1
      %p132 = por %p130, %p131
      %p133 = scmp.ne.s32.totalorder %s124, %s125
      %p134 = scmp.eq.s32.totalorder %s30, 0
      %p135 = por %p133, %p134
      %p136 = scmp.ne.s32.totalorder %s124, %s125
      %p137 = scmp.eq.s32.totalorder %s31, 1
      %p138 = por %p136, %p137
      %p140 = scmp.ne.s32.totalorder %s125, %s139
      %p141 = scmp.eq.s32.totalorder %s31, 0
      %p142 = por %p140, %p141
      %s144 = sadd.s32 %s143, 1
      %p147 = scmp.eq.s32.totalorder %s25, 1
      %p148 = scmp.ne.s32.totalorder %s143, %s145
      %p149 = scmp.eq.s32.totalorder %s25, 0
      %p150 = por %p148, %p149
      %p151 = scmp.ne.s32.totalorder %s143, %s145
      %p152 = scmp.eq.s32.totalorder %s30, 1
      %p153 = por %p151, %p152
      %p154 = scmp.ne.s32.totalorder %s145, %s146
      %p155 = scmp.eq.s32.totalorder %s30, 0
      %p156 = por %p154, %p155
      %p157 = scmp.ne.s32.totalorder %s145, %s146
      %p158 = scmp.eq.s32.totalorder %s31, 1
      %p159 = por %p157, %p158
      %p161 = scmp.ne.s32.totalorder %s146, %s160
      %p162 = scmp.eq.s32.totalorder %s31, 0
      %p163 = por %p161, %p162
      %s165 = sadd.s32 %s164, 1
      %p168 = scmp.eq.s32.totalorder %s25, 1
      %p169 = scmp.ne.s32.totalorder %s164, %s166
      %p170 = scmp.eq.s32.totalorder %s25, 0
      %p171 = por %p169, %p170
      %p172 = scmp.ne.s32.totalorder %s164, %s166
      %p173 = scmp.eq.s32.totalorder %s30, 1
      %p174 = por %p172, %p173
      %p175 = scmp.ne.s32.totalorder %s166, %s167
      %p176 = scmp.eq.s32.totalorder %s30, 0
      %p177 = por %p175, %p176
      %p178 = scmp.ne.s32.totalorder %s166, %s167
      %p179 = scmp.eq.s32.totalorder %s31, 1
      %p180 = por %p178, %p179
      %p182 = scmp.ne.s32.totalorder %s167, %s181
      %p183 = scmp.eq.s32.totalorder %s31, 0
      %p184 = por %p182, %p183
      %s186 = sadd.s32 %s185, 1
      %p189 = scmp.eq.s32.totalorder %s25, 1
      %p190 = scmp.ne.s32.totalorder %s185, %s187
      %p191 = scmp.eq.s32.totalorder %s25, 0
      %p192 = por %p190, %p191
      %p193 = scmp.ne.s32.totalorder %s185, %s187
      %p194 = scmp.eq.s32.totalorder %s30, 1
      %p195 = por %p193, %p194
      %p196 = scmp.ne.s32.totalorder %s187, %s188
      %p197 = scmp.eq.s32.totalorder %s30, 0
      %p198 = por %p196, %p197
      %p199 = scmp.ne.s32.totalorder %s187, %s188
      %p200 = scmp.eq.s32.totalorder %s31, 1
      %p201 = por %p199, %p200
      %p203 = scmp.ne.s32.totalorder %s188, %s202
      %p204 = scmp.eq.s32.totalorder %s31, 0
      %p205 = por %p203, %p204
      %s207 = sadd.s32 %s206, 1
      %p210 = scmp.eq.s32.totalorder %s25, 1
      %p211 = scmp.ne.s32.totalorder %s206, %s208
      %p212 = scmp.eq.s32.totalorder %s25, 0
      %p213 = por %p211, %p212
      %p214 = scmp.ne.s32.totalorder %s206, %s208
      %p215 = scmp.eq.s32.totalorder %s30, 1
      %p216 = por %p214, %p215
      %p217 = scmp.ne.s32.totalorder %s208, %s209
      %p218 = scmp.eq.s32.totalorder %s30, 0
      %p219 = por %p217, %p218
      %p220 = scmp.ne.s32.totalorder %s208, %s209
      %p221 = scmp.eq.s32.totalorder %s31, 1
      %p222 = por %p220, %p221
      %p224 = scmp.ne.s32.totalorder %s209, %s223
      %p225 = scmp.eq.s32.totalorder %s31, 0
      %p226 = por %p224, %p225
      %s228 = sadd.s32 %s227, 1
      %p231 = scmp.eq.s32.totalorder %s25, 1
      %p232 = scmp.ne.s32.totalorder %s227, %s229
      %p233 = scmp.eq.s32.totalorder %s25, 0
      %p234 = por %p232, %p233
      %p235 = scmp.ne.s32.totalorder %s227, %s229
      %p236 = scmp.eq.s32.totalorder %s30, 1
      %p237 = por %p235, %p236
      %p238 = scmp.ne.s32.totalorder %s229, %s230
      %p239 = scmp.eq.s32.totalorder %s30, 0
      %p240 = por %p238, %p239
      %p241 = scmp.ne.s32.totalorder %s229, %s230
      %p242 = scmp.eq.s32.totalorder %s31, 1
      %p243 = por %p241, %p242
      %p245 = scmp.ne.s32.totalorder %s230, %s244
      %p246 = scmp.eq.s32.totalorder %s31, 0
      %p247 = por %p245, %p246
      %s249 = sadd.s32 %s248, 1
      %p252 = scmp.eq.s32.totalorder %s25, 1
      %p253 = scmp.ne.s32.totalorder %s248, %s250
      %p254 = scmp.eq.s32.totalorder %s25, 0
      %p255 = por %p253, %p254
      %p256 = scmp.ne.s32.totalorder %s248, %s250
      %p257 = scmp.eq.s32.totalorder %s30, 1
      %p258 = por %p256, %p257
      %p259 = scmp.ne.s32.totalorder %s250, %s251
      %p260 = scmp.eq.s32.totalorder %s30, 0
      %p261 = por %p259, %p260
      %p262 = scmp.ne.s32.totalorder %s250, %s251
      %p263 = scmp.eq.s32.totalorder %s31, 1
      %p264 = por %p262, %p263
      %p266 = scmp.ne.s32.totalorder %s251, %s265
      %p267 = scmp.eq.s32.totalorder %s31, 0
      %p268 = por %p266, %p267
      %s270 = sadd.s32 %s269, 1
      %p273 = scmp.eq.s32.totalorder %s25, 1
      %p274 = scmp.ne.s32.totalorder %s269, %s271
      %p275 = scmp.eq.s32.totalorder %s25, 0
      %p276 = por %p274, %p275
      %p277 = scmp.ne.s32.totalorder %s269, %s271
      %p278 = scmp.eq.s32.totalorder %s30, 1
      %p279 = por %p277, %p278
      %p280 = scmp.ne.s32.totalorder %s271, %s272
      %p281 = scmp.eq.s32.totalorder %s30, 0
      %p282 = por %p280, %p281
      %p283 = scmp.ne.s32.totalorder %s271, %s272
      %p284 = scmp.eq.s32.totalorder %s31, 1
      %p285 = por %p283, %p284
      %p287 = scmp.ne.s32.totalorder %s272, %s286
      %p288 = scmp.eq.s32.totalorder %s31, 0
      %p289 = por %p287, %p288
      %s291 = sadd.s32 %s290, 1
      %p294 = scmp.eq.s32.totalorder %s25, 1
      %p295 = scmp.ne.s32.totalorder %s290, %s292
      %p296 = scmp.eq.s32.totalorder %s25, 0
      %p297 = por %p295, %p296
      %p298 = scmp.ne.s32.totalorder %s290, %s292
      %p299 = scmp.eq.s32.totalorder %s30, 1
      %p300 = por %p298, %p299
      %p301 = scmp.ne.s32.totalorder %s292, %s293
      %p302 = scmp.eq.s32.totalorder %s30, 0
      %p303 = por %p301, %p302
      %p304 = scmp.ne.s32.totalorder %s292, %s293
      %p305 = scmp.eq.s32.totalorder %s31, 1
      %p306 = por %p304, %p305
      %p308 = scmp.ne.s32.totalorder %s293, %s307
      %p309 = scmp.eq.s32.totalorder %s31, 0
      %p310 = por %p308, %p309
      %s312 = sadd.s32 %s311, 1
      %p315 = scmp.eq.s32.totalorder %s25, 1
      %p316 = scmp.ne.s32.totalorder %s311, %s313
      %p317 = scmp.eq.s32.totalorder %s25, 0
      %p318 = por %p316, %p317
      %p319 = scmp.ne.s32.totalorder %s311, %s313
      %p320 = scmp.eq.s32.totalorder %s30, 1
      %p321 = por %p319, %p320
      %p322 = scmp.ne.s32.totalorder %s313, %s314
      %p323 = scmp.eq.s32.totalorder %s30, 0
      %p324 = por %p322, %p323
      %p325 = scmp.ne.s32.totalorder %s313, %s314
      %p326 = scmp.eq.s32.totalorder %s31, 1
      %p327 = por %p325, %p326
      %p329 = scmp.ne.s32.totalorder %s314, %s328
      %p330 = scmp.eq.s32.totalorder %s31, 0
      %p331 = por %p329, %p330
      %s333 = sadd.s32 %s332, 1
      %p336 = scmp.eq.s32.totalorder %s25, 1
      %p337 = scmp.ne.s32.totalorder %s332, %s334
      %p338 = scmp.eq.s32.totalorder %s25, 0
      %p339 = por %p337, %p338
      %p340 = scmp.ne.s32.totalorder %s332, %s334
      %p341 = scmp.eq.s32.totalorder %s30, 1
      %p342 = por %p340, %p341
      %p343 = scmp.ne.s32.totalorder %s334, %s335
      %p344 = scmp.eq.s32.totalorder %s30, 0
      %p345 = por %p343, %p344
      %p346 = scmp.ne.s32.totalorder %s334, %s335
      %p347 = scmp.eq.s32.totalorder %s31, 1
      %p348 = por %p346, %p347
      %p350 = scmp.ne.s32.totalorder %s335, %s349
      %p351 = scmp.eq.s32.totalorder %s31, 0
      %p352 = por %p350, %p351
      %s354 = sadd.s32 %s353, 1
      %p357 = scmp.eq.s32.totalorder %s25, 1
      %p358 = scmp.ne.s32.totalorder %s353, %s355
      %p359 = scmp.eq.s32.totalorder %s25, 0
      %p360 = por %p358, %p359
      %p361 = scmp.ne.s32.totalorder %s353, %s355
      %p362 = scmp.eq.s32.totalorder %s30, 1
      %p363 = por %p361, %p362
      %p364 = scmp.ne.s32.totalorder %s355, %s356
      %p365 = scmp.eq.s32.totalorder %s30, 0
      %p366 = por %p364, %p365
      %p367 = scmp.ne.s32.totalorder %s355, %s356
      %p368 = scmp.eq.s32.totalorder %s31, 1
      %p369 = por %p367, %p368
      %p371 = scmp.ne.s32.totalorder %s356, %s370
      %p372 = scmp.eq.s32.totalorder %s31, 0
      %p373 = por %p371, %p372
      %s374 = ssub.s32 %s25, %s32
      %p375 = scmp.eq.s32.totalorder %s374, 0
      %s377 = sadd.s32 %s376, 1
      %s378 = scalar_select %p375, %s376, %s377
      %p381 = pneg %p375
      %p382 = scmp.eq.s32.totalorder %s25, 1
      %p383 = por %p381, %p382
      %p384 = scmp.ne.s32.totalorder %s376, %s379
      %p385 = scmp.eq.s32.totalorder %s25, 0
      %p386 = por %p384, %p385
      %p387 = scmp.ne.s32.totalorder %s376, %s379
      %p388 = scmp.eq.s32.totalorder %s30, 1
      %p389 = por %p387, %p388
      %p390 = scmp.ne.s32.totalorder %s379, %s380
      %p391 = scmp.eq.s32.totalorder %s30, 0
      %p392 = por %p390, %p391
      %p393 = scmp.ne.s32.totalorder %s379, %s380
      %p394 = scmp.eq.s32.totalorder %s31, 1
      %p395 = por %p393, %p394
      %p397 = scmp.ne.s32.totalorder %s380, %s396
      %p398 = scmp.eq.s32.totalorder %s31, 0
      %p399 = por %p397, %p398
      %p400 = scmp.le.s32.totalorder 1, %s25
      %p401 = scmp.lt.s32.totalorder %s25, 3
      %p402 = pnand %p400, %p401
      %p403 = pneg %p402
      // Predicated region
      $region9: #{tpu_custom_call.1} parent=5 // pred_check
        _
      $region10: #{tpu_custom_call.1} parent=5 // pred_check_branch
        %405 = sbr.rel (%p402) target = $region12
      $region11: #{tpu_custom_call.1} parent=5 // pred_region
        %s406 = ssub.s32 %s25, 1
        // Predicated region
        $region13: #{tpu_custom_call.1} parent=11 // pred_check
          %p407 = pneg %p72
        $region14: #{tpu_custom_call.1} parent=11 // pred_check_branch
          %409 = sbr.rel (%p407) target = $region16
        $region15: #{tpu_custom_call.1} parent=11 // pred_region
          _
        $region16: #{tpu_custom_call.1} parent=11 // pred_fallthru
          _
        // Predicated region
        $region17: #{tpu_custom_call.1} parent=11 // pred_check
          %p410 = pneg %p93
        $region18: #{tpu_custom_call.1} parent=11 // pred_check_branch
          %412 = sbr.rel (%p410) target = $region20
        $region19: #{tpu_custom_call.1} parent=11 // pred_region
          _
        $region20: #{tpu_custom_call.1} parent=11 // pred_fallthru
          _
        // Predicated region
        $region21: #{tpu_custom_call.1} parent=11 // pred_check
          %p413 = pneg %p114
        $region22: #{tpu_custom_call.1} parent=11 // pred_check_branch
          %415 = sbr.rel (%p413) target = $region24
        $region23: #{tpu_custom_call.1} parent=11 // pred_region
          %417 = vsyncadd [#allocation3], 0
          %s418 = sshll.u32 %s3, 4
          %s419 = int_to_ptr.hbm [resolvable:$true] %s418
          %s420 = sshll.u32 [#allocation2], 4
          %s421 = int_to_ptr.vmem [resolvable:$true] %s420
          %426 = dma.hbm_to_vmem [thread:$0]  %s419, 3072, %s421, [#allocation3], 64, 64, 4
        $region24: #{tpu_custom_call.1} parent=11 // pred_fallthru
          _
        // Predicated region
        $region25: #{tpu_custom_call.1} parent=11 // pred_check
          %p427 = pneg %p135
        $region26: #{tpu_custom_call.1} parent=11 // pred_check_branch
          %429 = sbr.rel (%p427) target = $region28
        $region27: #{tpu_custom_call.1} parent=11 // pred_region
          _
        $region28: #{tpu_custom_call.1} parent=11 // pred_fallthru
          _
        // Predicated region
        $region29: #{tpu_custom_call.1} parent=11 // pred_check
          %p430 = pneg %p156
        $region30: #{tpu_custom_call.1} parent=11 // pred_check_branch
          %432 = sbr.rel (%p430) target = $region32
        $region31: #{tpu_custom_call.1} parent=11 // pred_region
          _
        $region32: #{tpu_custom_call.1} parent=11 // pred_fallthru
          _
        // Predicated region
        $region33: #{tpu_custom_call.1} parent=11 // pred_check
          %p433 = pneg %p177
        $region34: #{tpu_custom_call.1} parent=11 // pred_check_branch
          %435 = sbr.rel (%p433) target = $region36
        $region35: #{tpu_custom_call.1} parent=11 // pred_region
          _
        $region36: #{tpu_custom_call.1} parent=11 // pred_fallthru
          _
        // Predicated region
        $region37: #{tpu_custom_call.1} parent=11 // pred_check
          %p436 = pneg %p198
        $region38: #{tpu_custom_call.1} parent=11 // pred_check_branch
          %438 = sbr.rel (%p436) target = $region40
        $region39: #{tpu_custom_call.1} parent=11 // pred_region
          _
        $region40: #{tpu_custom_call.1} parent=11 // pred_fallthru
          _
        // Predicated region
        $region41: #{tpu_custom_call.1} parent=11 // pred_check
          %p439 = pneg %p219
        $region42: #{tpu_custom_call.1} parent=11 // pred_check_branch
          %441 = sbr.rel (%p439) target = $region44
        $region43: #{tpu_custom_call.1} parent=11 // pred_region
          %443 = vsyncadd [#allocation5], 0
          %s444 = sshll.u32 %s8, 4
          %s445 = int_to_ptr.hbm [resolvable:$true] %s444
          %s446 = sshll.u32 [#allocation4], 4
          %s447 = int_to_ptr.vmem [resolvable:$true] %s446
          %452 = dma.hbm_to_vmem [thread:$0]  %s445, 3072, %s447, [#allocation5], 64, 64, 4
        $region44: #{tpu_custom_call.1} parent=11 // pred_fallthru
          _
        // Predicated region
        $region45: #{tpu_custom_call.1} parent=11 // pred_check
          %p453 = pneg %p240
        $region46: #{tpu_custom_call.1} parent=11 // pred_check_branch
          %455 = sbr.rel (%p453) target = $region48
        $region47: #{tpu_custom_call.1} parent=11 // pred_region
          _
        $region48: #{tpu_custom_call.1} parent=11 // pred_fallthru
          _
        // Predicated region
        $region49: #{tpu_custom_call.1} parent=11 // pred_check
          %p456 = pneg %p261
        $region50: #{tpu_custom_call.1} parent=11 // pred_check_branch
          %458 = sbr.rel (%p456) target = $region52
        $region51: #{tpu_custom_call.1} parent=11 // pred_region
          _
        $region52: #{tpu_custom_call.1} parent=11 // pred_fallthru
          _
        // Predicated region
        $region53: #{tpu_custom_call.1} parent=11 // pred_check
          %p459 = pneg %p282
        $region54: #{tpu_custom_call.1} parent=11 // pred_check_branch
          %461 = sbr.rel (%p459) target = $region56
        $region55: #{tpu_custom_call.1} parent=11 // pred_region
          _
        $region56: #{tpu_custom_call.1} parent=11 // pred_fallthru
          _
        // Predicated region
        $region57: #{tpu_custom_call.1} parent=11 // pred_check
          %p462 = pneg %p303
        $region58: #{tpu_custom_call.1} parent=11 // pred_check_branch
          %464 = sbr.rel (%p462) target = $region60
        $region59: #{tpu_custom_call.1} parent=11 // pred_region
          _
        $region60: #{tpu_custom_call.1} parent=11 // pred_fallthru
          _
        // Predicated region
        $region61: #{tpu_custom_call.1} parent=11 // pred_check
          %p465 = pneg %p324
        $region62: #{tpu_custom_call.1} parent=11 // pred_check_branch
          %467 = sbr.rel (%p465) target = $region64
        $region63: #{tpu_custom_call.1} parent=11 // pred_region
          %469 = vsyncadd [#allocation5], 0
          %s470 = sshll.u32 %s13, 4
          %s471 = int_to_ptr.hbm [resolvable:$true] %s470
          %s472 = sshll.u32 [#allocation6], 4
          %s473 = int_to_ptr.vmem [resolvable:$true] %s472
          %478 = dma.hbm_to_vmem [thread:$0]  %s471, 1024, %s473, [#allocation5], 64, 64, 4
        $region64: #{tpu_custom_call.1} parent=11 // pred_fallthru
          _
        // Predicated region
        $region65: #{tpu_custom_call.1} parent=11 // pred_check
          %p479 = pneg %p345
        $region66: #{tpu_custom_call.1} parent=11 // pred_check_branch
          %481 = sbr.rel (%p479) target = $region68
        $region67: #{tpu_custom_call.1} parent=11 // pred_region
          _
        $region68: #{tpu_custom_call.1} parent=11 // pred_fallthru
          _
        // Predicated region
        $region69: #{tpu_custom_call.1} parent=11 // pred_check
          %p482 = pneg %p366
        $region70: #{tpu_custom_call.1} parent=11 // pred_check_branch
          %484 = sbr.rel (%p482) target = $region72
        $region71: #{tpu_custom_call.1} parent=11 // pred_region
          %486 = vsyncadd [#allocation8], 0
          %s487 = sshll.u32 %s15, 4
          %s488 = int_to_ptr.hbm [resolvable:$true] %s487
          %s489 = sshll.u32 [#allocation7], 4
          %s490 = int_to_ptr.vmem [resolvable:$true] %s489
          %495 = dma.hbm_to_vmem [thread:$0]  %s488, 2048, %s490, [#allocation8], 64, 64, 4
        $region72: #{tpu_custom_call.1} parent=11 // pred_fallthru
          _
      $region12: #{tpu_custom_call.1} parent=5 // pred_fallthru
        _
      %p496 = scmp.lt.s32.totalorder %s25, 2
      // Predicated region
      $region73: #{tpu_custom_call.1} parent=5 // pred_check
        %p497 = pneg %p496
      $region74: #{tpu_custom_call.1} parent=5 // pred_check_branch
        %499 = sbr.rel (%p497) target = $region76
      $region75: #{tpu_custom_call.1} parent=5 // pred_region
        // Predicated region
        $region77: #{tpu_custom_call.1} parent=75 // pred_check
          %p500 = pneg %p45
        $region78: #{tpu_custom_call.1} parent=75 // pred_check_branch
          %502 = sbr.rel (%p500) target = $region80
        $region79: #{tpu_custom_call.1} parent=75 // pred_region
          %p503 = scmp.lt.s32.totalorder %s25, 1
          %s504 = scalar_select %p503, %s25, 1
          %s505 = smul.addr %s504, 8
          %s506 = scalar_lea.vmem %s0, %s505
        $region80: #{tpu_custom_call.1} parent=75 // pred_fallthru
          _
      $region76: #{tpu_custom_call.1} parent=5 // pred_fallthru
        _
      %p507 = scmp.le.s32.totalorder 1, %s25
      %p508 = scmp.lt.s32.totalorder %s25, 3
      %p509 = pnand %p507, %p508
      %p510 = pneg %p509
      // Predicated region
      $region81: #{tpu_custom_call.1} parent=5 // pred_check
        _
      $region82: #{tpu_custom_call.1} parent=5 // pred_check_branch
        %512 = sbr.rel (%p509) target = $region84
      $region83: #{tpu_custom_call.1} parent=5 // pred_region
        %s513 = ssub.s32 %s25, 1
        // Predicated region
        $region85: #{tpu_custom_call.1} parent=83 // pred_check
          %p514 = pneg %p114
        $region86: #{tpu_custom_call.1} parent=83 // pred_check_branch
          %516 = sbr.rel (%p514) target = $region88
        $region87: #{tpu_custom_call.1} parent=83 // pred_region
          %518 = dma.done [#allocation3], 3072
        $region88: #{tpu_custom_call.1} parent=83 // pred_fallthru
          _
        // Predicated region
        $region89: #{tpu_custom_call.1} parent=83 // pred_check
          %p519 = pneg %p219
        $region90: #{tpu_custom_call.1} parent=83 // pred_check_branch
          %521 = sbr.rel (%p519) target = $region92
        $region91: #{tpu_custom_call.1} parent=83 // pred_region
          %523 = dma.done [#allocation5], 3072
        $region92: #{tpu_custom_call.1} parent=83 // pred_fallthru
          _
        // Predicated region
        $region93: #{tpu_custom_call.1} parent=83 // pred_check
          %p524 = pneg %p324
        $region94: #{tpu_custom_call.1} parent=83 // pred_check_branch
          %526 = sbr.rel (%p524) target = $region96
        $region95: #{tpu_custom_call.1} parent=83 // pred_region
          %528 = dma.done [#allocation5], 1024
        $region96: #{tpu_custom_call.1} parent=83 // pred_fallthru
          _
        // Predicated region
        $region97: #{tpu_custom_call.1} parent=83 // pred_check
          %p529 = pneg %p366
        $region98: #{tpu_custom_call.1} parent=83 // pred_check_branch
          %531 = sbr.rel (%p529) target = $region100
        $region99: #{tpu_custom_call.1} parent=83 // pred_region
          %533 = dma.done [#allocation8], 2048
        $region100: #{tpu_custom_call.1} parent=83 // pred_fallthru
          _
        %p534 = scmp.lt.s32.totalorder %s30, 1
        %s535 = scalar_select %p534, %s30, 1
        %s536 = smul.addr %s535, 8
        %s537 = scalar_lea.vmem %s0, %s536
        %p538 = pneg %p51
        %p539 = pneg %p48
        %p540 = pneg %p72
        %p541 = pneg %p69
        %p542 = pneg %p93
        %p543 = pneg %p90
        %p544 = pneg %p114
        %p545 = pneg %p111
        %p546 = pneg %p135
        %p547 = pneg %p132
        %p548 = pneg %p156
        %p549 = pneg %p153
        %p550 = pneg %p177
        %p551 = pneg %p174
        %p552 = pneg %p198
        %p553 = pneg %p195
        %p554 = pneg %p219
        %p555 = pneg %p216
        %p556 = pneg %p240
        %p557 = pneg %p237
        %p558 = pneg %p261
        %p559 = pneg %p258
        %p560 = pneg %p282
        %p561 = pneg %p279
        %p562 = pneg %p303
        %p563 = pneg %p300
        %p564 = pneg %p324
        %p565 = pneg %p321
        %p566 = pneg %p345
        %p567 = pneg %p342
        %p568 = pneg %p366
        %p569 = pneg %p363
        %p570 = pneg %p392
        %p571 = pneg %p389
        %s572 = smul.u32 16, %s30
        %p573 = scmp.lt.s32.totalorder %s572, 31
        %s574 = scalar_select %p573, %s572, 31
        %s575 = smul.addr %s574, 8
        %s576 = scalar_lea.vmem %s16, %s575
        %p577 = scmp.lt.s32.totalorder %s30, 1
        %s578 = scalar_select %p577, %s30, 1
        %s579 = smul.addr %s578, 8
        %s580 = scalar_lea.vmem %s0, %s579
        %s581 = smul.u32 16, %s30
        %p582 = scmp.lt.s32.totalorder %s581, 31
        %s583 = scalar_select %p582, %s581, 31
        %s584 = smul.addr %s583, 8
        %s585 = scalar_lea.vmem %s16, %s584
        %s586 = smul.u32 16, %s30
        %v588 = vld [vmem:[%s580] sm:$0xff]
        %v589 = vld [vmem:[%s1] sm:$0x7]
        %591 = vset.pattern.permute.xlu0 0
        %592 = vperm.xlu0 %591, %v588
        %v593 = vpop.permute.xlu0 %592
        %v596 = vperm.slane %v589, 0
        %v597 = vperm.slane %v589, 1
        %v598 = vperm.slane %v589, 2
        %v602 = vmul.f32 %v593, %v596
        %v603 = vmul.f32 %v593, %v597
        %v604 = vmul.f32 %v593, %v598
        %v605 = vld [vmem:[%s2] sm:$0x7]
        %v607 = vperm.slane %v605, 0
        %v608 = vperm.slane %v605, 1
        %v609 = vperm.slane %v605, 2
        %v613 = vadd.f32 %v602, %v607
        %v614 = vadd.f32 %v603, %v608
        %v615 = vadd.f32 %v604, %v609
        %v616 = vmul.f32 %v613, 30.0
        %v617 = vmul.f32 %v614, 30.0
        %v618 = vmul.f32 %v615, 30.0
        %v619 = vand.u32 2147483647, %v616
        %vm620 = vcmp.le.f32.partialorder %v619, 0.7853982
        %vm621 = vcmp.lt.s32.totalorder %v616, 0
        %v622 = vand.u32 %v616, 2139095040
        %v623 = vshrl.u32 %v622, 23
        %v624 = vsub.s32 %v623, 127
        %v625 = vand.u32 2147483647, %v616
        %v626 = vand.u32 %v625, 8388607
        %v627 = vor.u32 %v626, 8388608
        %v628 = vsub.s32 0, %v627
        %v629 = vadd.s32 %v624, 1
        %vm630 = vcmp.gt.s32.totalorder %v629, 0
        %v631 = vsel %vm630, %v629, 0
        %v632 = vshrl.u32 %v631, 5
        %v633 = vand.u32 %v631, 31
        %v634 = vsub.s32 32, %v633
        %v635 = vshrl.u32 683565275, %v634
        %v636 = vshll.u32 683565275, %v633
        %v637 = vshrl.u32 2475754826, %v634
        %v638 = vor.u32 %v636, %v637
        %v639 = vshll.u32 2475754826, %v633
        %v640 = vshrl.u32 2131351028, %v634
        %v641 = vor.u32 %v639, %v640
        %v642 = vshll.u32 2131351028, %v633
        %v643 = vshrl.u32 2102212464, %v634
        %v644 = vor.u32 %v642, %v643
        %v645 = vshll.u32 2102212464, %v633
        %v646 = vshrl.u32 920167782, %v634
        %v647 = vor.u32 %v645, %v646
        %v648 = vshll.u32 920167782, %v633
        %v649 = vshrl.u32 1326507024, %v634
        %v650 = vor.u32 %v648, %v649
        %vm651 = vcmp.lt.s32.totalorder %v632, 1
        %vm652 = vcmp.lt.s32.totalorder %v632, 2
        %vm653 = vcmp.lt.s32.totalorder %v632, 3
        %vm654 = vcmp.lt.s32.totalorder %v632, 4
        %v655 = vsel %vm651, %v635, %v638
        %v656 = vsel %vm654, %v644, 2102212464
        %v657 = vsel %vm653, %v641, %v656
        %v658 = vsel %vm652, %v655, %v657
        %v659 = vsel %vm651, %v638, %v641
        %v660 = vsel %vm654, %v647, 920167782
        %v661 = vsel %vm653, %v644, %v660
        %v662 = vsel %vm652, %v659, %v661
        %v663 = vsel %vm651, %v641, %v644
        %v664 = vsel %vm654, %v650, 1326507024
        %v665 = vsel %vm653, %v647, %v664
        %v666 = vsel %vm652, %v663, %v665
        %v667 = vshll.u32 %v627, 8
        %v668 = vand.u32 %v667, 65535
        %v669 = vshrl.u32 %v667, 16
        %v670 = vand.u32 %v666, 65535
        %v671 = vshrl.u32 %v666, 16
        %v672 = vmul.u32 %v668, %v670
        %v673 = vmul.u32 %v668, %v671
        %v674 = vmul.u32 %v669, %v670
        %v675 = vmul.u32 %v669, %v671
        %v676 = vshll.u32 %v673, 16
        %v677 = vshrl.u32 %v673, 16
        %v678 = vshll.u32 %v674, 16
        %v679 = vshrl.u32 %v674, 16
        %vm680 = vc.u32 %v672, %v676
        %v681 = vsel %vm680, 1, 0
        %v682 = vadd.s32 %v672, %v676
        %v683 = vadd.s32 %v675, %v681
        %vm684 = vc.u32 %v682, %v678
        %v685 = vsel %vm684, 1, 0
        %v686 = vadd.s32 %v682, %v678
        %v687 = vadd.s32 %v683, %v685
        %v688 = vadd.s32 %v687, %v677
        %v689 = vadd.s32 %v688, %v679
        %v690 = vand.u32 %v667, 65535
        %v691 = vshrl.u32 %v667, 16
        %v692 = vand.u32 %v662, 65535
        %v693 = vshrl.u32 %v662, 16
        %v694 = vmul.u32 %v690, %v692
        %v695 = vmul.u32 %v690, %v693
        %v696 = vmul.u32 %v691, %v692
        %v697 = vmul.u32 %v691, %v693
        %v698 = vshll.u32 %v695, 16
        %v699 = vshrl.u32 %v695, 16
        %v700 = vshll.u32 %v696, 16
        %v701 = vshrl.u32 %v696, 16
        %vm702 = vc.u32 %v694, %v698
        %v703 = vsel %vm702, 1, 0
        %v704 = vadd.s32 %v694, %v698
        %v705 = vadd.s32 %v697, %v703
        %vm706 = vc.u32 %v704, %v700
        %v707 = vsel %vm706, 1, 0
        %v708 = vadd.s32 %v704, %v700
        %v709 = vadd.s32 %v705, %v707
        %v710 = vadd.s32 %v709, %v699
        %v711 = vadd.s32 %v710, %v701
        %v712 = vmul.u32 %v667, %v658
        %v713 = vadd.s32 %v689, %v708
        %vm714 = vc.u32 %v689, %v708
        %v715 = vadd.s32 %v711, 1
        %v716 = vsel %vm714, %v715, %v711
        %v717 = vadd.s32 %v712, %v716
        %v718 = vadd.s32 %v717, 536870912
        %v719 = vshrl.u32 %v718, 30
        %v720 = vshll.u32 %v719, 30
        %v721 = vsub.s32 %v717, %v720
        %vm722 = vcmp.lt.s32.totalorder %v721, 0
        %v723 = vsub.s32 0, %v721
        %v724 = vsel %vm722, %v723, %v721
        %v725 = vclz %v724
        %v726 = vsub.s32 %v725, 2
        %vm727 = vcmp.gt.s32.totalorder 0, %v726
        %v728 = vsel %vm727, 0, %v726
        %v729 = vsub.s32 32, %v728
        %v730 = vshll.u32 %v721, %v728
        %v731 = vshrl.u32 %v713, %v729
        %v732 = vor.u32 %v730, %v731
        %v733 = vsub.s32 4294967266, %v728
        %v734 = vadd.s32 %v733, 127
        %v735 = vshll.u32 %v734, 23
        %v736 = vor.u32 4788187, %v735
        %v737 = vand.u32 2147483647, %v736
        %v739 = vcvt.s32.f32 %v732
        %v740 = vmul.f32 %v739, %v737
        %v741 = vxor.u32 %v740, 2147483648
        %v742 = vsel %vm621, %v741, %v740
        %v743 = vsub.s32 4, %v719
        %v744 = vsel %vm621, %v743, %v719
        %v745 = vsel %vm620, %v616, %v742
        %v746 = vsel %vm620, 0, %v744
        %v747 = vmul.f32 %v745, %v745
        %v748 = vmul.f32 %v747, -0.001358992
        %v749 = vadd.f32 %v748, 0.041655596
        %v750 = vmul.f32 %v747, %v749
        %v751 = vadd.f32 %v750, -0.4999988
        %v752 = vmul.f32 %v747, %v751
        %v753 = vadd.f32 1.0, %v752
        %v754 = vmul.f32 %v745, %v745
        %v755 = vmul.f32 %v754, -0.00019511016
        %v756 = vadd.f32 %v755, 0.008332121
        %v757 = vmul.f32 %v754, %v756
        %v758 = vadd.f32 %v757, -0.16666654
        %v759 = vmul.f32 %v754, %v758
        %v760 = vadd.f32 %v759, 1.0
        %v761 = vmul.f32 %v760, %v745
        %vm762 = vweird.f32 %v616
        %v763 = vadd.s32 %v746, 3
        %v764 = vand.u32 %v763, 3
        %vm765 = vcmp.lt.s32.totalorder %v764, 2
        %vm766 = vcmp.eq.s32.totalorder %v764, 0
        %v767 = vxor.u32 %v761, 2147483648
        %v768 = vsel %vm766, %v753, %v767
        %vm769 = vcmp.eq.s32.totalorder %v764, 2
        %v770 = vxor.u32 %v753, 2147483648
        %v771 = vsel %vm769, %v770, %v761
        %v772 = vsel %vm765, %v768, %v771
        %v773 = vsel %vm762, nan, %v772
        %v774 = vand.u32 2147483647, %v617
        %vm775 = vcmp.le.f32.partialorder %v774, 0.7853982
        %vm776 = vcmp.lt.s32.totalorder %v617, 0
        %v777 = vand.u32 %v617, 2139095040
        %v778 = vshrl.u32 %v777, 23
        %v779 = vsub.s32 %v778, 127
        %v780 = vand.u32 2147483647, %v617
        %v781 = vand.u32 %v780, 8388607
        %v782 = vor.u32 %v781, 8388608
        %v783 = vsub.s32 0, %v782
        %v784 = vadd.s32 %v779, 1
        %vm785 = vcmp.gt.s32.totalorder %v784, 0
        %v786 = vsel %vm785, %v784, 0
        %v787 = vshrl.u32 %v786, 5
        %v788 = vand.u32 %v786, 31
        %v789 = vsub.s32 32, %v788
        %v790 = vshrl.u32 683565275, %v789
        %v791 = vshll.u32 683565275, %v788
        %v792 = vshrl.u32 2475754826, %v789
        %v793 = vor.u32 %v791, %v792
        %v794 = vshll.u32 2475754826, %v788
        %v795 = vshrl.u32 2131351028, %v789
        %v796 = vor.u32 %v794, %v795
        %v797 = vshll.u32 2131351028, %v788
        %v798 = vshrl.u32 2102212464, %v789
        %v799 = vor.u32 %v797, %v798
        %v800 = vshll.u32 2102212464, %v788
        %v801 = vshrl.u32 920167782, %v789
        %v802 = vor.u32 %v800, %v801
        %v803 = vshll.u32 920167782, %v788
        %v804 = vshrl.u32 1326507024, %v789
        %v805 = vor.u32 %v803, %v804
        %vm806 = vcmp.lt.s32.totalorder %v787, 1
        %vm807 = vcmp.lt.s32.totalorder %v787, 2
        %vm808 = vcmp.lt.s32.totalorder %v787, 3
        %vm809 = vcmp.lt.s32.totalorder %v787, 4
        %v810 = vsel %vm806, %v790, %v793
        %v811 = vsel %vm809, %v799, 2102212464
        %v812 = vsel %vm808, %v796, %v811
        %v813 = vsel %vm807, %v810, %v812
        %v814 = vsel %vm806, %v793, %v796
        %v815 = vsel %vm809, %v802, 920167782
        %v816 = vsel %vm808, %v799, %v815
        %v817 = vsel %vm807, %v814, %v816
        %v818 = vsel %vm806, %v796, %v799
        %v819 = vsel %vm809, %v805, 1326507024
        %v820 = vsel %vm808, %v802, %v819
        %v821 = vsel %vm807, %v818, %v820
        %v822 = vshll.u32 %v782, 8
        %v823 = vand.u32 %v822, 65535
        %v824 = vshrl.u32 %v822, 16
        %v825 = vand.u32 %v821, 65535
        %v826 = vshrl.u32 %v821, 16
        %v827 = vmul.u32 %v823, %v825
        %v828 = vmul.u32 %v823, %v826
        %v829 = vmul.u32 %v824, %v825
        %v830 = vmul.u32 %v824, %v826
        %v831 = vshll.u32 %v828, 16
        %v832 = vshrl.u32 %v828, 16
        %v833 = vshll.u32 %v829, 16
        %v834 = vshrl.u32 %v829, 16
        %vm835 = vc.u32 %v827, %v831
        %v836 = vsel %vm835, 1, 0
        %v837 = vadd.s32 %v827, %v831
        %v838 = vadd.s32 %v830, %v836
        %vm839 = vc.u32 %v837, %v833
        %v840 = vsel %vm839, 1, 0
        %v841 = vadd.s32 %v837, %v833
        %v842 = vadd.s32 %v838, %v840
        %v843 = vadd.s32 %v842, %v832
        %v844 = vadd.s32 %v843, %v834
        %v845 = vand.u32 %v822, 65535
        %v846 = vshrl.u32 %v822, 16
        %v847 = vand.u32 %v817, 65535
        %v848 = vshrl.u32 %v817, 16
        %v849 = vmul.u32 %v845, %v847
        %v850 = vmul.u32 %v845, %v848
        %v851 = vmul.u32 %v846, %v847
        %v852 = vmul.u32 %v846, %v848
        %v853 = vshll.u32 %v850, 16
        %v854 = vshrl.u32 %v850, 16
        %v855 = vshll.u32 %v851, 16
        %v856 = vshrl.u32 %v851, 16
        %vm857 = vc.u32 %v849, %v853
        %v858 = vsel %vm857, 1, 0
        %v859 = vadd.s32 %v849, %v853
        %v860 = vadd.s32 %v852, %v858
        %vm861 = vc.u32 %v859, %v855
        %v862 = vsel %vm861, 1, 0
        %v863 = vadd.s32 %v859, %v855
        %v864 = vadd.s32 %v860, %v862
        %v865 = vadd.s32 %v864, %v854
        %v866 = vadd.s32 %v865, %v856
        %v867 = vmul.u32 %v822, %v813
        %v868 = vadd.s32 %v844, %v863
        %vm869 = vc.u32 %v844, %v863
        %v870 = vadd.s32 %v866, 1
        %v871 = vsel %vm869, %v870, %v866
        %v872 = vadd.s32 %v867, %v871
        %v873 = vadd.s32 %v872, 536870912
        %v874 = vshrl.u32 %v873, 30
        %v875 = vshll.u32 %v874, 30
        %v876 = vsub.s32 %v872, %v875
        %vm877 = vcmp.lt.s32.totalorder %v876, 0
        %v878 = vsub.s32 0, %v876
        %v879 = vsel %vm877, %v878, %v876
        %v880 = vclz %v879
        %v881 = vsub.s32 %v880, 2
        %vm882 = vcmp.gt.s32.totalorder 0, %v881
        %v883 = vsel %vm882, 0, %v881
        %v884 = vsub.s32 32, %v883
        %v885 = vshll.u32 %v876, %v883
        %v886 = vshrl.u32 %v868, %v884
        %v887 = vor.u32 %v885, %v886
        %v888 = vsub.s32 4294967266, %v883
        %v889 = vadd.s32 %v888, 127
        %v890 = vshll.u32 %v889, 23
        %v891 = vor.u32 4788187, %v890
        %v892 = vand.u32 2147483647, %v891
        %v894 = vcvt.s32.f32 %v887
        %v895 = vmul.f32 %v894, %v892
        %v896 = vxor.u32 %v895, 2147483648
        %v897 = vsel %vm776, %v896, %v895
        %v898 = vsub.s32 4, %v874
        %v899 = vsel %vm776, %v898, %v874
        %v900 = vsel %vm775, %v617, %v897
        %v901 = vsel %vm775, 0, %v899
        %v902 = vmul.f32 %v900, %v900
        %v903 = vmul.f32 %v902, -0.001358992
        %v904 = vadd.f32 %v903, 0.041655596
        %v905 = vmul.f32 %v902, %v904
        %v906 = vadd.f32 %v905, -0.4999988
        %v907 = vmul.f32 %v902, %v906
        %v908 = vadd.f32 1.0, %v907
        %v909 = vmul.f32 %v900, %v900
        %v910 = vmul.f32 %v909, -0.00019511016
        %v911 = vadd.f32 %v910, 0.008332121
        %v912 = vmul.f32 %v909, %v911
        %v913 = vadd.f32 %v912, -0.16666654
        %v914 = vmul.f32 %v909, %v913
        %v915 = vadd.f32 %v914, 1.0
        %v916 = vmul.f32 %v915, %v900
        %vm917 = vweird.f32 %v617
        %v918 = vadd.s32 %v901, 3
        %v919 = vand.u32 %v918, 3
        %vm920 = vcmp.lt.s32.totalorder %v919, 2
        %vm921 = vcmp.eq.s32.totalorder %v919, 0
        %v922 = vxor.u32 %v916, 2147483648
        %v923 = vsel %vm921, %v908, %v922
        %vm924 = vcmp.eq.s32.totalorder %v919, 2
        %v925 = vxor.u32 %v908, 2147483648
        %v926 = vsel %vm924, %v925, %v916
        %v927 = vsel %vm920, %v923, %v926
        %v928 = vsel %vm917, nan, %v927
        %v929 = vand.u32 2147483647, %v618
        %vm930 = vcmp.le.f32.partialorder %v929, 0.7853982
        %vm931 = vcmp.lt.s32.totalorder %v618, 0
        %v932 = vand.u32 %v618, 2139095040
        %v933 = vshrl.u32 %v932, 23
        %v934 = vsub.s32 %v933, 127
        %v935 = vand.u32 2147483647, %v618
        %v936 = vand.u32 %v935, 8388607
        %v937 = vor.u32 %v936, 8388608
        %v938 = vsub.s32 0, %v937
        %v939 = vadd.s32 %v934, 1
        %vm940 = vcmp.gt.s32.totalorder %v939, 0
        %v941 = vsel %vm940, %v939, 0
        %v942 = vshrl.u32 %v941, 5
        %v943 = vand.u32 %v941, 31
        %v944 = vsub.s32 32, %v943
        %v945 = vshrl.u32 683565275, %v944
        %v946 = vshll.u32 683565275, %v943
        %v947 = vshrl.u32 2475754826, %v944
        %v948 = vor.u32 %v946, %v947
        %v949 = vshll.u32 2475754826, %v943
        %v950 = vshrl.u32 2131351028, %v944
        %v951 = vor.u32 %v949, %v950
        %v952 = vshll.u32 2131351028, %v943
        %v953 = vshrl.u32 2102212464, %v944
        %v954 = vor.u32 %v952, %v953
        %v955 = vshll.u32 2102212464, %v943
        %v956 = vshrl.u32 920167782, %v944
        %v957 = vor.u32 %v955, %v956
        %v958 = vshll.u32 920167782, %v943
        %v959 = vshrl.u32 1326507024, %v944
        %v960 = vor.u32 %v958, %v959
        %vm961 = vcmp.lt.s32.totalorder %v942, 1
        %vm962 = vcmp.lt.s32.totalorder %v942, 2
        %vm963 = vcmp.lt.s32.totalorder %v942, 3
        %vm964 = vcmp.lt.s32.totalorder %v942, 4
        %v965 = vsel %vm961, %v945, %v948
        %v966 = vsel %vm964, %v954, 2102212464
        %v967 = vsel %vm963, %v951, %v966
        %v968 = vsel %vm962, %v965, %v967
        %v969 = vsel %vm961, %v948, %v951
        %v970 = vsel %vm964, %v957, 920167782
        %v971 = vsel %vm963, %v954, %v970
        %v972 = vsel %vm962, %v969, %v971
        %v973 = vsel %vm961, %v951, %v954
        %v974 = vsel %vm964, %v960, 1326507024
        %v975 = vsel %vm963, %v957, %v974
        %v976 = vsel %vm962, %v973, %v975
        %v977 = vshll.u32 %v937, 8
        %v978 = vand.u32 %v977, 65535
        %v979 = vshrl.u32 %v977, 16
        %v980 = vand.u32 %v976, 65535
        %v981 = vshrl.u32 %v976, 16
        %v982 = vmul.u32 %v978, %v980
        %v983 = vmul.u32 %v978, %v981
        %v984 = vmul.u32 %v979, %v980
        %v985 = vmul.u32 %v979, %v981
        %v986 = vshll.u32 %v983, 16
        %v987 = vshrl.u32 %v983, 16
        %v988 = vshll.u32 %v984, 16
        %v989 = vshrl.u32 %v984, 16
        %vm990 = vc.u32 %v982, %v986
        %v991 = vsel %vm990, 1, 0
        %v992 = vadd.s32 %v982, %v986
        %v993 = vadd.s32 %v985, %v991
        %vm994 = vc.u32 %v992, %v988
        %v995 = vsel %vm994, 1, 0
        %v996 = vadd.s32 %v992, %v988
        %v997 = vadd.s32 %v993, %v995
        %v998 = vadd.s32 %v997, %v987
        %v999 = vadd.s32 %v998, %v989
        %v1000 = vand.u32 %v977, 65535
        %v1001 = vshrl.u32 %v977, 16
        %v1002 = vand.u32 %v972, 65535
        %v1003 = vshrl.u32 %v972, 16
        %v1004 = vmul.u32 %v1000, %v1002
        %v1005 = vmul.u32 %v1000, %v1003
        %v1006 = vmul.u32 %v1001, %v1002
        %v1007 = vmul.u32 %v1001, %v1003
        %v1008 = vshll.u32 %v1005, 16
        %v1009 = vshrl.u32 %v1005, 16
        %v1010 = vshll.u32 %v1006, 16
        %v1011 = vshrl.u32 %v1006, 16
        %vm1012 = vc.u32 %v1004, %v1008
        %v1013 = vsel %vm1012, 1, 0
        %v1014 = vadd.s32 %v1004, %v1008
        %v1015 = vadd.s32 %v1007, %v1013
        %vm1016 = vc.u32 %v1014, %v1010
        %v1017 = vsel %vm1016, 1, 0
        %v1018 = vadd.s32 %v1014, %v1010
        %v1019 = vadd.s32 %v1015, %v1017
        %v1020 = vadd.s32 %v1019, %v1009
        %v1021 = vadd.s32 %v1020, %v1011
        %v1022 = vmul.u32 %v977, %v968
        %v1023 = vadd.s32 %v999, %v1018
        %vm1024 = vc.u32 %v999, %v1018
        %v1025 = vadd.s32 %v1021, 1
        %v1026 = vsel %vm1024, %v1025, %v1021
        %v1027 = vadd.s32 %v1022, %v1026
        %v1028 = vadd.s32 %v1027, 536870912
        %v1029 = vshrl.u32 %v1028, 30
        %v1030 = vshll.u32 %v1029, 30
        %v1031 = vsub.s32 %v1027, %v1030
        %vm1032 = vcmp.lt.s32.totalorder %v1031, 0
        %v1033 = vsub.s32 0, %v1031
        %v1034 = vsel %vm1032, %v1033, %v1031
        %v1035 = vclz %v1034
        %v1036 = vsub.s32 %v1035, 2
        %vm1037 = vcmp.gt.s32.totalorder 0, %v1036
        %v1038 = vsel %vm1037, 0, %v1036
        %v1039 = vsub.s32 32, %v1038
        %v1040 = vshll.u32 %v1031, %v1038
        %v1041 = vshrl.u32 %v1023, %v1039
        %v1042 = vor.u32 %v1040, %v1041
        %v1043 = vsub.s32 4294967266, %v1038
        %v1044 = vadd.s32 %v1043, 127
        %v1045 = vshll.u32 %v1044, 23
        %v1046 = vor.u32 4788187, %v1045
        %v1047 = vand.u32 2147483647, %v1046
        %v1049 = vcvt.s32.f32 %v1042
        %v1050 = vmul.f32 %v1049, %v1047
        %v1051 = vxor.u32 %v1050, 2147483648
        %v1052 = vsel %vm931, %v1051, %v1050
        %v1053 = vsub.s32 4, %v1029
        %v1054 = vsel %vm931, %v1053, %v1029
        %v1055 = vsel %vm930, %v618, %v1052
        %v1056 = vsel %vm930, 0, %v1054
        %v1057 = vmul.f32 %v1055, %v1055
        %v1058 = vmul.f32 %v1057, -0.001358992
        %v1059 = vadd.f32 %v1058, 0.041655596
        %v1060 = vmul.f32 %v1057, %v1059
        %v1061 = vadd.f32 %v1060, -0.4999988
        %v1062 = vmul.f32 %v1057, %v1061
        %v1063 = vadd.f32 1.0, %v1062
        %v1064 = vmul.f32 %v1055, %v1055
        %v1065 = vmul.f32 %v1064, -0.00019511016
        %v1066 = vadd.f32 %v1065, 0.008332121
        %v1067 = vmul.f32 %v1064, %v1066
        %v1068 = vadd.f32 %v1067, -0.16666654
        %v1069 = vmul.f32 %v1064, %v1068
        %v1070 = vadd.f32 %v1069, 1.0
        %v1071 = vmul.f32 %v1070, %v1055
        %vm1072 = vweird.f32 %v618
        %v1073 = vadd.s32 %v1056, 3
        %v1074 = vand.u32 %v1073, 3
        %vm1075 = vcmp.lt.s32.totalorder %v1074, 2
        %vm1076 = vcmp.eq.s32.totalorder %v1074, 0
        %v1077 = vxor.u32 %v1071, 2147483648
        %v1078 = vsel %vm1076, %v1063, %v1077
        %vm1079 = vcmp.eq.s32.totalorder %v1074, 2
        %v1080 = vxor.u32 %v1063, 2147483648
        %v1081 = vsel %vm1079, %v1080, %v1071
        %v1082 = vsel %vm1075, %v1078, %v1081
        %v1083 = vsel %vm1072, nan, %v1082
        %v1084 = vpack.c.bf16 %v773, %v773
        %v1085 = vpack.c.bf16 %v928, %v928
        %v1086 = vpack.c.bf16 %v1083, %v1083
        %v1087 = vld [vmem:[#allocation2] sm:$0xf]
        %v1088 = vld [vmem:[#allocation2 + $0x4] sm:$0xf]
        %v1089 = vld [vmem:[#allocation2 + $0x8] sm:$0xf]
        %v1090 = vld [vmem:[#allocation2 + $0xc] sm:$0xf]
        %v1091 = vld [vmem:[#allocation2 + $0x10] sm:$0xf]
        %v1092 = vld [vmem:[#allocation2 + $0x14] sm:$0xf]
        %v1093 = vld [vmem:[#allocation2 + $0x18] sm:$0xf]
        %v1094 = vld [vmem:[#allocation2 + $0x1c] sm:$0xf]
        %v1095 = vld [vmem:[#allocation2 + $0x20] sm:$0xf]
        %v1096 = vld [vmem:[#allocation2 + $0x24] sm:$0xf]
        %v1097 = vld [vmem:[#allocation2 + $0x28] sm:$0xf]
        %v1098 = vld [vmem:[#allocation2 + $0x2c] sm:$0xf]
        %v1099 = vld [vmem:[#allocation2 + $0x30] sm:$0xf]
        %v1100 = vld [vmem:[#allocation2 + $0x34] sm:$0xf]
        %v1101 = vld [vmem:[#allocation2 + $0x38] sm:$0xf]
        %v1102 = vld [vmem:[#allocation2 + $0x3c] sm:$0xf]
        %v1103 = vld [vmem:[#allocation2 + $0x40] sm:$0xf]
        %v1104 = vld [vmem:[#allocation2 + $0x44] sm:$0xf]
        %v1105 = vld [vmem:[#allocation2 + $0x48] sm:$0xf]
        %v1106 = vld [vmem:[#allocation2 + $0x4c] sm:$0xf]
        %v1107 = vld [vmem:[#allocation2 + $0x50] sm:$0xf]
        %v1108 = vld [vmem:[#allocation2 + $0x54] sm:$0xf]
        %v1109 = vld [vmem:[#allocation2 + $0x58] sm:$0xf]
        %v1110 = vld [vmem:[#allocation2 + $0x5c] sm:$0xf]
        %v1111 = vld [vmem:[#allocation2 + $0x60] sm:$0xf]
        %v1112 = vld [vmem:[#allocation2 + $0x64] sm:$0xf]
        %v1113 = vld [vmem:[#allocation2 + $0x68] sm:$0xf]
        %v1114 = vld [vmem:[#allocation2 + $0x6c] sm:$0xf]
        %v1115 = vld [vmem:[#allocation2 + $0x70] sm:$0xf]
        %v1116 = vld [vmem:[#allocation2 + $0x74] sm:$0xf]
        %v1117 = vld [vmem:[#allocation2 + $0x78] sm:$0xf]
        %v1118 = vld [vmem:[#allocation2 + $0x7c] sm:$0xf]
        %v1119 = vld [vmem:[#allocation2 + $0x80] sm:$0xf]
        %v1120 = vld [vmem:[#allocation2 + $0x84] sm:$0xf]
        %v1121 = vld [vmem:[#allocation2 + $0x88] sm:$0xf]
        %v1122 = vld [vmem:[#allocation2 + $0x8c] sm:$0xf]
        %v1123 = vld [vmem:[#allocation2 + $0x90] sm:$0xf]
        %v1124 = vld [vmem:[#allocation2 + $0x94] sm:$0xf]
        %v1125 = vld [vmem:[#allocation2 + $0x98] sm:$0xf]
        %v1126 = vld [vmem:[#allocation2 + $0x9c] sm:$0xf]
        %v1127 = vld [vmem:[#allocation2 + $0xa0] sm:$0xf]
        %v1128 = vld [vmem:[#allocation2 + $0xa4] sm:$0xf]
        %v1129 = vld [vmem:[#allocation2 + $0xa8] sm:$0xf]
        %v1130 = vld [vmem:[#allocation2 + $0xac] sm:$0xf]
        %v1131 = vld [vmem:[#allocation2 + $0xb0] sm:$0xf]
        %v1132 = vld [vmem:[#allocation2 + $0xb4] sm:$0xf]
        %v1133 = vld [vmem:[#allocation2 + $0xb8] sm:$0xf]
        %v1134 = vld [vmem:[#allocation2 + $0xbc] sm:$0xf]
        %v1135 = vld [vmem:[%s4] sm:$0x1]
        %v1137 = vperm.slane %v1135, 0
        %v1187 = vunpack.c.l.b16 %v1087
        %v1188 = vunpack.c.l.b16 %v1088
        %v1189 = vunpack.c.l.b16 %v1089
        %v1190 = vunpack.c.l.b16 %v1090
        %v1191 = vunpack.c.l.b16 %v1091
        %v1192 = vunpack.c.l.b16 %v1092
        %v1193 = vunpack.c.l.b16 %v1093
        %v1194 = vunpack.c.l.b16 %v1094
        %v1195 = vunpack.c.l.b16 %v1095
        %v1196 = vunpack.c.l.b16 %v1096
        %v1197 = vunpack.c.l.b16 %v1097
        %v1198 = vunpack.c.l.b16 %v1098
        %v1199 = vunpack.c.l.b16 %v1099
        %v1200 = vunpack.c.l.b16 %v1100
        %v1201 = vunpack.c.l.b16 %v1101
        %v1202 = vunpack.c.l.b16 %v1102
        %v1203 = vunpack.c.l.b16 %v1103
        %v1204 = vunpack.c.l.b16 %v1104
        %v1205 = vunpack.c.l.b16 %v1105
        %v1206 = vunpack.c.l.b16 %v1106
        %v1207 = vunpack.c.l.b16 %v1107
        %v1208 = vunpack.c.l.b16 %v1108
        %v1209 = vunpack.c.l.b16 %v1109
        %v1210 = vunpack.c.l.b16 %v1110
        %v1211 = vunpack.c.l.b16 %v1111
        %v1212 = vunpack.c.l.b16 %v1112
        %v1213 = vunpack.c.l.b16 %v1113
        %v1214 = vunpack.c.l.b16 %v1114
        %v1215 = vunpack.c.l.b16 %v1115
        %v1216 = vunpack.c.l.b16 %v1116
        %v1217 = vunpack.c.l.b16 %v1117
        %v1218 = vunpack.c.l.b16 %v1118
        %v1219 = vunpack.c.l.b16 %v1119
        %v1220 = vunpack.c.l.b16 %v1120
        %v1221 = vunpack.c.l.b16 %v1121
        %v1222 = vunpack.c.l.b16 %v1122
        %v1223 = vunpack.c.l.b16 %v1123
        %v1224 = vunpack.c.l.b16 %v1124
        %v1225 = vunpack.c.l.b16 %v1125
        %v1226 = vunpack.c.l.b16 %v1126
        %v1227 = vunpack.c.l.b16 %v1127
        %v1228 = vunpack.c.l.b16 %v1128
        %v1229 = vunpack.c.l.b16 %v1129
        %v1230 = vunpack.c.l.b16 %v1130
        %v1231 = vunpack.c.l.b16 %v1131
        %v1232 = vunpack.c.l.b16 %v1132
        %v1233 = vunpack.c.l.b16 %v1133
        %v1234 = vunpack.c.l.b16 %v1134
        %v1235 = vpack.c.b16 %v1188, %v1187
        %v1236 = vpack.c.b16 %v1190, %v1189
        %v1237 = vpack.c.b16 %v1192, %v1191
        %v1238 = vpack.c.b16 %v1194, %v1193
        %v1239 = vpack.c.b16 %v1196, %v1195
        %v1240 = vpack.c.b16 %v1198, %v1197
        %v1241 = vpack.c.b16 %v1200, %v1199
        %v1242 = vpack.c.b16 %v1202, %v1201
        %v1243 = vpack.c.b16 %v1204, %v1203
        %v1244 = vpack.c.b16 %v1206, %v1205
        %v1245 = vpack.c.b16 %v1208, %v1207
        %v1246 = vpack.c.b16 %v1210, %v1209
        %v1247 = vpack.c.b16 %v1212, %v1211
        %v1248 = vpack.c.b16 %v1214, %v1213
        %v1249 = vpack.c.b16 %v1216, %v1215
        %v1250 = vpack.c.b16 %v1218, %v1217
        %v1251 = vpack.c.b16 %v1220, %v1219
        %v1252 = vpack.c.b16 %v1222, %v1221
        %v1253 = vpack.c.b16 %v1224, %v1223
        %v1254 = vpack.c.b16 %v1226, %v1225
        %v1255 = vpack.c.b16 %v1228, %v1227
        %v1256 = vpack.c.b16 %v1230, %v1229
        %v1257 = vpack.c.b16 %v1232, %v1231
        %v1258 = vpack.c.b16 %v1234, %v1233
        %1283 = vmatpush.bf16.msra.mxu0 %v1242
        %1284 = vmatpush.bf16.msra.mxu0 %v1241
        %1285 = vmatpush.bf16.msra.mxu0 %v1240
        %1286 = vmatpush.bf16.msra.mxu0 %v1239
        %1287 = vmatpush.bf16.msra.mxu0 %v1238
        %1288 = vmatpush.bf16.msra.mxu0 %v1237
        %1289 = vmatpush.bf16.msra.mxu0 %v1236
        %1290 = vmatpush.bf16.msra.mxu0 %v1235
        %1291 = vmatmul.bf16.gmra.mxu0 %v1084
        %v1292 = vpop.f32.mrf.mxu0
        %v1293 = vadd.f32 %v1137, %v1292
        %v1294 = vpop.f32.mrf.mxu0
        %1295 = vdwg.mxu0
        %1296 = vmatpush.bf16.msra.mxu0 %v1250
        %1297 = vmatpush.bf16.msra.mxu0 %v1249
        %1298 = vmatpush.bf16.msra.mxu0 %v1248
        %1299 = vmatpush.bf16.msra.mxu0 %v1247
        %1300 = vmatpush.bf16.msra.mxu0 %v1246
        %1301 = vmatpush.bf16.msra.mxu0 %v1245
        %1302 = vmatpush.bf16.msra.mxu0 %v1244
        %1303 = vmatpush.bf16.msra.mxu0 %v1243
        %1304 = vmatmul.bf16.gmra.mxu0 %v1085
        %v1305 = vpop.f32.mrf.mxu0
        %v1306 = vadd.f32 %v1293, %v1305
        %v1307 = vpop.f32.mrf.mxu0
        %1308 = vdwg.mxu0
        %1309 = vmatpush.bf16.msra.mxu0 %v1258
        %1310 = vmatpush.bf16.msra.mxu0 %v1257
        %1311 = vmatpush.bf16.msra.mxu0 %v1256
        %1312 = vmatpush.bf16.msra.mxu0 %v1255
        %1313 = vmatpush.bf16.msra.mxu0 %v1254
        %1314 = vmatpush.bf16.msra.mxu0 %v1253
        %1315 = vmatpush.bf16.msra.mxu0 %v1252
        %1316 = vmatpush.bf16.msra.mxu0 %v1251
        %1317 = vmatmul.bf16.gmra.mxu0 %v1086
        %v1318 = vpop.f32.mrf.mxu0
        %v1319 = vadd.f32 %v1306, %v1318
        %v1320 = vpop.f32.mrf.mxu0
        %1321 = vdwg.mxu0
        %v1322 = vld [vmem:[%s5] sm:$0xff]
        %v1323 = vld [vmem:[%s5 + $0x8] sm:$0xff]
        %v1324 = vld [vmem:[%s6] sm:$0x7]
        %1326 = vset.pattern.permute.xlu0 0
        %1327 = vperm.xlu0 %1326, %v1322
        %v1328 = vpop.permute.xlu0 %1327
        %1331 = vset.pattern.permute.xlu0 0
        %1332 = vperm.xlu0 %1331, %v1323
        %v1333 = vpop.permute.xlu0 %1332
        %v1336 = vperm.slane %v1324, 0
        %v1337 = vperm.slane %v1324, 1
        %v1338 = vperm.slane %v1324, 2
        %v1342 = vmul.f32 %v1328, %v1336
        %v1343 = vmul.f32 %v1328, %v1337
        %v1344 = vmul.f32 %v1328, %v1338
        %v1345 = vmul.f32 %v1333, %v1336
        %v1346 = vmul.f32 %v1333, %v1337
        %v1347 = vmul.f32 %v1333, %v1338
        %v1348 = vld [vmem:[%s7] sm:$0x7]
        %v1350 = vperm.slane %v1348, 0
        %v1351 = vperm.slane %v1348, 1
        %v1352 = vperm.slane %v1348, 2
        %v1356 = vadd.f32 %v1342, %v1350
        %v1357 = vadd.f32 %v1343, %v1351
        %v1358 = vadd.f32 %v1344, %v1352
        %v1359 = vadd.f32 %v1345, %v1350
        %v1360 = vadd.f32 %v1346, %v1351
        %v1361 = vadd.f32 %v1347, %v1352
        %v1362 = vmul.f32 %v1356, 30.0
        %v1363 = vmul.f32 %v1357, 30.0
        %v1364 = vmul.f32 %v1358, 30.0
        %v1365 = vmul.f32 %v1359, 30.0
        %v1366 = vmul.f32 %v1360, 30.0
        %v1367 = vmul.f32 %v1361, 30.0
        %v1368 = vand.u32 2147483647, %v1362
        %vm1369 = vcmp.le.f32.partialorder %v1368, 0.7853982
        %vm1370 = vcmp.lt.s32.totalorder %v1362, 0
        %v1371 = vand.u32 %v1362, 2139095040
        %v1372 = vshrl.u32 %v1371, 23
        %v1373 = vsub.s32 %v1372, 127
        %v1374 = vand.u32 2147483647, %v1362
        %v1375 = vand.u32 %v1374, 8388607
        %v1376 = vor.u32 %v1375, 8388608
        %v1377 = vsub.s32 0, %v1376
        %v1378 = vadd.s32 %v1373, 1
        %vm1379 = vcmp.gt.s32.totalorder %v1378, 0
        %v1380 = vsel %vm1379, %v1378, 0
        %v1381 = vshrl.u32 %v1380, 5
        %v1382 = vand.u32 %v1380, 31
        %v1383 = vsub.s32 32, %v1382
        %v1384 = vshrl.u32 683565275, %v1383
        %v1385 = vshll.u32 683565275, %v1382
        %v1386 = vshrl.u32 2475754826, %v1383
        %v1387 = vor.u32 %v1385, %v1386
        %v1388 = vshll.u32 2475754826, %v1382
        %v1389 = vshrl.u32 2131351028, %v1383
        %v1390 = vor.u32 %v1388, %v1389
        %v1391 = vshll.u32 2131351028, %v1382
        %v1392 = vshrl.u32 2102212464, %v1383
        %v1393 = vor.u32 %v1391, %v1392
        %v1394 = vshll.u32 2102212464, %v1382
        %v1395 = vshrl.u32 920167782, %v1383
        %v1396 = vor.u32 %v1394, %v1395
        %v1397 = vshll.u32 920167782, %v1382
        %v1398 = vshrl.u32 1326507024, %v1383
        %v1399 = vor.u32 %v1397, %v1398
        %vm1400 = vcmp.lt.s32.totalorder %v1381, 1
        %vm1401 = vcmp.lt.s32.totalorder %v1381, 2
        %vm1402 = vcmp.lt.s32.totalorder %v1381, 3
        %vm1403 = vcmp.lt.s32.totalorder %v1381, 4
        %v1404 = vsel %vm1400, %v1384, %v1387
        %v1405 = vsel %vm1403, %v1393, 2102212464
        %v1406 = vsel %vm1402, %v1390, %v1405
        %v1407 = vsel %vm1401, %v1404, %v1406
        %v1408 = vsel %vm1400, %v1387, %v1390
        %v1409 = vsel %vm1403, %v1396, 920167782
        %v1410 = vsel %vm1402, %v1393, %v1409
        %v1411 = vsel %vm1401, %v1408, %v1410
        %v1412 = vsel %vm1400, %v1390, %v1393
        %v1413 = vsel %vm1403, %v1399, 1326507024
        %v1414 = vsel %vm1402, %v1396, %v1413
        %v1415 = vsel %vm1401, %v1412, %v1414
        %v1416 = vshll.u32 %v1376, 8
        %v1417 = vand.u32 %v1416, 65535
        %v1418 = vshrl.u32 %v1416, 16
        %v1419 = vand.u32 %v1415, 65535
        %v1420 = vshrl.u32 %v1415, 16
        %v1421 = vmul.u32 %v1417, %v1419
        %v1422 = vmul.u32 %v1417, %v1420
        %v1423 = vmul.u32 %v1418, %v1419
        %v1424 = vmul.u32 %v1418, %v1420
        %v1425 = vshll.u32 %v1422, 16
        %v1426 = vshrl.u32 %v1422, 16
        %v1427 = vshll.u32 %v1423, 16
        %v1428 = vshrl.u32 %v1423, 16
        %vm1429 = vc.u32 %v1421, %v1425
        %v1430 = vsel %vm1429, 1, 0
        %v1431 = vadd.s32 %v1421, %v1425
        %v1432 = vadd.s32 %v1424, %v1430
        %vm1433 = vc.u32 %v1431, %v1427
        %v1434 = vsel %vm1433, 1, 0
        %v1435 = vadd.s32 %v1431, %v1427
        %v1436 = vadd.s32 %v1432, %v1434
        %v1437 = vadd.s32 %v1436, %v1426
        %v1438 = vadd.s32 %v1437, %v1428
        %v1439 = vand.u32 %v1416, 65535
        %v1440 = vshrl.u32 %v1416, 16
        %v1441 = vand.u32 %v1411, 65535
        %v1442 = vshrl.u32 %v1411, 16
        %v1443 = vmul.u32 %v1439, %v1441
        %v1444 = vmul.u32 %v1439, %v1442
        %v1445 = vmul.u32 %v1440, %v1441
        %v1446 = vmul.u32 %v1440, %v1442
        %v1447 = vshll.u32 %v1444, 16
        %v1448 = vshrl.u32 %v1444, 16
        %v1449 = vshll.u32 %v1445, 16
        %v1450 = vshrl.u32 %v1445, 16
        %vm1451 = vc.u32 %v1443, %v1447
        %v1452 = vsel %vm1451, 1, 0
        %v1453 = vadd.s32 %v1443, %v1447
        %v1454 = vadd.s32 %v1446, %v1452
        %vm1455 = vc.u32 %v1453, %v1449
        %v1456 = vsel %vm1455, 1, 0
        %v1457 = vadd.s32 %v1453, %v1449
        %v1458 = vadd.s32 %v1454, %v1456
        %v1459 = vadd.s32 %v1458, %v1448
        %v1460 = vadd.s32 %v1459, %v1450
        %v1461 = vmul.u32 %v1416, %v1407
        %v1462 = vadd.s32 %v1438, %v1457
        %vm1463 = vc.u32 %v1438, %v1457
        %v1464 = vadd.s32 %v1460, 1
        %v1465 = vsel %vm1463, %v1464, %v1460
        %v1466 = vadd.s32 %v1461, %v1465
        %v1467 = vadd.s32 %v1466, 536870912
        %v1468 = vshrl.u32 %v1467, 30
        %v1469 = vshll.u32 %v1468, 30
        %v1470 = vsub.s32 %v1466, %v1469
        %vm1471 = vcmp.lt.s32.totalorder %v1470, 0
        %v1472 = vsub.s32 0, %v1470
        %v1473 = vsel %vm1471, %v1472, %v1470
        %v1474 = vclz %v1473
        %v1475 = vsub.s32 %v1474, 2
        %vm1476 = vcmp.gt.s32.totalorder 0, %v1475
        %v1477 = vsel %vm1476, 0, %v1475
        %v1478 = vsub.s32 32, %v1477
        %v1479 = vshll.u32 %v1470, %v1477
        %v1480 = vshrl.u32 %v1462, %v1478
        %v1481 = vor.u32 %v1479, %v1480
        %v1482 = vsub.s32 4294967266, %v1477
        %v1483 = vadd.s32 %v1482, 127
        %v1484 = vshll.u32 %v1483, 23
        %v1485 = vor.u32 4788187, %v1484
        %v1486 = vand.u32 2147483647, %v1485
        %v1488 = vcvt.s32.f32 %v1481
        %v1489 = vmul.f32 %v1488, %v1486
        %v1490 = vxor.u32 %v1489, 2147483648
        %v1491 = vsel %vm1370, %v1490, %v1489
        %v1492 = vsub.s32 4, %v1468
        %v1493 = vsel %vm1370, %v1492, %v1468
        %v1494 = vsel %vm1369, %v1362, %v1491
        %v1495 = vsel %vm1369, 0, %v1493
        %v1496 = vmul.f32 %v1494, %v1494
        %v1497 = vmul.f32 %v1496, -0.001358992
        %v1498 = vadd.f32 %v1497, 0.041655596
        %v1499 = vmul.f32 %v1496, %v1498
        %v1500 = vadd.f32 %v1499, -0.4999988
        %v1501 = vmul.f32 %v1496, %v1500
        %v1502 = vadd.f32 1.0, %v1501
        %v1503 = vmul.f32 %v1494, %v1494
        %v1504 = vmul.f32 %v1503, -0.00019511016
        %v1505 = vadd.f32 %v1504, 0.008332121
        %v1506 = vmul.f32 %v1503, %v1505
        %v1507 = vadd.f32 %v1506, -0.16666654
        %v1508 = vmul.f32 %v1503, %v1507
        %v1509 = vadd.f32 %v1508, 1.0
        %v1510 = vmul.f32 %v1509, %v1494
        %vm1511 = vweird.f32 %v1362
        %v1512 = vadd.s32 %v1495, 3
        %v1513 = vand.u32 %v1512, 3
        %vm1514 = vcmp.lt.s32.totalorder %v1513, 2
        %vm1515 = vcmp.eq.s32.totalorder %v1513, 0
        %v1516 = vxor.u32 %v1510, 2147483648
        %v1517 = vsel %vm1515, %v1502, %v1516
        %vm1518 = vcmp.eq.s32.totalorder %v1513, 2
        %v1519 = vxor.u32 %v1502, 2147483648
        %v1520 = vsel %vm1518, %v1519, %v1510
        %v1521 = vsel %vm1514, %v1517, %v1520
        %v1522 = vsel %vm1511, nan, %v1521
        %v1523 = vand.u32 2147483647, %v1363
        %vm1524 = vcmp.le.f32.partialorder %v1523, 0.7853982
        %vm1525 = vcmp.lt.s32.totalorder %v1363, 0
        %v1526 = vand.u32 %v1363, 2139095040
        %v1527 = vshrl.u32 %v1526, 23
        %v1528 = vsub.s32 %v1527, 127
        %v1529 = vand.u32 2147483647, %v1363
        %v1530 = vand.u32 %v1529, 8388607
        %v1531 = vor.u32 %v1530, 8388608
        %v1532 = vsub.s32 0, %v1531
        %v1533 = vadd.s32 %v1528, 1
        %vm1534 = vcmp.gt.s32.totalorder %v1533, 0
        %v1535 = vsel %vm1534, %v1533, 0
        %v1536 = vshrl.u32 %v1535, 5
        %v1537 = vand.u32 %v1535, 31
        %v1538 = vsub.s32 32, %v1537
        %v1539 = vshrl.u32 683565275, %v1538
        %v1540 = vshll.u32 683565275, %v1537
        %v1541 = vshrl.u32 2475754826, %v1538
        %v1542 = vor.u32 %v1540, %v1541
        %v1543 = vshll.u32 2475754826, %v1537
        %v1544 = vshrl.u32 2131351028, %v1538
        %v1545 = vor.u32 %v1543, %v1544
        %v1546 = vshll.u32 2131351028, %v1537
        %v1547 = vshrl.u32 2102212464, %v1538
        %v1548 = vor.u32 %v1546, %v1547
        %v1549 = vshll.u32 2102212464, %v1537
        %v1550 = vshrl.u32 920167782, %v1538
        %v1551 = vor.u32 %v1549, %v1550
        %v1552 = vshll.u32 920167782, %v1537
        %v1553 = vshrl.u32 1326507024, %v1538
        %v1554 = vor.u32 %v1552, %v1553
        %vm1555 = vcmp.lt.s32.totalorder %v1536, 1
        %vm1556 = vcmp.lt.s32.totalorder %v1536, 2
        %vm1557 = vcmp.lt.s32.totalorder %v1536, 3
        %vm1558 = vcmp.lt.s32.totalorder %v1536, 4
        %v1559 = vsel %vm1555, %v1539, %v1542
        %v1560 = vsel %vm1558, %v1548, 2102212464
        %v1561 = vsel %vm1557, %v1545, %v1560
        %v1562 = vsel %vm1556, %v1559, %v1561
        %v1563 = vsel %vm1555, %v1542, %v1545
        %v1564 = vsel %vm1558, %v1551, 920167782
        %v1565 = vsel %vm1557, %v1548, %v1564
        %v1566 = vsel %vm1556, %v1563, %v1565
        %v1567 = vsel %vm1555, %v1545, %v1548
        %v1568 = vsel %vm1558, %v1554, 1326507024
        %v1569 = vsel %vm1557, %v1551, %v1568
        %v1570 = vsel %vm1556, %v1567, %v1569
        %v1571 = vshll.u32 %v1531, 8
        %v1572 = vand.u32 %v1571, 65535
        %v1573 = vshrl.u32 %v1571, 16
        %v1574 = vand.u32 %v1570, 65535
        %v1575 = vshrl.u32 %v1570, 16
        %v1576 = vmul.u32 %v1572, %v1574
        %v1577 = vmul.u32 %v1572, %v1575
        %v1578 = vmul.u32 %v1573, %v1574
        %v1579 = vmul.u32 %v1573, %v1575
        %v1580 = vshll.u32 %v1577, 16
        %v1581 = vshrl.u32 %v1577, 16
        %v1582 = vshll.u32 %v1578, 16
        %v1583 = vshrl.u32 %v1578, 16
        %vm1584 = vc.u32 %v1576, %v1580
        %v1585 = vsel %vm1584, 1, 0
        %v1586 = vadd.s32 %v1576, %v1580
        %v1587 = vadd.s32 %v1579, %v1585
        %vm1588 = vc.u32 %v1586, %v1582
        %v1589 = vsel %vm1588, 1, 0
        %v1590 = vadd.s32 %v1586, %v1582
        %v1591 = vadd.s32 %v1587, %v1589
        %v1592 = vadd.s32 %v1591, %v1581
        %v1593 = vadd.s32 %v1592, %v1583
        %v1594 = vand.u32 %v1571, 65535
        %v1595 = vshrl.u32 %v1571, 16
        %v1596 = vand.u32 %v1566, 65535
        %v1597 = vshrl.u32 %v1566, 16
        %v1598 = vmul.u32 %v1594, %v1596
        %v1599 = vmul.u32 %v1594, %v1597
        %v1600 = vmul.u32 %v1595, %v1596
        %v1601 = vmul.u32 %v1595, %v1597
        %v1602 = vshll.u32 %v1599, 16
        %v1603 = vshrl.u32 %v1599, 16
        %v1604 = vshll.u32 %v1600, 16
        %v1605 = vshrl.u32 %v1600, 16
        %vm1606 = vc.u32 %v1598, %v1602
        %v1607 = vsel %vm1606, 1, 0
        %v1608 = vadd.s32 %v1598, %v1602
        %v1609 = vadd.s32 %v1601, %v1607
        %vm1610 = vc.u32 %v1608, %v1604
        %v1611 = vsel %vm1610, 1, 0
        %v1612 = vadd.s32 %v1608, %v1604
        %v1613 = vadd.s32 %v1609, %v1611
        %v1614 = vadd.s32 %v1613, %v1603
        %v1615 = vadd.s32 %v1614, %v1605
        %v1616 = vmul.u32 %v1571, %v1562
        %v1617 = vadd.s32 %v1593, %v1612
        %vm1618 = vc.u32 %v1593, %v1612
        %v1619 = vadd.s32 %v1615, 1
        %v1620 = vsel %vm1618, %v1619, %v1615
        %v1621 = vadd.s32 %v1616, %v1620
        %v1622 = vadd.s32 %v1621, 536870912
        %v1623 = vshrl.u32 %v1622, 30
        %v1624 = vshll.u32 %v1623, 30
        %v1625 = vsub.s32 %v1621, %v1624
        %vm1626 = vcmp.lt.s32.totalorder %v1625, 0
        %v1627 = vsub.s32 0, %v1625
        %v1628 = vsel %vm1626, %v1627, %v1625
        %v1629 = vclz %v1628
        %v1630 = vsub.s32 %v1629, 2
        %vm1631 = vcmp.gt.s32.totalorder 0, %v1630
        %v1632 = vsel %vm1631, 0, %v1630
        %v1633 = vsub.s32 32, %v1632
        %v1634 = vshll.u32 %v1625, %v1632
        %v1635 = vshrl.u32 %v1617, %v1633
        %v1636 = vor.u32 %v1634, %v1635
        %v1637 = vsub.s32 4294967266, %v1632
        %v1638 = vadd.s32 %v1637, 127
        %v1639 = vshll.u32 %v1638, 23
        %v1640 = vor.u32 4788187, %v1639
        %v1641 = vand.u32 2147483647, %v1640
        %v1643 = vcvt.s32.f32 %v1636
        %v1644 = vmul.f32 %v1643, %v1641
        %v1645 = vxor.u32 %v1644, 2147483648
        %v1646 = vsel %vm1525, %v1645, %v1644
        %v1647 = vsub.s32 4, %v1623
        %v1648 = vsel %vm1525, %v1647, %v1623
        %v1649 = vsel %vm1524, %v1363, %v1646
        %v1650 = vsel %vm1524, 0, %v1648
        %v1651 = vmul.f32 %v1649, %v1649
        %v1652 = vmul.f32 %v1651, -0.001358992
        %v1653 = vadd.f32 %v1652, 0.041655596
        %v1654 = vmul.f32 %v1651, %v1653
        %v1655 = vadd.f32 %v1654, -0.4999988
        %v1656 = vmul.f32 %v1651, %v1655
        %v1657 = vadd.f32 1.0, %v1656
        %v1658 = vmul.f32 %v1649, %v1649
        %v1659 = vmul.f32 %v1658, -0.00019511016
        %v1660 = vadd.f32 %v1659, 0.008332121
        %v1661 = vmul.f32 %v1658, %v1660
        %v1662 = vadd.f32 %v1661, -0.16666654
        %v1663 = vmul.f32 %v1658, %v1662
        %v1664 = vadd.f32 %v1663, 1.0
        %v1665 = vmul.f32 %v1664, %v1649
        %vm1666 = vweird.f32 %v1363
        %v1667 = vadd.s32 %v1650, 3
        %v1668 = vand.u32 %v1667, 3
        %vm1669 = vcmp.lt.s32.totalorder %v1668, 2
        %vm1670 = vcmp.eq.s32.totalorder %v1668, 0
        %v1671 = vxor.u32 %v1665, 2147483648
        %v1672 = vsel %vm1670, %v1657, %v1671
        %vm1673 = vcmp.eq.s32.totalorder %v1668, 2
        %v1674 = vxor.u32 %v1657, 2147483648
        %v1675 = vsel %vm1673, %v1674, %v1665
        %v1676 = vsel %vm1669, %v1672, %v1675
        %v1677 = vsel %vm1666, nan, %v1676
        %v1678 = vand.u32 2147483647, %v1364
        %vm1679 = vcmp.le.f32.partialorder %v1678, 0.7853982
        %vm1680 = vcmp.lt.s32.totalorder %v1364, 0
        %v1681 = vand.u32 %v1364, 2139095040
        %v1682 = vshrl.u32 %v1681, 23
        %v1683 = vsub.s32 %v1682, 127
        %v1684 = vand.u32 2147483647, %v1364
        %v1685 = vand.u32 %v1684, 8388607
        %v1686 = vor.u32 %v1685, 8388608
        %v1687 = vsub.s32 0, %v1686
        %v1688 = vadd.s32 %v1683, 1
        %vm1689 = vcmp.gt.s32.totalorder %v1688, 0
        %v1690 = vsel %vm1689, %v1688, 0
        %v1691 = vshrl.u32 %v1690, 5
        %v1692 = vand.u32 %v1690, 31
        %v1693 = vsub.s32 32, %v1692
        %v1694 = vshrl.u32 683565275, %v1693
        %v1695 = vshll.u32 683565275, %v1692
        %v1696 = vshrl.u32 2475754826, %v1693
        %v1697 = vor.u32 %v1695, %v1696
        %v1698 = vshll.u32 2475754826, %v1692
        %v1699 = vshrl.u32 2131351028, %v1693
        %v1700 = vor.u32 %v1698, %v1699
        %v1701 = vshll.u32 2131351028, %v1692
        %v1702 = vshrl.u32 2102212464, %v1693
        %v1703 = vor.u32 %v1701, %v1702
        %v1704 = vshll.u32 2102212464, %v1692
        %v1705 = vshrl.u32 920167782, %v1693
        %v1706 = vor.u32 %v1704, %v1705
        %v1707 = vshll.u32 920167782, %v1692
        %v1708 = vshrl.u32 1326507024, %v1693
        %v1709 = vor.u32 %v1707, %v1708
        %vm1710 = vcmp.lt.s32.totalorder %v1691, 1
        %vm1711 = vcmp.lt.s32.totalorder %v1691, 2
        %vm1712 = vcmp.lt.s32.totalorder %v1691, 3
        %vm1713 = vcmp.lt.s32.totalorder %v1691, 4
        %v1714 = vsel %vm1710, %v1694, %v1697
        %v1715 = vsel %vm1713, %v1703, 2102212464
        %v1716 = vsel %vm1712, %v1700, %v1715
        %v1717 = vsel %vm1711, %v1714, %v1716
        %v1718 = vsel %vm1710, %v1697, %v1700
        %v1719 = vsel %vm1713, %v1706, 920167782
        %v1720 = vsel %vm1712, %v1703, %v1719
        %v1721 = vsel %vm1711, %v1718, %v1720
        %v1722 = vsel %vm1710, %v1700, %v1703
        %v1723 = vsel %vm1713, %v1709, 1326507024
        %v1724 = vsel %vm1712, %v1706, %v1723
        %v1725 = vsel %vm1711, %v1722, %v1724
        %v1726 = vshll.u32 %v1686, 8
        %v1727 = vand.u32 %v1726, 65535
        %v1728 = vshrl.u32 %v1726, 16
        %v1729 = vand.u32 %v1725, 65535
        %v1730 = vshrl.u32 %v1725, 16
        %v1731 = vmul.u32 %v1727, %v1729
        %v1732 = vmul.u32 %v1727, %v1730
        %v1733 = vmul.u32 %v1728, %v1729
        %v1734 = vmul.u32 %v1728, %v1730
        %v1735 = vshll.u32 %v1732, 16
        %v1736 = vshrl.u32 %v1732, 16
        %v1737 = vshll.u32 %v1733, 16
        %v1738 = vshrl.u32 %v1733, 16
        %vm1739 = vc.u32 %v1731, %v1735
        %v1740 = vsel %vm1739, 1, 0
        %v1741 = vadd.s32 %v1731, %v1735
        %v1742 = vadd.s32 %v1734, %v1740
        %vm1743 = vc.u32 %v1741, %v1737
        %v1744 = vsel %vm1743, 1, 0
        %v1745 = vadd.s32 %v1741, %v1737
        %v1746 = vadd.s32 %v1742, %v1744
        %v1747 = vadd.s32 %v1746, %v1736
        %v1748 = vadd.s32 %v1747, %v1738
        %v1749 = vand.u32 %v1726, 65535
        %v1750 = vshrl.u32 %v1726, 16
        %v1751 = vand.u32 %v1721, 65535
        %v1752 = vshrl.u32 %v1721, 16
        %v1753 = vmul.u32 %v1749, %v1751
        %v1754 = vmul.u32 %v1749, %v1752
        %v1755 = vmul.u32 %v1750, %v1751
        %v1756 = vmul.u32 %v1750, %v1752
        %v1757 = vshll.u32 %v1754, 16
        %v1758 = vshrl.u32 %v1754, 16
        %v1759 = vshll.u32 %v1755, 16
        %v1760 = vshrl.u32 %v1755, 16
        %vm1761 = vc.u32 %v1753, %v1757
        %v1762 = vsel %vm1761, 1, 0
        %v1763 = vadd.s32 %v1753, %v1757
        %v1764 = vadd.s32 %v1756, %v1762
        %vm1765 = vc.u32 %v1763, %v1759
        %v1766 = vsel %vm1765, 1, 0
        %v1767 = vadd.s32 %v1763, %v1759
        %v1768 = vadd.s32 %v1764, %v1766
        %v1769 = vadd.s32 %v1768, %v1758
        %v1770 = vadd.s32 %v1769, %v1760
        %v1771 = vmul.u32 %v1726, %v1717
        %v1772 = vadd.s32 %v1748, %v1767
        %vm1773 = vc.u32 %v1748, %v1767
        %v1774 = vadd.s32 %v1770, 1
        %v1775 = vsel %vm1773, %v1774, %v1770
        %v1776 = vadd.s32 %v1771, %v1775
        %v1777 = vadd.s32 %v1776, 536870912
        %v1778 = vshrl.u32 %v1777, 30
        %v1779 = vshll.u32 %v1778, 30
        %v1780 = vsub.s32 %v1776, %v1779
        %vm1781 = vcmp.lt.s32.totalorder %v1780, 0
        %v1782 = vsub.s32 0, %v1780
        %v1783 = vsel %vm1781, %v1782, %v1780
        %v1784 = vclz %v1783
        %v1785 = vsub.s32 %v1784, 2
        %vm1786 = vcmp.gt.s32.totalorder 0, %v1785
        %v1787 = vsel %vm1786, 0, %v1785
        %v1788 = vsub.s32 32, %v1787
        %v1789 = vshll.u32 %v1780, %v1787
        %v1790 = vshrl.u32 %v1772, %v1788
        %v1791 = vor.u32 %v1789, %v1790
        %v1792 = vsub.s32 4294967266, %v1787
        %v1793 = vadd.s32 %v1792, 127
        %v1794 = vshll.u32 %v1793, 23
        %v1795 = vor.u32 4788187, %v1794
        %v1796 = vand.u32 2147483647, %v1795
        %v1798 = vcvt.s32.f32 %v1791
        %v1799 = vmul.f32 %v1798, %v1796
        %v1800 = vxor.u32 %v1799, 2147483648
        %v1801 = vsel %vm1680, %v1800, %v1799
        %v1802 = vsub.s32 4, %v1778
        %v1803 = vsel %vm1680, %v1802, %v1778
        %v1804 = vsel %vm1679, %v1364, %v1801
        %v1805 = vsel %vm1679, 0, %v1803
        %v1806 = vmul.f32 %v1804, %v1804
        %v1807 = vmul.f32 %v1806, -0.001358992
        %v1808 = vadd.f32 %v1807, 0.041655596
        %v1809 = vmul.f32 %v1806, %v1808
        %v1810 = vadd.f32 %v1809, -0.4999988
        %v1811 = vmul.f32 %v1806, %v1810
        %v1812 = vadd.f32 1.0, %v1811
        %v1813 = vmul.f32 %v1804, %v1804
        %v1814 = vmul.f32 %v1813, -0.00019511016
        %v1815 = vadd.f32 %v1814, 0.008332121
        %v1816 = vmul.f32 %v1813, %v1815
        %v1817 = vadd.f32 %v1816, -0.16666654
        %v1818 = vmul.f32 %v1813, %v1817
        %v1819 = vadd.f32 %v1818, 1.0
        %v1820 = vmul.f32 %v1819, %v1804
        %vm1821 = vweird.f32 %v1364
        %v1822 = vadd.s32 %v1805, 3
        %v1823 = vand.u32 %v1822, 3
        %vm1824 = vcmp.lt.s32.totalorder %v1823, 2
        %vm1825 = vcmp.eq.s32.totalorder %v1823, 0
        %v1826 = vxor.u32 %v1820, 2147483648
        %v1827 = vsel %vm1825, %v1812, %v1826
        %vm1828 = vcmp.eq.s32.totalorder %v1823, 2
        %v1829 = vxor.u32 %v1812, 2147483648
        %v1830 = vsel %vm1828, %v1829, %v1820
        %v1831 = vsel %vm1824, %v1827, %v1830
        %v1832 = vsel %vm1821, nan, %v1831
        %v1833 = vand.u32 2147483647, %v1365
        %vm1834 = vcmp.le.f32.partialorder %v1833, 0.7853982
        %vm1835 = vcmp.lt.s32.totalorder %v1365, 0
        %v1836 = vand.u32 %v1365, 2139095040
        %v1837 = vshrl.u32 %v1836, 23
        %v1838 = vsub.s32 %v1837, 127
        %v1839 = vand.u32 2147483647, %v1365
        %v1840 = vand.u32 %v1839, 8388607
        %v1841 = vor.u32 %v1840, 8388608
        %v1842 = vsub.s32 0, %v1841
        %v1843 = vadd.s32 %v1838, 1
        %vm1844 = vcmp.gt.s32.totalorder %v1843, 0
        %v1845 = vsel %vm1844, %v1843, 0
        %v1846 = vshrl.u32 %v1845, 5
        %v1847 = vand.u32 %v1845, 31
        %v1848 = vsub.s32 32, %v1847
        %v1849 = vshrl.u32 683565275, %v1848
        %v1850 = vshll.u32 683565275, %v1847
        %v1851 = vshrl.u32 2475754826, %v1848
        %v1852 = vor.u32 %v1850, %v1851
        %v1853 = vshll.u32 2475754826, %v1847
        %v1854 = vshrl.u32 2131351028, %v1848
        %v1855 = vor.u32 %v1853, %v1854
        %v1856 = vshll.u32 2131351028, %v1847
        %v1857 = vshrl.u32 2102212464, %v1848
        %v1858 = vor.u32 %v1856, %v1857
        %v1859 = vshll.u32 2102212464, %v1847
        %v1860 = vshrl.u32 920167782, %v1848
        %v1861 = vor.u32 %v1859, %v1860
        %v1862 = vshll.u32 920167782, %v1847
        %v1863 = vshrl.u32 1326507024, %v1848
        %v1864 = vor.u32 %v1862, %v1863
        %vm1865 = vcmp.lt.s32.totalorder %v1846, 1
        %vm1866 = vcmp.lt.s32.totalorder %v1846, 2
        %vm1867 = vcmp.lt.s32.totalorder %v1846, 3
        %vm1868 = vcmp.lt.s32.totalorder %v1846, 4
        %v1869 = vsel %vm1865, %v1849, %v1852
        %v1870 = vsel %vm1868, %v1858, 2102212464
        %v1871 = vsel %vm1867, %v1855, %v1870
        %v1872 = vsel %vm1866, %v1869, %v1871
        %v1873 = vsel %vm1865, %v1852, %v1855
        %v1874 = vsel %vm1868, %v1861, 920167782
        %v1875 = vsel %vm1867, %v1858, %v1874
        %v1876 = vsel %vm1866, %v1873, %v1875
        %v1877 = vsel %vm1865, %v1855, %v1858
        %v1878 = vsel %vm1868, %v1864, 1326507024
        %v1879 = vsel %vm1867, %v1861, %v1878
        %v1880 = vsel %vm1866, %v1877, %v1879
        %v1881 = vshll.u32 %v1841, 8
        %v1882 = vand.u32 %v1881, 65535
        %v1883 = vshrl.u32 %v1881, 16
        %v1884 = vand.u32 %v1880, 65535
        %v1885 = vshrl.u32 %v1880, 16
        %v1886 = vmul.u32 %v1882, %v1884
        %v1887 = vmul.u32 %v1882, %v1885
        %v1888 = vmul.u32 %v1883, %v1884
        %v1889 = vmul.u32 %v1883, %v1885
        %v1890 = vshll.u32 %v1887, 16
        %v1891 = vshrl.u32 %v1887, 16
        %v1892 = vshll.u32 %v1888, 16
        %v1893 = vshrl.u32 %v1888, 16
        %vm1894 = vc.u32 %v1886, %v1890
        %v1895 = vsel %vm1894, 1, 0
        %v1896 = vadd.s32 %v1886, %v1890
        %v1897 = vadd.s32 %v1889, %v1895
        %vm1898 = vc.u32 %v1896, %v1892
        %v1899 = vsel %vm1898, 1, 0
        %v1900 = vadd.s32 %v1896, %v1892
        %v1901 = vadd.s32 %v1897, %v1899
        %v1902 = vadd.s32 %v1901, %v1891
        %v1903 = vadd.s32 %v1902, %v1893
        %v1904 = vand.u32 %v1881, 65535
        %v1905 = vshrl.u32 %v1881, 16
        %v1906 = vand.u32 %v1876, 65535
        %v1907 = vshrl.u32 %v1876, 16
        %v1908 = vmul.u32 %v1904, %v1906
        %v1909 = vmul.u32 %v1904, %v1907
        %v1910 = vmul.u32 %v1905, %v1906
        %v1911 = vmul.u32 %v1905, %v1907
        %v1912 = vshll.u32 %v1909, 16
        %v1913 = vshrl.u32 %v1909, 16
        %v1914 = vshll.u32 %v1910, 16
        %v1915 = vshrl.u32 %v1910, 16
        %vm1916 = vc.u32 %v1908, %v1912
        %v1917 = vsel %vm1916, 1, 0
        %v1918 = vadd.s32 %v1908, %v1912
        %v1919 = vadd.s32 %v1911, %v1917
        %vm1920 = vc.u32 %v1918, %v1914
        %v1921 = vsel %vm1920, 1, 0
        %v1922 = vadd.s32 %v1918, %v1914
        %v1923 = vadd.s32 %v1919, %v1921
        %v1924 = vadd.s32 %v1923, %v1913
        %v1925 = vadd.s32 %v1924, %v1915
        %v1926 = vmul.u32 %v1881, %v1872
        %v1927 = vadd.s32 %v1903, %v1922
        %vm1928 = vc.u32 %v1903, %v1922
        %v1929 = vadd.s32 %v1925, 1
        %v1930 = vsel %vm1928, %v1929, %v1925
        %v1931 = vadd.s32 %v1926, %v1930
        %v1932 = vadd.s32 %v1931, 536870912
        %v1933 = vshrl.u32 %v1932, 30
        %v1934 = vshll.u32 %v1933, 30
        %v1935 = vsub.s32 %v1931, %v1934
        %vm1936 = vcmp.lt.s32.totalorder %v1935, 0
        %v1937 = vsub.s32 0, %v1935
        %v1938 = vsel %vm1936, %v1937, %v1935
        %v1939 = vclz %v1938
        %v1940 = vsub.s32 %v1939, 2
        %vm1941 = vcmp.gt.s32.totalorder 0, %v1940
        %v1942 = vsel %vm1941, 0, %v1940
        %v1943 = vsub.s32 32, %v1942
        %v1944 = vshll.u32 %v1935, %v1942
        %v1945 = vshrl.u32 %v1927, %v1943
        %v1946 = vor.u32 %v1944, %v1945
        %v1947 = vsub.s32 4294967266, %v1942
        %v1948 = vadd.s32 %v1947, 127
        %v1949 = vshll.u32 %v1948, 23
        %v1950 = vor.u32 4788187, %v1949
        %v1951 = vand.u32 2147483647, %v1950
        %v1953 = vcvt.s32.f32 %v1946
        %v1954 = vmul.f32 %v1953, %v1951
        %v1955 = vxor.u32 %v1954, 2147483648
        %v1956 = vsel %vm1835, %v1955, %v1954
        %v1957 = vsub.s32 4, %v1933
        %v1958 = vsel %vm1835, %v1957, %v1933
        %v1959 = vsel %vm1834, %v1365, %v1956
        %v1960 = vsel %vm1834, 0, %v1958
        %v1961 = vmul.f32 %v1959, %v1959
        %v1962 = vmul.f32 %v1961, -0.001358992
        %v1963 = vadd.f32 %v1962, 0.041655596
        %v1964 = vmul.f32 %v1961, %v1963
        %v1965 = vadd.f32 %v1964, -0.4999988
        %v1966 = vmul.f32 %v1961, %v1965
        %v1967 = vadd.f32 1.0, %v1966
        %v1968 = vmul.f32 %v1959, %v1959
        %v1969 = vmul.f32 %v1968, -0.00019511016
        %v1970 = vadd.f32 %v1969, 0.008332121
        %v1971 = vmul.f32 %v1968, %v1970
        %v1972 = vadd.f32 %v1971, -0.16666654
        %v1973 = vmul.f32 %v1968, %v1972
        %v1974 = vadd.f32 %v1973, 1.0
        %v1975 = vmul.f32 %v1974, %v1959
        %vm1976 = vweird.f32 %v1365
        %v1977 = vadd.s32 %v1960, 3
        %v1978 = vand.u32 %v1977, 3
        %vm1979 = vcmp.lt.s32.totalorder %v1978, 2
        %vm1980 = vcmp.eq.s32.totalorder %v1978, 0
        %v1981 = vxor.u32 %v1975, 2147483648
        %v1982 = vsel %vm1980, %v1967, %v1981
        %vm1983 = vcmp.eq.s32.totalorder %v1978, 2
        %v1984 = vxor.u32 %v1967, 2147483648
        %v1985 = vsel %vm1983, %v1984, %v1975
        %v1986 = vsel %vm1979, %v1982, %v1985
        %v1987 = vsel %vm1976, nan, %v1986
        %v1988 = vand.u32 2147483647, %v1366
        %vm1989 = vcmp.le.f32.partialorder %v1988, 0.7853982
        %vm1990 = vcmp.lt.s32.totalorder %v1366, 0
        %v1991 = vand.u32 %v1366, 2139095040
        %v1992 = vshrl.u32 %v1991, 23
        %v1993 = vsub.s32 %v1992, 127
        %v1994 = vand.u32 2147483647, %v1366
        %v1995 = vand.u32 %v1994, 8388607
        %v1996 = vor.u32 %v1995, 8388608
        %v1997 = vsub.s32 0, %v1996
        %v1998 = vadd.s32 %v1993, 1
        %vm1999 = vcmp.gt.s32.totalorder %v1998, 0
        %v2000 = vsel %vm1999, %v1998, 0
        %v2001 = vshrl.u32 %v2000, 5
        %v2002 = vand.u32 %v2000, 31
        %v2003 = vsub.s32 32, %v2002
        %v2004 = vshrl.u32 683565275, %v2003
        %v2005 = vshll.u32 683565275, %v2002
        %v2006 = vshrl.u32 2475754826, %v2003
        %v2007 = vor.u32 %v2005, %v2006
        %v2008 = vshll.u32 2475754826, %v2002
        %v2009 = vshrl.u32 2131351028, %v2003
        %v2010 = vor.u32 %v2008, %v2009
        %v2011 = vshll.u32 2131351028, %v2002
        %v2012 = vshrl.u32 2102212464, %v2003
        %v2013 = vor.u32 %v2011, %v2012
        %v2014 = vshll.u32 2102212464, %v2002
        %v2015 = vshrl.u32 920167782, %v2003
        %v2016 = vor.u32 %v2014, %v2015
        %v2017 = vshll.u32 920167782, %v2002
        %v2018 = vshrl.u32 1326507024, %v2003
        %v2019 = vor.u32 %v2017, %v2018
        %vm2020 = vcmp.lt.s32.totalorder %v2001, 1
        %vm2021 = vcmp.lt.s32.totalorder %v2001, 2
        %vm2022 = vcmp.lt.s32.totalorder %v2001, 3
        %vm2023 = vcmp.lt.s32.totalorder %v2001, 4
        %v2024 = vsel %vm2020, %v2004, %v2007
        %v2025 = vsel %vm2023, %v2013, 2102212464
        %v2026 = vsel %vm2022, %v2010, %v2025
        %v2027 = vsel %vm2021, %v2024, %v2026
        %v2028 = vsel %vm2020, %v2007, %v2010
        %v2029 = vsel %vm2023, %v2016, 920167782
        %v2030 = vsel %vm2022, %v2013, %v2029
        %v2031 = vsel %vm2021, %v2028, %v2030
        %v2032 = vsel %vm2020, %v2010, %v2013
        %v2033 = vsel %vm2023, %v2019, 1326507024
        %v2034 = vsel %vm2022, %v2016, %v2033
        %v2035 = vsel %vm2021, %v2032, %v2034
        %v2036 = vshll.u32 %v1996, 8
        %v2037 = vand.u32 %v2036, 65535
        %v2038 = vshrl.u32 %v2036, 16
        %v2039 = vand.u32 %v2035, 65535
        %v2040 = vshrl.u32 %v2035, 16
        %v2041 = vmul.u32 %v2037, %v2039
        %v2042 = vmul.u32 %v2037, %v2040
        %v2043 = vmul.u32 %v2038, %v2039
        %v2044 = vmul.u32 %v2038, %v2040
        %v2045 = vshll.u32 %v2042, 16
        %v2046 = vshrl.u32 %v2042, 16
        %v2047 = vshll.u32 %v2043, 16
        %v2048 = vshrl.u32 %v2043, 16
        %vm2049 = vc.u32 %v2041, %v2045
        %v2050 = vsel %vm2049, 1, 0
        %v2051 = vadd.s32 %v2041, %v2045
        %v2052 = vadd.s32 %v2044, %v2050
        %vm2053 = vc.u32 %v2051, %v2047
        %v2054 = vsel %vm2053, 1, 0
        %v2055 = vadd.s32 %v2051, %v2047
        %v2056 = vadd.s32 %v2052, %v2054
        %v2057 = vadd.s32 %v2056, %v2046
        %v2058 = vadd.s32 %v2057, %v2048
        %v2059 = vand.u32 %v2036, 65535
        %v2060 = vshrl.u32 %v2036, 16
        %v2061 = vand.u32 %v2031, 65535
        %v2062 = vshrl.u32 %v2031, 16
        %v2063 = vmul.u32 %v2059, %v2061
        %v2064 = vmul.u32 %v2059, %v2062
        %v2065 = vmul.u32 %v2060, %v2061
        %v2066 = vmul.u32 %v2060, %v2062
        %v2067 = vshll.u32 %v2064, 16
        %v2068 = vshrl.u32 %v2064, 16
        %v2069 = vshll.u32 %v2065, 16
        %v2070 = vshrl.u32 %v2065, 16
        %vm2071 = vc.u32 %v2063, %v2067
        %v2072 = vsel %vm2071, 1, 0
        %v2073 = vadd.s32 %v2063, %v2067
        %v2074 = vadd.s32 %v2066, %v2072
        %vm2075 = vc.u32 %v2073, %v2069
        %v2076 = vsel %vm2075, 1, 0
        %v2077 = vadd.s32 %v2073, %v2069
        %v2078 = vadd.s32 %v2074, %v2076
        %v2079 = vadd.s32 %v2078, %v2068
        %v2080 = vadd.s32 %v2079, %v2070
        %v2081 = vmul.u32 %v2036, %v2027
        %v2082 = vadd.s32 %v2058, %v2077
        %vm2083 = vc.u32 %v2058, %v2077
        %v2084 = vadd.s32 %v2080, 1
        %v2085 = vsel %vm2083, %v2084, %v2080
        %v2086 = vadd.s32 %v2081, %v2085
        %v2087 = vadd.s32 %v2086, 536870912
        %v2088 = vshrl.u32 %v2087, 30
        %v2089 = vshll.u32 %v2088, 30
        %v2090 = vsub.s32 %v2086, %v2089
        %vm2091 = vcmp.lt.s32.totalorder %v2090, 0
        %v2092 = vsub.s32 0, %v2090
        %v2093 = vsel %vm2091, %v2092, %v2090
        %v2094 = vclz %v2093
        %v2095 = vsub.s32 %v2094, 2
        %vm2096 = vcmp.gt.s32.totalorder 0, %v2095
        %v2097 = vsel %vm2096, 0, %v2095
        %v2098 = vsub.s32 32, %v2097
        %v2099 = vshll.u32 %v2090, %v2097
        %v2100 = vshrl.u32 %v2082, %v2098
        %v2101 = vor.u32 %v2099, %v2100
        %v2102 = vsub.s32 4294967266, %v2097
        %v2103 = vadd.s32 %v2102, 127
        %v2104 = vshll.u32 %v2103, 23
        %v2105 = vor.u32 4788187, %v2104
        %v2106 = vand.u32 2147483647, %v2105
        %v2108 = vcvt.s32.f32 %v2101
        %v2109 = vmul.f32 %v2108, %v2106
        %v2110 = vxor.u32 %v2109, 2147483648
        %v2111 = vsel %vm1990, %v2110, %v2109
        %v2112 = vsub.s32 4, %v2088
        %v2113 = vsel %vm1990, %v2112, %v2088
        %v2114 = vsel %vm1989, %v1366, %v2111
        %v2115 = vsel %vm1989, 0, %v2113
        %v2116 = vmul.f32 %v2114, %v2114
        %v2117 = vmul.f32 %v2116, -0.001358992
        %v2118 = vadd.f32 %v2117, 0.041655596
        %v2119 = vmul.f32 %v2116, %v2118
        %v2120 = vadd.f32 %v2119, -0.4999988
        %v2121 = vmul.f32 %v2116, %v2120
        %v2122 = vadd.f32 1.0, %v2121
        %v2123 = vmul.f32 %v2114, %v2114
        %v2124 = vmul.f32 %v2123, -0.00019511016
        %v2125 = vadd.f32 %v2124, 0.008332121
        %v2126 = vmul.f32 %v2123, %v2125
        %v2127 = vadd.f32 %v2126, -0.16666654
        %v2128 = vmul.f32 %v2123, %v2127
        %v2129 = vadd.f32 %v2128, 1.0
        %v2130 = vmul.f32 %v2129, %v2114
        %vm2131 = vweird.f32 %v1366
        %v2132 = vadd.s32 %v2115, 3
        %v2133 = vand.u32 %v2132, 3
        %vm2134 = vcmp.lt.s32.totalorder %v2133, 2
        %vm2135 = vcmp.eq.s32.totalorder %v2133, 0
        %v2136 = vxor.u32 %v2130, 2147483648
        %v2137 = vsel %vm2135, %v2122, %v2136
        %vm2138 = vcmp.eq.s32.totalorder %v2133, 2
        %v2139 = vxor.u32 %v2122, 2147483648
        %v2140 = vsel %vm2138, %v2139, %v2130
        %v2141 = vsel %vm2134, %v2137, %v2140
        %v2142 = vsel %vm2131, nan, %v2141
        %v2143 = vand.u32 2147483647, %v1367
        %vm2144 = vcmp.le.f32.partialorder %v2143, 0.7853982
        %vm2145 = vcmp.lt.s32.totalorder %v1367, 0
        %v2146 = vand.u32 %v1367, 2139095040
        %v2147 = vshrl.u32 %v2146, 23
        %v2148 = vsub.s32 %v2147, 127
        %v2149 = vand.u32 2147483647, %v1367
        %v2150 = vand.u32 %v2149, 8388607
        %v2151 = vor.u32 %v2150, 8388608
        %v2152 = vsub.s32 0, %v2151
        %v2153 = vadd.s32 %v2148, 1
        %vm2154 = vcmp.gt.s32.totalorder %v2153, 0
        %v2155 = vsel %vm2154, %v2153, 0
        %v2156 = vshrl.u32 %v2155, 5
        %v2157 = vand.u32 %v2155, 31
        %v2158 = vsub.s32 32, %v2157
        %v2159 = vshrl.u32 683565275, %v2158
        %v2160 = vshll.u32 683565275, %v2157
        %v2161 = vshrl.u32 2475754826, %v2158
        %v2162 = vor.u32 %v2160, %v2161
        %v2163 = vshll.u32 2475754826, %v2157
        %v2164 = vshrl.u32 2131351028, %v2158
        %v2165 = vor.u32 %v2163, %v2164
        %v2166 = vshll.u32 2131351028, %v2157
        %v2167 = vshrl.u32 2102212464, %v2158
        %v2168 = vor.u32 %v2166, %v2167
        %v2169 = vshll.u32 2102212464, %v2157
        %v2170 = vshrl.u32 920167782, %v2158
        %v2171 = vor.u32 %v2169, %v2170
        %v2172 = vshll.u32 920167782, %v2157
        %v2173 = vshrl.u32 1326507024, %v2158
        %v2174 = vor.u32 %v2172, %v2173
        %vm2175 = vcmp.lt.s32.totalorder %v2156, 1
        %vm2176 = vcmp.lt.s32.totalorder %v2156, 2
        %vm2177 = vcmp.lt.s32.totalorder %v2156, 3
        %vm2178 = vcmp.lt.s32.totalorder %v2156, 4
        %v2179 = vsel %vm2175, %v2159, %v2162
        %v2180 = vsel %vm2178, %v2168, 2102212464
        %v2181 = vsel %vm2177, %v2165, %v2180
        %v2182 = vsel %vm2176, %v2179, %v2181
        %v2183 = vsel %vm2175, %v2162, %v2165
        %v2184 = vsel %vm2178, %v2171, 920167782
        %v2185 = vsel %vm2177, %v2168, %v2184
        %v2186 = vsel %vm2176, %v2183, %v2185
        %v2187 = vsel %vm2175, %v2165, %v2168
        %v2188 = vsel %vm2178, %v2174, 1326507024
        %v2189 = vsel %vm2177, %v2171, %v2188
        %v2190 = vsel %vm2176, %v2187, %v2189
        %v2191 = vshll.u32 %v2151, 8
        %v2192 = vand.u32 %v2191, 65535
        %v2193 = vshrl.u32 %v2191, 16
        %v2194 = vand.u32 %v2190, 65535
        %v2195 = vshrl.u32 %v2190, 16
        %v2196 = vmul.u32 %v2192, %v2194
        %v2197 = vmul.u32 %v2192, %v2195
        %v2198 = vmul.u32 %v2193, %v2194
        %v2199 = vmul.u32 %v2193, %v2195
        %v2200 = vshll.u32 %v2197, 16
        %v2201 = vshrl.u32 %v2197, 16
        %v2202 = vshll.u32 %v2198, 16
        %v2203 = vshrl.u32 %v2198, 16
        %vm2204 = vc.u32 %v2196, %v2200
        %v2205 = vsel %vm2204, 1, 0
        %v2206 = vadd.s32 %v2196, %v2200
        %v2207 = vadd.s32 %v2199, %v2205
        %vm2208 = vc.u32 %v2206, %v2202
        %v2209 = vsel %vm2208, 1, 0
        %v2210 = vadd.s32 %v2206, %v2202
        %v2211 = vadd.s32 %v2207, %v2209
        %v2212 = vadd.s32 %v2211, %v2201
        %v2213 = vadd.s32 %v2212, %v2203
        %v2214 = vand.u32 %v2191, 65535
        %v2215 = vshrl.u32 %v2191, 16
        %v2216 = vand.u32 %v2186, 65535
        %v2217 = vshrl.u32 %v2186, 16
        %v2218 = vmul.u32 %v2214, %v2216
        %v2219 = vmul.u32 %v2214, %v2217
        %v2220 = vmul.u32 %v2215, %v2216
        %v2221 = vmul.u32 %v2215, %v2217
        %v2222 = vshll.u32 %v2219, 16
        %v2223 = vshrl.u32 %v2219, 16
        %v2224 = vshll.u32 %v2220, 16
        %v2225 = vshrl.u32 %v2220, 16
        %vm2226 = vc.u32 %v2218, %v2222
        %v2227 = vsel %vm2226, 1, 0
        %v2228 = vadd.s32 %v2218, %v2222
        %v2229 = vadd.s32 %v2221, %v2227
        %vm2230 = vc.u32 %v2228, %v2224
        %v2231 = vsel %vm2230, 1, 0
        %v2232 = vadd.s32 %v2228, %v2224
        %v2233 = vadd.s32 %v2229, %v2231
        %v2234 = vadd.s32 %v2233, %v2223
        %v2235 = vadd.s32 %v2234, %v2225
        %v2236 = vmul.u32 %v2191, %v2182
        %v2237 = vadd.s32 %v2213, %v2232
        %vm2238 = vc.u32 %v2213, %v2232
        %v2239 = vadd.s32 %v2235, 1
        %v2240 = vsel %vm2238, %v2239, %v2235
        %v2241 = vadd.s32 %v2236, %v2240
        %v2242 = vadd.s32 %v2241, 536870912
        %v2243 = vshrl.u32 %v2242, 30
        %v2244 = vshll.u32 %v2243, 30
        %v2245 = vsub.s32 %v2241, %v2244
        %vm2246 = vcmp.lt.s32.totalorder %v2245, 0
        %v2247 = vsub.s32 0, %v2245
        %v2248 = vsel %vm2246, %v2247, %v2245
        %v2249 = vclz %v2248
        %v2250 = vsub.s32 %v2249, 2
        %vm2251 = vcmp.gt.s32.totalorder 0, %v2250
        %v2252 = vsel %vm2251, 0, %v2250
        %v2253 = vsub.s32 32, %v2252
        %v2254 = vshll.u32 %v2245, %v2252
        %v2255 = vshrl.u32 %v2237, %v2253
        %v2256 = vor.u32 %v2254, %v2255
        %v2257 = vsub.s32 4294967266, %v2252
        %v2258 = vadd.s32 %v2257, 127
        %v2259 = vshll.u32 %v2258, 23
        %v2260 = vor.u32 4788187, %v2259
        %v2261 = vand.u32 2147483647, %v2260
        %v2263 = vcvt.s32.f32 %v2256
        %v2264 = vmul.f32 %v2263, %v2261
        %v2265 = vxor.u32 %v2264, 2147483648
        %v2266 = vsel %vm2145, %v2265, %v2264
        %v2267 = vsub.s32 4, %v2243
        %v2268 = vsel %vm2145, %v2267, %v2243
        %v2269 = vsel %vm2144, %v1367, %v2266
        %v2270 = vsel %vm2144, 0, %v2268
        %v2271 = vmul.f32 %v2269, %v2269
        %v2272 = vmul.f32 %v2271, -0.001358992
        %v2273 = vadd.f32 %v2272, 0.041655596
        %v2274 = vmul.f32 %v2271, %v2273
        %v2275 = vadd.f32 %v2274, -0.4999988
        %v2276 = vmul.f32 %v2271, %v2275
        %v2277 = vadd.f32 1.0, %v2276
        %v2278 = vmul.f32 %v2269, %v2269
        %v2279 = vmul.f32 %v2278, -0.00019511016
        %v2280 = vadd.f32 %v2279, 0.008332121
        %v2281 = vmul.f32 %v2278, %v2280
        %v2282 = vadd.f32 %v2281, -0.16666654
        %v2283 = vmul.f32 %v2278, %v2282
        %v2284 = vadd.f32 %v2283, 1.0
        %v2285 = vmul.f32 %v2284, %v2269
        %vm2286 = vweird.f32 %v1367
        %v2287 = vadd.s32 %v2270, 3
        %v2288 = vand.u32 %v2287, 3
        %vm2289 = vcmp.lt.s32.totalorder %v2288, 2
        %vm2290 = vcmp.eq.s32.totalorder %v2288, 0
        %v2291 = vxor.u32 %v2285, 2147483648
        %v2292 = vsel %vm2290, %v2277, %v2291
        %vm2293 = vcmp.eq.s32.totalorder %v2288, 2
        %v2294 = vxor.u32 %v2277, 2147483648
        %v2295 = vsel %vm2293, %v2294, %v2285
        %v2296 = vsel %vm2289, %v2292, %v2295
        %v2297 = vsel %vm2286, nan, %v2296
        %v2298 = vpack.c.bf16 %v1987, %v1522
        %v2299 = vpack.c.bf16 %v2142, %v1677
        %v2300 = vpack.c.bf16 %v2297, %v1832
        %v2301 = vld [vmem:[#allocation4] sm:$0xf]
        %v2302 = vld [vmem:[#allocation4 + $0x4] sm:$0xf]
        %v2303 = vld [vmem:[#allocation4 + $0x8] sm:$0xf]
        %v2304 = vld [vmem:[#allocation4 + $0xc] sm:$0xf]
        %v2305 = vld [vmem:[#allocation4 + $0x10] sm:$0xf]
        %v2306 = vld [vmem:[#allocation4 + $0x14] sm:$0xf]
        %v2307 = vld [vmem:[#allocation4 + $0x18] sm:$0xf]
        %v2308 = vld [vmem:[#allocation4 + $0x1c] sm:$0xf]
        %v2309 = vld [vmem:[#allocation4 + $0x20] sm:$0xf]
        %v2310 = vld [vmem:[#allocation4 + $0x24] sm:$0xf]
        %v2311 = vld [vmem:[#allocation4 + $0x28] sm:$0xf]
        %v2312 = vld [vmem:[#allocation4 + $0x2c] sm:$0xf]
        %v2313 = vld [vmem:[#allocation4 + $0x30] sm:$0xf]
        %v2314 = vld [vmem:[#allocation4 + $0x34] sm:$0xf]
        %v2315 = vld [vmem:[#allocation4 + $0x38] sm:$0xf]
        %v2316 = vld [vmem:[#allocation4 + $0x3c] sm:$0xf]
        %v2317 = vld [vmem:[#allocation4 + $0x40] sm:$0xf]
        %v2318 = vld [vmem:[#allocation4 + $0x44] sm:$0xf]
        %v2319 = vld [vmem:[#allocation4 + $0x48] sm:$0xf]
        %v2320 = vld [vmem:[#allocation4 + $0x4c] sm:$0xf]
        %v2321 = vld [vmem:[#allocation4 + $0x50] sm:$0xf]
        %v2322 = vld [vmem:[#allocation4 + $0x54] sm:$0xf]
        %v2323 = vld [vmem:[#allocation4 + $0x58] sm:$0xf]
        %v2324 = vld [vmem:[#allocation4 + $0x5c] sm:$0xf]
        %v2325 = vld [vmem:[#allocation4 + $0x60] sm:$0xf]
        %v2326 = vld [vmem:[#allocation4 + $0x64] sm:$0xf]
        %v2327 = vld [vmem:[#allocation4 + $0x68] sm:$0xf]
        %v2328 = vld [vmem:[#allocation4 + $0x6c] sm:$0xf]
        %v2329 = vld [vmem:[#allocation4 + $0x70] sm:$0xf]
        %v2330 = vld [vmem:[#allocation4 + $0x74] sm:$0xf]
        %v2331 = vld [vmem:[#allocation4 + $0x78] sm:$0xf]
        %v2332 = vld [vmem:[#allocation4 + $0x7c] sm:$0xf]
        %v2333 = vld [vmem:[#allocation4 + $0x80] sm:$0xf]
        %v2334 = vld [vmem:[#allocation4 + $0x84] sm:$0xf]
        %v2335 = vld [vmem:[#allocation4 + $0x88] sm:$0xf]
        %v2336 = vld [vmem:[#allocation4 + $0x8c] sm:$0xf]
        %v2337 = vld [vmem:[#allocation4 + $0x90] sm:$0xf]
        %v2338 = vld [vmem:[#allocation4 + $0x94] sm:$0xf]
        %v2339 = vld [vmem:[#allocation4 + $0x98] sm:$0xf]
        %v2340 = vld [vmem:[#allocation4 + $0x9c] sm:$0xf]
        %v2341 = vld [vmem:[#allocation4 + $0xa0] sm:$0xf]
        %v2342 = vld [vmem:[#allocation4 + $0xa4] sm:$0xf]
        %v2343 = vld [vmem:[#allocation4 + $0xa8] sm:$0xf]
        %v2344 = vld [vmem:[#allocation4 + $0xac] sm:$0xf]
        %v2345 = vld [vmem:[#allocation4 + $0xb0] sm:$0xf]
        %v2346 = vld [vmem:[#allocation4 + $0xb4] sm:$0xf]
        %v2347 = vld [vmem:[#allocation4 + $0xb8] sm:$0xf]
        %v2348 = vld [vmem:[#allocation4 + $0xbc] sm:$0xf]
        %v2349 = vld [vmem:[%s9] sm:$0x1]
        %v2351 = vperm.slane %v2349, 0
        %v2401 = vunpack.c.l.b16 %v2301
        %v2402 = vunpack.c.l.b16 %v2302
        %v2403 = vunpack.c.l.b16 %v2303
        %v2404 = vunpack.c.l.b16 %v2304
        %v2405 = vunpack.c.l.b16 %v2305
        %v2406 = vunpack.c.l.b16 %v2306
        %v2407 = vunpack.c.l.b16 %v2307
        %v2408 = vunpack.c.l.b16 %v2308
        %v2409 = vunpack.c.l.b16 %v2309
        %v2410 = vunpack.c.l.b16 %v2310
        %v2411 = vunpack.c.l.b16 %v2311
        %v2412 = vunpack.c.l.b16 %v2312
        %v2413 = vunpack.c.l.b16 %v2313
        %v2414 = vunpack.c.l.b16 %v2314
        %v2415 = vunpack.c.l.b16 %v2315
        %v2416 = vunpack.c.l.b16 %v2316
        %v2417 = vunpack.c.l.b16 %v2317
        %v2418 = vunpack.c.l.b16 %v2318
        %v2419 = vunpack.c.l.b16 %v2319
        %v2420 = vunpack.c.l.b16 %v2320
        %v2421 = vunpack.c.l.b16 %v2321
        %v2422 = vunpack.c.l.b16 %v2322
        %v2423 = vunpack.c.l.b16 %v2323
        %v2424 = vunpack.c.l.b16 %v2324
        %v2425 = vunpack.c.l.b16 %v2325
        %v2426 = vunpack.c.l.b16 %v2326
        %v2427 = vunpack.c.l.b16 %v2327
        %v2428 = vunpack.c.l.b16 %v2328
        %v2429 = vunpack.c.l.b16 %v2329
        %v2430 = vunpack.c.l.b16 %v2330
        %v2431 = vunpack.c.l.b16 %v2331
        %v2432 = vunpack.c.l.b16 %v2332
        %v2433 = vunpack.c.l.b16 %v2333
        %v2434 = vunpack.c.l.b16 %v2334
        %v2435 = vunpack.c.l.b16 %v2335
        %v2436 = vunpack.c.l.b16 %v2336
        %v2437 = vunpack.c.l.b16 %v2337
        %v2438 = vunpack.c.l.b16 %v2338
        %v2439 = vunpack.c.l.b16 %v2339
        %v2440 = vunpack.c.l.b16 %v2340
        %v2441 = vunpack.c.l.b16 %v2341
        %v2442 = vunpack.c.l.b16 %v2342
        %v2443 = vunpack.c.l.b16 %v2343
        %v2444 = vunpack.c.l.b16 %v2344
        %v2445 = vunpack.c.l.b16 %v2345
        %v2446 = vunpack.c.l.b16 %v2346
        %v2447 = vunpack.c.l.b16 %v2347
        %v2448 = vunpack.c.l.b16 %v2348
        %v2449 = vpack.c.b16 %v2402, %v2401
        %v2450 = vpack.c.b16 %v2404, %v2403
        %v2451 = vpack.c.b16 %v2406, %v2405
        %v2452 = vpack.c.b16 %v2408, %v2407
        %v2453 = vpack.c.b16 %v2410, %v2409
        %v2454 = vpack.c.b16 %v2412, %v2411
        %v2455 = vpack.c.b16 %v2414, %v2413
        %v2456 = vpack.c.b16 %v2416, %v2415
        %v2457 = vpack.c.b16 %v2418, %v2417
        %v2458 = vpack.c.b16 %v2420, %v2419
        %v2459 = vpack.c.b16 %v2422, %v2421
        %v2460 = vpack.c.b16 %v2424, %v2423
        %v2461 = vpack.c.b16 %v2426, %v2425
        %v2462 = vpack.c.b16 %v2428, %v2427
        %v2463 = vpack.c.b16 %v2430, %v2429
        %v2464 = vpack.c.b16 %v2432, %v2431
        %v2465 = vpack.c.b16 %v2434, %v2433
        %v2466 = vpack.c.b16 %v2436, %v2435
        %v2467 = vpack.c.b16 %v2438, %v2437
        %v2468 = vpack.c.b16 %v2440, %v2439
        %v2469 = vpack.c.b16 %v2442, %v2441
        %v2470 = vpack.c.b16 %v2444, %v2443
        %v2471 = vpack.c.b16 %v2446, %v2445
        %v2472 = vpack.c.b16 %v2448, %v2447
        %2497 = vmatpush.bf16.msra.mxu0 %v2456
        %2498 = vmatpush.bf16.msra.mxu0 %v2455
        %2499 = vmatpush.bf16.msra.mxu0 %v2454
        %2500 = vmatpush.bf16.msra.mxu0 %v2453
        %2501 = vmatpush.bf16.msra.mxu0 %v2452
        %2502 = vmatpush.bf16.msra.mxu0 %v2451
        %2503 = vmatpush.bf16.msra.mxu0 %v2450
        %2504 = vmatpush.bf16.msra.mxu0 %v2449
        %2505 = vmatmul.bf16.gmra.mxu0 %v2298
        %v2506 = vpop.f32.mrf.mxu0
        %v2507 = vadd.f32 %v2351, %v2506
        %v2508 = vpop.f32.mrf.mxu0
        %v2509 = vadd.f32 %v2351, %v2508
        %2510 = vdwg.mxu0
        %2511 = vmatpush.bf16.msra.mxu0 %v2464
        %2512 = vmatpush.bf16.msra.mxu0 %v2463
        %2513 = vmatpush.bf16.msra.mxu0 %v2462
        %2514 = vmatpush.bf16.msra.mxu0 %v2461
        %2515 = vmatpush.bf16.msra.mxu0 %v2460
        %2516 = vmatpush.bf16.msra.mxu0 %v2459
        %2517 = vmatpush.bf16.msra.mxu0 %v2458
        %2518 = vmatpush.bf16.msra.mxu0 %v2457
        %2519 = vmatmul.bf16.gmra.mxu0 %v2299
        %v2520 = vpop.f32.mrf.mxu0
        %v2521 = vadd.f32 %v2507, %v2520
        %v2522 = vpop.f32.mrf.mxu0
        %v2523 = vadd.f32 %v2509, %v2522
        %2524 = vdwg.mxu0
        %2525 = vmatpush.bf16.msra.mxu0 %v2472
        %2526 = vmatpush.bf16.msra.mxu0 %v2471
        %2527 = vmatpush.bf16.msra.mxu0 %v2470
        %2528 = vmatpush.bf16.msra.mxu0 %v2469
        %2529 = vmatpush.bf16.msra.mxu0 %v2468
        %2530 = vmatpush.bf16.msra.mxu0 %v2467
        %2531 = vmatpush.bf16.msra.mxu0 %v2466
        %2532 = vmatpush.bf16.msra.mxu0 %v2465
        %2533 = vmatmul.bf16.gmra.mxu0 %v2300
        %v2534 = vpop.f32.mrf.mxu0
        %v2535 = vadd.f32 %v2521, %v2534
        %v2536 = vpop.f32.mrf.mxu0
        %v2537 = vadd.f32 %v2523, %v2536
        %2538 = vdwg.mxu0
        %v2539 = vld [vmem:[%s10] sm:$0xff]
        %v2540 = vld [vmem:[%s11] sm:$0x1]
        %2542 = vset.pattern.permute.xlu0 0
        %2543 = vperm.xlu0 %2542, %v2539
        %v2544 = vpop.permute.xlu0 %2543
        %v2547 = vperm.slane %v2540, 0
        %v2549 = vmul.f32 %v2544, %v2547
        %v2550 = vld [vmem:[%s12] sm:$0x1]
        %v2552 = vperm.slane %v2550, 0
        %v2554 = vadd.f32 %v2549, %v2552
        %v2555 = vmul.f32 %v2554, 30.0
        %v2556 = vand.u32 2147483647, %v2555
        %vm2557 = vcmp.le.f32.partialorder %v2556, 0.7853982
        %vm2558 = vcmp.lt.s32.totalorder %v2555, 0
        %v2559 = vand.u32 %v2555, 2139095040
        %v2560 = vshrl.u32 %v2559, 23
        %v2561 = vsub.s32 %v2560, 127
        %v2562 = vand.u32 2147483647, %v2555
        %v2563 = vand.u32 %v2562, 8388607
        %v2564 = vor.u32 %v2563, 8388608
        %v2565 = vsub.s32 0, %v2564
        %v2566 = vadd.s32 %v2561, 1
        %vm2567 = vcmp.gt.s32.totalorder %v2566, 0
        %v2568 = vsel %vm2567, %v2566, 0
        %v2569 = vshrl.u32 %v2568, 5
        %v2570 = vand.u32 %v2568, 31
        %v2571 = vsub.s32 32, %v2570
        %v2572 = vshrl.u32 683565275, %v2571
        %v2573 = vshll.u32 683565275, %v2570
        %v2574 = vshrl.u32 2475754826, %v2571
        %v2575 = vor.u32 %v2573, %v2574
        %v2576 = vshll.u32 2475754826, %v2570
        %v2577 = vshrl.u32 2131351028, %v2571
        %v2578 = vor.u32 %v2576, %v2577
        %v2579 = vshll.u32 2131351028, %v2570
        %v2580 = vshrl.u32 2102212464, %v2571
        %v2581 = vor.u32 %v2579, %v2580
        %v2582 = vshll.u32 2102212464, %v2570
        %v2583 = vshrl.u32 920167782, %v2571
        %v2584 = vor.u32 %v2582, %v2583
        %v2585 = vshll.u32 920167782, %v2570
        %v2586 = vshrl.u32 1326507024, %v2571
        %v2587 = vor.u32 %v2585, %v2586
        %vm2588 = vcmp.lt.s32.totalorder %v2569, 1
        %vm2589 = vcmp.lt.s32.totalorder %v2569, 2
        %vm2590 = vcmp.lt.s32.totalorder %v2569, 3
        %vm2591 = vcmp.lt.s32.totalorder %v2569, 4
        %v2592 = vsel %vm2588, %v2572, %v2575
        %v2593 = vsel %vm2591, %v2581, 2102212464
        %v2594 = vsel %vm2590, %v2578, %v2593
        %v2595 = vsel %vm2589, %v2592, %v2594
        %v2596 = vsel %vm2588, %v2575, %v2578
        %v2597 = vsel %vm2591, %v2584, 920167782
        %v2598 = vsel %vm2590, %v2581, %v2597
        %v2599 = vsel %vm2589, %v2596, %v2598
        %v2600 = vsel %vm2588, %v2578, %v2581
        %v2601 = vsel %vm2591, %v2587, 1326507024
        %v2602 = vsel %vm2590, %v2584, %v2601
        %v2603 = vsel %vm2589, %v2600, %v2602
        %v2604 = vshll.u32 %v2564, 8
        %v2605 = vand.u32 %v2604, 65535
        %v2606 = vshrl.u32 %v2604, 16
        %v2607 = vand.u32 %v2603, 65535
        %v2608 = vshrl.u32 %v2603, 16
        %v2609 = vmul.u32 %v2605, %v2607
        %v2610 = vmul.u32 %v2605, %v2608
        %v2611 = vmul.u32 %v2606, %v2607
        %v2612 = vmul.u32 %v2606, %v2608
        %v2613 = vshll.u32 %v2610, 16
        %v2614 = vshrl.u32 %v2610, 16
        %v2615 = vshll.u32 %v2611, 16
        %v2616 = vshrl.u32 %v2611, 16
        %vm2617 = vc.u32 %v2609, %v2613
        %v2618 = vsel %vm2617, 1, 0
        %v2619 = vadd.s32 %v2609, %v2613
        %v2620 = vadd.s32 %v2612, %v2618
        %vm2621 = vc.u32 %v2619, %v2615
        %v2622 = vsel %vm2621, 1, 0
        %v2623 = vadd.s32 %v2619, %v2615
        %v2624 = vadd.s32 %v2620, %v2622
        %v2625 = vadd.s32 %v2624, %v2614
        %v2626 = vadd.s32 %v2625, %v2616
        %v2627 = vand.u32 %v2604, 65535
        %v2628 = vshrl.u32 %v2604, 16
        %v2629 = vand.u32 %v2599, 65535
        %v2630 = vshrl.u32 %v2599, 16
        %v2631 = vmul.u32 %v2627, %v2629
        %v2632 = vmul.u32 %v2627, %v2630
        %v2633 = vmul.u32 %v2628, %v2629
        %v2634 = vmul.u32 %v2628, %v2630
        %v2635 = vshll.u32 %v2632, 16
        %v2636 = vshrl.u32 %v2632, 16
        %v2637 = vshll.u32 %v2633, 16
        %v2638 = vshrl.u32 %v2633, 16
        %vm2639 = vc.u32 %v2631, %v2635
        %v2640 = vsel %vm2639, 1, 0
        %v2641 = vadd.s32 %v2631, %v2635
        %v2642 = vadd.s32 %v2634, %v2640
        %vm2643 = vc.u32 %v2641, %v2637
        %v2644 = vsel %vm2643, 1, 0
        %v2645 = vadd.s32 %v2641, %v2637
        %v2646 = vadd.s32 %v2642, %v2644
        %v2647 = vadd.s32 %v2646, %v2636
        %v2648 = vadd.s32 %v2647, %v2638
        %v2649 = vmul.u32 %v2604, %v2595
        %v2650 = vadd.s32 %v2626, %v2645
        %vm2651 = vc.u32 %v2626, %v2645
        %v2652 = vadd.s32 %v2648, 1
        %v2653 = vsel %vm2651, %v2652, %v2648
        %v2654 = vadd.s32 %v2649, %v2653
        %v2655 = vadd.s32 %v2654, 536870912
        %v2656 = vshrl.u32 %v2655, 30
        %v2657 = vshll.u32 %v2656, 30
        %v2658 = vsub.s32 %v2654, %v2657
        %vm2659 = vcmp.lt.s32.totalorder %v2658, 0
        %v2660 = vsub.s32 0, %v2658
        %v2661 = vsel %vm2659, %v2660, %v2658
        %v2662 = vclz %v2661
        %v2663 = vsub.s32 %v2662, 2
        %vm2664 = vcmp.gt.s32.totalorder 0, %v2663
        %v2665 = vsel %vm2664, 0, %v2663
        %v2666 = vsub.s32 32, %v2665
        %v2667 = vshll.u32 %v2658, %v2665
        %v2668 = vshrl.u32 %v2650, %v2666
        %v2669 = vor.u32 %v2667, %v2668
        %v2670 = vsub.s32 4294967266, %v2665
        %v2671 = vadd.s32 %v2670, 127
        %v2672 = vshll.u32 %v2671, 23
        %v2673 = vor.u32 4788187, %v2672
        %v2674 = vand.u32 2147483647, %v2673
        %v2676 = vcvt.s32.f32 %v2669
        %v2677 = vmul.f32 %v2676, %v2674
        %v2678 = vxor.u32 %v2677, 2147483648
        %v2679 = vsel %vm2558, %v2678, %v2677
        %v2680 = vsub.s32 4, %v2656
        %v2681 = vsel %vm2558, %v2680, %v2656
        %v2682 = vsel %vm2557, %v2555, %v2679
        %v2683 = vsel %vm2557, 0, %v2681
        %v2684 = vmul.f32 %v2682, %v2682
        %v2685 = vmul.f32 %v2684, -0.001358992
        %v2686 = vadd.f32 %v2685, 0.041655596
        %v2687 = vmul.f32 %v2684, %v2686
        %v2688 = vadd.f32 %v2687, -0.4999988
        %v2689 = vmul.f32 %v2684, %v2688
        %v2690 = vadd.f32 1.0, %v2689
        %v2691 = vmul.f32 %v2682, %v2682
        %v2692 = vmul.f32 %v2691, -0.00019511016
        %v2693 = vadd.f32 %v2692, 0.008332121
        %v2694 = vmul.f32 %v2691, %v2693
        %v2695 = vadd.f32 %v2694, -0.16666654
        %v2696 = vmul.f32 %v2691, %v2695
        %v2697 = vadd.f32 %v2696, 1.0
        %v2698 = vmul.f32 %v2697, %v2682
        %vm2699 = vweird.f32 %v2555
        %v2700 = vadd.s32 %v2683, 3
        %v2701 = vand.u32 %v2700, 3
        %vm2702 = vcmp.lt.s32.totalorder %v2701, 2
        %vm2703 = vcmp.eq.s32.totalorder %v2701, 0
        %v2704 = vxor.u32 %v2698, 2147483648
        %v2705 = vsel %vm2703, %v2690, %v2704
        %vm2706 = vcmp.eq.s32.totalorder %v2701, 2
        %v2707 = vxor.u32 %v2690, 2147483648
        %v2708 = vsel %vm2706, %v2707, %v2698
        %v2709 = vsel %vm2702, %v2705, %v2708
        %v2710 = vsel %vm2699, nan, %v2709
        %v2711 = vpack.c.bf16 %v2710, %v2710
        %v2712 = vld [vmem:[#allocation6] sm:$0xf]
        %v2713 = vld [vmem:[#allocation6 + $0x4] sm:$0xf]
        %v2714 = vld [vmem:[#allocation6 + $0x8] sm:$0xf]
        %v2715 = vld [vmem:[#allocation6 + $0xc] sm:$0xf]
        %v2716 = vld [vmem:[#allocation6 + $0x10] sm:$0xf]
        %v2717 = vld [vmem:[#allocation6 + $0x14] sm:$0xf]
        %v2718 = vld [vmem:[#allocation6 + $0x18] sm:$0xf]
        %v2719 = vld [vmem:[#allocation6 + $0x1c] sm:$0xf]
        %v2720 = vld [vmem:[#allocation6 + $0x20] sm:$0xf]
        %v2721 = vld [vmem:[#allocation6 + $0x24] sm:$0xf]
        %v2722 = vld [vmem:[#allocation6 + $0x28] sm:$0xf]
        %v2723 = vld [vmem:[#allocation6 + $0x2c] sm:$0xf]
        %v2724 = vld [vmem:[#allocation6 + $0x30] sm:$0xf]
        %v2725 = vld [vmem:[#allocation6 + $0x34] sm:$0xf]
        %v2726 = vld [vmem:[#allocation6 + $0x38] sm:$0xf]
        %v2727 = vld [vmem:[#allocation6 + $0x3c] sm:$0xf]
        %v2728 = vld [vmem:[%s14] sm:$0x1]
        %v2730 = vperm.slane %v2728, 0
        %v2748 = vunpack.c.l.b16 %v2712
        %v2749 = vunpack.c.l.b16 %v2713
        %v2750 = vunpack.c.l.b16 %v2714
        %v2751 = vunpack.c.l.b16 %v2715
        %v2752 = vunpack.c.l.b16 %v2716
        %v2753 = vunpack.c.l.b16 %v2717
        %v2754 = vunpack.c.l.b16 %v2718
        %v2755 = vunpack.c.l.b16 %v2719
        %v2756 = vunpack.c.l.b16 %v2720
        %v2757 = vunpack.c.l.b16 %v2721
        %v2758 = vunpack.c.l.b16 %v2722
        %v2759 = vunpack.c.l.b16 %v2723
        %v2760 = vunpack.c.l.b16 %v2724
        %v2761 = vunpack.c.l.b16 %v2725
        %v2762 = vunpack.c.l.b16 %v2726
        %v2763 = vunpack.c.l.b16 %v2727
        %v2764 = vpack.c.b16 %v2749, %v2748
        %v2765 = vpack.c.b16 %v2751, %v2750
        %v2766 = vpack.c.b16 %v2753, %v2752
        %v2767 = vpack.c.b16 %v2755, %v2754
        %v2768 = vpack.c.b16 %v2757, %v2756
        %v2769 = vpack.c.b16 %v2759, %v2758
        %v2770 = vpack.c.b16 %v2761, %v2760
        %v2771 = vpack.c.b16 %v2763, %v2762
        %2780 = vmatpush.bf16.msra.mxu0 %v2771
        %2781 = vmatpush.bf16.msra.mxu0 %v2770
        %2782 = vmatpush.bf16.msra.mxu0 %v2769
        %2783 = vmatpush.bf16.msra.mxu0 %v2768
        %2784 = vmatpush.bf16.msra.mxu0 %v2767
        %2785 = vmatpush.bf16.msra.mxu0 %v2766
        %2786 = vmatpush.bf16.msra.mxu0 %v2765
        %2787 = vmatpush.bf16.msra.mxu0 %v2764
        %2788 = vmatmul.bf16.gmra.mxu0 %v2711
        %v2789 = vpop.f32.mrf.mxu0
        %v2790 = vadd.f32 %v2730, %v2789
        %v2791 = vpop.f32.mrf.mxu0
        %2792 = vdwg.mxu0
        %v2794 = vrot.slane %v1319, 1
        %v2795 = vrot.slane %v1319, 2
        %v2796 = vrot.slane %v1319, 3
        %v2797 = vrot.slane %v1319, 4
        %v2798 = vrot.slane %v1319, 5
        %v2799 = vrot.slane %v1319, 6
        %v2800 = vrot.slane %v1319, 7
        %v2801 = vperm.slane %v1319, 0
        %v2802 = vperm.slane %v2794, 0
        %v2803 = vperm.slane %v2795, 0
        %v2804 = vperm.slane %v2796, 0
        %v2805 = vperm.slane %v2797, 0
        %v2806 = vperm.slane %v2798, 0
        %v2807 = vperm.slane %v2799, 0
        %v2808 = vperm.slane %v2800, 0
        %v2817 = vmul.f32 %v2801, %v2535
        %v2818 = vmul.f32 %v2801, %v2537
        %v2819 = vmul.f32 %v2802, %v2535
        %v2820 = vmul.f32 %v2802, %v2537
        %v2821 = vmul.f32 %v2803, %v2535
        %v2822 = vmul.f32 %v2803, %v2537
        %v2823 = vmul.f32 %v2804, %v2535
        %v2824 = vmul.f32 %v2804, %v2537
        %v2825 = vmul.f32 %v2805, %v2535
        %v2826 = vmul.f32 %v2805, %v2537
        %v2827 = vmul.f32 %v2806, %v2535
        %v2828 = vmul.f32 %v2806, %v2537
        %v2829 = vmul.f32 %v2807, %v2535
        %v2830 = vmul.f32 %v2807, %v2537
        %v2831 = vmul.f32 %v2808, %v2535
        %v2832 = vmul.f32 %v2808, %v2537
        %v2833 = vpack.c.bf16 %v2818, %v2817
        %v2834 = vpack.c.bf16 %v2820, %v2819
        %v2835 = vpack.c.bf16 %v2822, %v2821
        %v2836 = vpack.c.bf16 %v2824, %v2823
        %v2837 = vpack.c.bf16 %v2826, %v2825
        %v2838 = vpack.c.bf16 %v2828, %v2827
        %v2839 = vpack.c.bf16 %v2830, %v2829
        %v2840 = vpack.c.bf16 %v2832, %v2831
        %v2841 = vld [vmem:[#allocation7] sm:$0xf]
        %v2842 = vld [vmem:[#allocation7 + $0x4] sm:$0xf]
        %v2843 = vld [vmem:[#allocation7 + $0x8] sm:$0xf]
        %v2844 = vld [vmem:[#allocation7 + $0xc] sm:$0xf]
        %v2845 = vld [vmem:[#allocation7 + $0x10] sm:$0xf]
        %v2846 = vld [vmem:[#allocation7 + $0x14] sm:$0xf]
        %v2847 = vld [vmem:[#allocation7 + $0x18] sm:$0xf]
        %v2848 = vld [vmem:[#allocation7 + $0x1c] sm:$0xf]
        %v2849 = vld [vmem:[#allocation7 + $0x20] sm:$0xf]
        %v2850 = vld [vmem:[#allocation7 + $0x24] sm:$0xf]
        %v2851 = vld [vmem:[#allocation7 + $0x28] sm:$0xf]
        %v2852 = vld [vmem:[#allocation7 + $0x2c] sm:$0xf]
        %v2853 = vld [vmem:[#allocation7 + $0x30] sm:$0xf]
        %v2854 = vld [vmem:[#allocation7 + $0x34] sm:$0xf]
        %v2855 = vld [vmem:[#allocation7 + $0x38] sm:$0xf]
        %v2856 = vld [vmem:[#allocation7 + $0x3c] sm:$0xf]
        %v2873 = vunpack.c.l.b16 %v2841
        %v2874 = vunpack.c.l.b16 %v2842
        %v2875 = vunpack.c.l.b16 %v2843
        %v2876 = vunpack.c.l.b16 %v2844
        %v2877 = vunpack.c.l.b16 %v2845
        %v2878 = vunpack.c.l.b16 %v2846
        %v2879 = vunpack.c.l.b16 %v2847
        %v2880 = vunpack.c.l.b16 %v2848
        %v2881 = vunpack.c.l.b16 %v2849
        %v2882 = vunpack.c.l.b16 %v2850
        %v2883 = vunpack.c.l.b16 %v2851
        %v2884 = vunpack.c.l.b16 %v2852
        %v2885 = vunpack.c.l.b16 %v2853
        %v2886 = vunpack.c.l.b16 %v2854
        %v2887 = vunpack.c.l.b16 %v2855
        %v2888 = vunpack.c.l.b16 %v2856
        %v2889 = vpack.c.b16 %v2874, %v2873
        %v2890 = vpack.c.b16 %v2876, %v2875
        %v2891 = vpack.c.b16 %v2878, %v2877
        %v2892 = vpack.c.b16 %v2880, %v2879
        %v2893 = vpack.c.b16 %v2882, %v2881
        %v2894 = vpack.c.b16 %v2884, %v2883
        %v2895 = vpack.c.b16 %v2886, %v2885
        %v2896 = vpack.c.b16 %v2888, %v2887
        %2905 = vmatpush.bf16.xpose.msra.mxu0 %v2896
        %2906 = vmatpush.bf16.xpose.msra.mxu0 %v2895
        %2907 = vmatpush.bf16.xpose.msra.mxu0 %v2894
        %2908 = vmatpush.bf16.xpose.msra.mxu0 %v2893
        %2909 = vmatpush.bf16.xpose.msra.mxu0 %v2892
        %2910 = vmatpush.bf16.xpose.msra.mxu0 %v2891
        %2911 = vmatpush.bf16.xpose.msra.mxu0 %v2890
        %2912 = vmatpush.bf16.xpose.msra.mxu0 %v2889
        %2913 = vmatmul.bf16.gmra.mxu0 %v2833
        %v2914 = vpop.f32.mrf.mxu0
        %v2915 = vadd.f32 0.0, %v2914
        %v2916 = vpop.f32.mrf.mxu0
        %v2917 = vadd.f32 0.0, %v2916
        %2918 = vmatmul.bf16.gmra.mxu0 %v2834
        %v2919 = vpop.f32.mrf.mxu0
        %v2920 = vadd.f32 0.0, %v2919
        %v2921 = vpop.f32.mrf.mxu0
        %v2922 = vadd.f32 0.0, %v2921
        %2923 = vmatmul.bf16.gmra.mxu0 %v2835
        %v2924 = vpop.f32.mrf.mxu0
        %v2925 = vadd.f32 0.0, %v2924
        %v2926 = vpop.f32.mrf.mxu0
        %v2927 = vadd.f32 0.0, %v2926
        %2928 = vmatmul.bf16.gmra.mxu0 %v2836
        %v2929 = vpop.f32.mrf.mxu0
        %v2930 = vadd.f32 0.0, %v2929
        %v2931 = vpop.f32.mrf.mxu0
        %v2932 = vadd.f32 0.0, %v2931
        %2933 = vmatmul.bf16.gmra.mxu0 %v2837
        %v2934 = vpop.f32.mrf.mxu0
        %v2935 = vadd.f32 0.0, %v2934
        %v2936 = vpop.f32.mrf.mxu0
        %v2937 = vadd.f32 0.0, %v2936
        %2938 = vmatmul.bf16.gmra.mxu0 %v2838
        %v2939 = vpop.f32.mrf.mxu0
        %v2940 = vadd.f32 0.0, %v2939
        %v2941 = vpop.f32.mrf.mxu0
        %v2942 = vadd.f32 0.0, %v2941
        %2943 = vmatmul.bf16.gmra.mxu0 %v2839
        %v2944 = vpop.f32.mrf.mxu0
        %v2945 = vadd.f32 0.0, %v2944
        %v2946 = vpop.f32.mrf.mxu0
        %v2947 = vadd.f32 0.0, %v2946
        %2948 = vmatmul.bf16.gmra.mxu0 %v2840
        %v2949 = vpop.f32.mrf.mxu0
        %v2950 = vadd.f32 0.0, %v2949
        %v2951 = vpop.f32.mrf.mxu0
        %v2952 = vadd.f32 0.0, %v2951
        %2953 = vdwg.mxu0
        %v2954 = vmul.f32 %v2915, 0.01
        %v2955 = vmul.f32 %v2917, 0.01
        %v2956 = vmul.f32 %v2920, 0.01
        %v2957 = vmul.f32 %v2922, 0.01
        %v2958 = vmul.f32 %v2925, 0.01
        %v2959 = vmul.f32 %v2927, 0.01
        %v2960 = vmul.f32 %v2930, 0.01
        %v2961 = vmul.f32 %v2932, 0.01
        %v2962 = vmul.f32 %v2935, 0.01
        %v2963 = vmul.f32 %v2937, 0.01
        %v2964 = vmul.f32 %v2940, 0.01
        %v2965 = vmul.f32 %v2942, 0.01
        %v2966 = vmul.f32 %v2945, 0.01
        %v2967 = vmul.f32 %v2947, 0.01
        %v2968 = vmul.f32 %v2950, 0.01
        %v2969 = vmul.f32 %v2952, 0.01
        %v2970 = vmax.f32 %v2915, %v2954
        %v2971 = vmax.f32 %v2917, %v2955
        %v2972 = vmax.f32 %v2920, %v2956
        %v2973 = vmax.f32 %v2922, %v2957
        %v2974 = vmax.f32 %v2925, %v2958
        %v2975 = vmax.f32 %v2927, %v2959
        %v2976 = vmax.f32 %v2930, %v2960
        %v2977 = vmax.f32 %v2932, %v2961
        %v2978 = vmax.f32 %v2935, %v2962
        %v2979 = vmax.f32 %v2937, %v2963
        %v2980 = vmax.f32 %v2940, %v2964
        %v2981 = vmax.f32 %v2942, %v2965
        %v2982 = vmax.f32 %v2945, %v2966
        %v2983 = vmax.f32 %v2947, %v2967
        %v2984 = vmax.f32 %v2950, %v2968
        %v2985 = vmax.f32 %v2952, %v2969
        %v2986 = vpack.c.bf16 %v2971, %v2970
        %v2987 = vpack.c.bf16 %v2973, %v2972
        %v2988 = vpack.c.bf16 %v2975, %v2974
        %v2989 = vpack.c.bf16 %v2977, %v2976
        %v2990 = vpack.c.bf16 %v2979, %v2978
        %v2991 = vpack.c.bf16 %v2981, %v2980
        %v2992 = vpack.c.bf16 %v2983, %v2982
        %v2993 = vpack.c.bf16 %v2985, %v2984
        %s2994 = scalar_lea.vmem [#allocation7], 64
        %v2995 = vld [vmem:[%s2994] sm:$0xf]
        %v2996 = vld [vmem:[%s2994 + $0x4] sm:$0xf]
        %v2997 = vld [vmem:[%s2994 + $0x8] sm:$0xf]
        %v2998 = vld [vmem:[%s2994 + $0xc] sm:$0xf]
        %v2999 = vld [vmem:[%s2994 + $0x10] sm:$0xf]
        %v3000 = vld [vmem:[%s2994 + $0x14] sm:$0xf]
        %v3001 = vld [vmem:[%s2994 + $0x18] sm:$0xf]
        %v3002 = vld [vmem:[%s2994 + $0x1c] sm:$0xf]
        %v3003 = vld [vmem:[%s2994 + $0x20] sm:$0xf]
        %v3004 = vld [vmem:[%s2994 + $0x24] sm:$0xf]
        %v3005 = vld [vmem:[%s2994 + $0x28] sm:$0xf]
        %v3006 = vld [vmem:[%s2994 + $0x2c] sm:$0xf]
        %v3007 = vld [vmem:[%s2994 + $0x30] sm:$0xf]
        %v3008 = vld [vmem:[%s2994 + $0x34] sm:$0xf]
        %v3009 = vld [vmem:[%s2994 + $0x38] sm:$0xf]
        %v3010 = vld [vmem:[%s2994 + $0x3c] sm:$0xf]
        %v3027 = vunpack.c.l.b16 %v2995
        %v3028 = vunpack.c.l.b16 %v2996
        %v3029 = vunpack.c.l.b16 %v2997
        %v3030 = vunpack.c.l.b16 %v2998
        %v3031 = vunpack.c.l.b16 %v2999
        %v3032 = vunpack.c.l.b16 %v3000
        %v3033 = vunpack.c.l.b16 %v3001
        %v3034 = vunpack.c.l.b16 %v3002
        %v3035 = vunpack.c.l.b16 %v3003
        %v3036 = vunpack.c.l.b16 %v3004
        %v3037 = vunpack.c.l.b16 %v3005
        %v3038 = vunpack.c.l.b16 %v3006
        %v3039 = vunpack.c.l.b16 %v3007
        %v3040 = vunpack.c.l.b16 %v3008
        %v3041 = vunpack.c.l.b16 %v3009
        %v3042 = vunpack.c.l.b16 %v3010
        %v3043 = vpack.c.b16 %v3028, %v3027
        %v3044 = vpack.c.b16 %v3030, %v3029
        %v3045 = vpack.c.b16 %v3032, %v3031
        %v3046 = vpack.c.b16 %v3034, %v3033
        %v3047 = vpack.c.b16 %v3036, %v3035
        %v3048 = vpack.c.b16 %v3038, %v3037
        %v3049 = vpack.c.b16 %v3040, %v3039
        %v3050 = vpack.c.b16 %v3042, %v3041
        %3059 = vmatpush.bf16.xpose.msra.mxu0 %v3050
        %3060 = vmatpush.bf16.xpose.msra.mxu0 %v3049
        %3061 = vmatpush.bf16.xpose.msra.mxu0 %v3048
        %3062 = vmatpush.bf16.xpose.msra.mxu0 %v3047
        %3063 = vmatpush.bf16.xpose.msra.mxu0 %v3046
        %3064 = vmatpush.bf16.xpose.msra.mxu0 %v3045
        %3065 = vmatpush.bf16.xpose.msra.mxu0 %v3044
        %3066 = vmatpush.bf16.xpose.msra.mxu0 %v3043
        %3067 = vmatmul.bf16.gmra.mxu0 %v2986
        %v3068 = vpop.f32.mrf.mxu0
        %v3069 = vadd.f32 0.0, %v3068
        %v3070 = vpop.f32.mrf.mxu0
        %v3071 = vadd.f32 0.0, %v3070
        %3072 = vmatmul.bf16.gmra.mxu0 %v2987
        %v3073 = vpop.f32.mrf.mxu0
        %v3074 = vadd.f32 0.0, %v3073
        %v3075 = vpop.f32.mrf.mxu0
        %v3076 = vadd.f32 0.0, %v3075
        %3077 = vmatmul.bf16.gmra.mxu0 %v2988
        %v3078 = vpop.f32.mrf.mxu0
        %v3079 = vadd.f32 0.0, %v3078
        %v3080 = vpop.f32.mrf.mxu0
        %v3081 = vadd.f32 0.0, %v3080
        %3082 = vmatmul.bf16.gmra.mxu0 %v2989
        %v3083 = vpop.f32.mrf.mxu0
        %v3084 = vadd.f32 0.0, %v3083
        %v3085 = vpop.f32.mrf.mxu0
        %v3086 = vadd.f32 0.0, %v3085
        %3087 = vmatmul.bf16.gmra.mxu0 %v2990
        %v3088 = vpop.f32.mrf.mxu0
        %v3089 = vadd.f32 0.0, %v3088
        %v3090 = vpop.f32.mrf.mxu0
        %v3091 = vadd.f32 0.0, %v3090
        %3092 = vmatmul.bf16.gmra.mxu0 %v2991
        %v3093 = vpop.f32.mrf.mxu0
        %v3094 = vadd.f32 0.0, %v3093
        %v3095 = vpop.f32.mrf.mxu0
        %v3096 = vadd.f32 0.0, %v3095
        %3097 = vmatmul.bf16.gmra.mxu0 %v2992
        %v3098 = vpop.f32.mrf.mxu0
        %v3099 = vadd.f32 0.0, %v3098
        %v3100 = vpop.f32.mrf.mxu0
        %v3101 = vadd.f32 0.0, %v3100
        %3102 = vmatmul.bf16.gmra.mxu0 %v2993
        %v3103 = vpop.f32.mrf.mxu0
        %v3104 = vadd.f32 0.0, %v3103
        %v3105 = vpop.f32.mrf.mxu0
        %v3106 = vadd.f32 0.0, %v3105
        %3107 = vdwg.mxu0
        %v3108 = vmul.f32 %v3069, 0.01
        %v3109 = vmul.f32 %v3071, 0.01
        %v3110 = vmul.f32 %v3074, 0.01
        %v3111 = vmul.f32 %v3076, 0.01
        %v3112 = vmul.f32 %v3079, 0.01
        %v3113 = vmul.f32 %v3081, 0.01
        %v3114 = vmul.f32 %v3084, 0.01
        %v3115 = vmul.f32 %v3086, 0.01
        %v3116 = vmul.f32 %v3089, 0.01
        %v3117 = vmul.f32 %v3091, 0.01
        %v3118 = vmul.f32 %v3094, 0.01
        %v3119 = vmul.f32 %v3096, 0.01
        %v3120 = vmul.f32 %v3099, 0.01
        %v3121 = vmul.f32 %v3101, 0.01
        %v3122 = vmul.f32 %v3104, 0.01
        %v3123 = vmul.f32 %v3106, 0.01
        %v3124 = vmax.f32 %v3069, %v3108
        %v3125 = vmax.f32 %v3071, %v3109
        %v3126 = vmax.f32 %v3074, %v3110
        %v3127 = vmax.f32 %v3076, %v3111
        %v3128 = vmax.f32 %v3079, %v3112
        %v3129 = vmax.f32 %v3081, %v3113
        %v3130 = vmax.f32 %v3084, %v3114
        %v3131 = vmax.f32 %v3086, %v3115
        %v3132 = vmax.f32 %v3089, %v3116
        %v3133 = vmax.f32 %v3091, %v3117
        %v3134 = vmax.f32 %v3094, %v3118
        %v3135 = vmax.f32 %v3096, %v3119
        %v3136 = vmax.f32 %v3099, %v3120
        %v3137 = vmax.f32 %v3101, %v3121
        %v3138 = vmax.f32 %v3104, %v3122
        %v3139 = vmax.f32 %v3106, %v3123
        %v3140 = vpack.c.bf16 %v3125, %v3124
        %v3141 = vpack.c.bf16 %v3127, %v3126
        %v3142 = vpack.c.bf16 %v3129, %v3128
        %v3143 = vpack.c.bf16 %v3131, %v3130
        %v3144 = vpack.c.bf16 %v3133, %v3132
        %v3145 = vpack.c.bf16 %v3135, %v3134
        %v3146 = vpack.c.bf16 %v3137, %v3136
        %v3147 = vpack.c.bf16 %v3139, %v3138
        %v3148 = vpack.c.bf16 %v2790, %v2790
        %3149 = vmatpush.bf16.xpose.msra.mxu0 0
        %3150 = vmatpush.bf16.xpose.msra.mxu0 0
        %3151 = vmatpush.bf16.xpose.msra.mxu0 0
        %3152 = vmatpush.bf16.xpose.msra.mxu0 0
        %3153 = vmatpush.bf16.xpose.msra.mxu0 0
        %3154 = vmatpush.bf16.xpose.msra.mxu0 0
        %3155 = vmatpush.bf16.xpose.msra.mxu0 0
        %3156 = vmatpush.bf16.xpose.msra.mxu0 %v3148
        %3157 = vmatmul.bf16.gmra.mxu0 %v3140
        %v3158 = vpop.f32.mrf.mxu0
        %v3159 = vadd.f32 0.0, %v3158
        %v3160 = vpop.f32.mrf.mxu0
        %v3161 = vadd.f32 0.0, %v3160
        %3162 = vmatmul.bf16.gmra.mxu0 %v3141
        %v3163 = vpop.f32.mrf.mxu0
        %v3164 = vadd.f32 0.0, %v3163
        %v3165 = vpop.f32.mrf.mxu0
        %v3166 = vadd.f32 0.0, %v3165
        %3167 = vmatmul.bf16.gmra.mxu0 %v3142
        %v3168 = vpop.f32.mrf.mxu0
        %v3169 = vadd.f32 0.0, %v3168
        %v3170 = vpop.f32.mrf.mxu0
        %v3171 = vadd.f32 0.0, %v3170
        %3172 = vmatmul.bf16.gmra.mxu0 %v3143
        %v3173 = vpop.f32.mrf.mxu0
        %v3174 = vadd.f32 0.0, %v3173
        %v3175 = vpop.f32.mrf.mxu0
        %v3176 = vadd.f32 0.0, %v3175
        %3177 = vmatmul.bf16.gmra.mxu0 %v3144
        %v3178 = vpop.f32.mrf.mxu0
        %v3179 = vadd.f32 0.0, %v3178
        %v3180 = vpop.f32.mrf.mxu0
        %v3181 = vadd.f32 0.0, %v3180
        %3182 = vmatmul.bf16.gmra.mxu0 %v3145
        %v3183 = vpop.f32.mrf.mxu0
        %v3184 = vadd.f32 0.0, %v3183
        %v3185 = vpop.f32.mrf.mxu0
        %v3186 = vadd.f32 0.0, %v3185
        %3187 = vmatmul.bf16.gmra.mxu0 %v3146
        %v3188 = vpop.f32.mrf.mxu0
        %v3189 = vadd.f32 0.0, %v3188
        %v3190 = vpop.f32.mrf.mxu0
        %v3191 = vadd.f32 0.0, %v3190
        %3192 = vmatmul.bf16.gmra.mxu0 %v3147
        %v3193 = vpop.f32.mrf.mxu0
        %v3194 = vadd.f32 0.0, %v3193
        %v3195 = vpop.f32.mrf.mxu0
        %v3196 = vadd.f32 0.0, %v3195
        %3197 = vdwg.mxu0
        %vm3198 = vcmask 64512
        %3199 = vst.msk [vmem:[%s585] sm:$0xff] %vm3198, %v3159
        %3200 = vst.msk [vmem:[%s585 + $0x8] sm:$0xff] %vm3198, %v3161
        %3201 = vst.msk [vmem:[%s585 + $0x10] sm:$0xff] %vm3198, %v3164
        %3202 = vst.msk [vmem:[%s585 + $0x18] sm:$0xff] %vm3198, %v3166
        %3203 = vst.msk [vmem:[%s585 + $0x20] sm:$0xff] %vm3198, %v3169
        %3204 = vst.msk [vmem:[%s585 + $0x28] sm:$0xff] %vm3198, %v3171
        %3205 = vst.msk [vmem:[%s585 + $0x30] sm:$0xff] %vm3198, %v3174
        %3206 = vst.msk [vmem:[%s585 + $0x38] sm:$0xff] %vm3198, %v3176
        %3207 = vst.msk [vmem:[%s585 + $0x40] sm:$0xff] %vm3198, %v3179
        %3208 = vst.msk [vmem:[%s585 + $0x48] sm:$0xff] %vm3198, %v3181
        %3209 = vst.msk [vmem:[%s585 + $0x50] sm:$0xff] %vm3198, %v3184
        %3210 = vst.msk [vmem:[%s585 + $0x58] sm:$0xff] %vm3198, %v3186
        %3211 = vst.msk [vmem:[%s585 + $0x60] sm:$0xff] %vm3198, %v3189
        %3212 = vst.msk [vmem:[%s585 + $0x68] sm:$0xff] %vm3198, %v3191
        %3213 = vst.msk [vmem:[%s585 + $0x70] sm:$0xff] %vm3198, %v3194
        %3214 = vst.msk [vmem:[%s585 + $0x78] sm:$0xff] %vm3198, %v3196
        %s3215 = smul.u32 16, %s30
        %p3216 = scmp.lt.s32.totalorder %s3215, 31
        %s3217 = scalar_select %p3216, %s3215, 31
        %s3218 = smul.addr %s3217, 8
        %s3219 = scalar_lea.vmem %s16, %s3218
        // Predicated region
        $region101: #{tpu_custom_call.1} parent=83 // pred_check
          %p3220 = pneg %p389
        $region102: #{tpu_custom_call.1} parent=83 // pred_check_branch
          %3222 = sbr.rel (%p3220) target = $region104
        $region103: #{tpu_custom_call.1} parent=83 // pred_region
          %s3223 = smul.u32 16, %s30
        $region104: #{tpu_custom_call.1} parent=83 // pred_fallthru
          _
      $region84: #{tpu_custom_call.1} parent=5 // pred_fallthru
        _
      %p3224 = scmp.le.s32.totalorder 2, %s25
      // Predicated region
      $region105: #{tpu_custom_call.1} parent=5 // pred_check
        %p3225 = pneg %p3224
      $region106: #{tpu_custom_call.1} parent=5 // pred_check_branch
        %3227 = sbr.rel (%p3225) target = $region108
      $region107: #{tpu_custom_call.1} parent=5 // pred_region
        %s3228 = ssub.s32 %s25, 2
        // Predicated region
        $region109: #{tpu_custom_call.1} parent=107 // pred_check
          %p3229 = pneg %p395
        $region110: #{tpu_custom_call.1} parent=107 // pred_check_branch
          %3231 = sbr.rel (%p3229) target = $region112
        $region111: #{tpu_custom_call.1} parent=107 // pred_region
          %s3232 = smul.u32 16, %s31
          %p3233 = scmp.lt.s32.totalorder %s3232, 31
          %s3234 = scalar_select %p3233, %s3232, 31
          %s3235 = smul.addr %s3234, 8
          %s3236 = scalar_lea.vmem %s16, %s3235
        $region112: #{tpu_custom_call.1} parent=107 // pred_fallthru
          _
      $region108: #{tpu_custom_call.1} parent=5 // pred_fallthru
        _
    $region6: #{tpu_custom_call.1} parent=1 // loop_footer
      %s29 = sadd.s32 1, %s25
    $region7: #{tpu_custom_call.1} parent=1 // loop_footer_branch
      %24 = sbr.rel target = $region3
    $region8: #{tpu_custom_call.1} parent=1 // loop_exit
      _
    %3237 = vsyncpa [#allocation3], 1
    %s3238 = scalar_lea.sflag [#allocation3], 1
    %3239 = vsyncpa %s3238, 1
    %3240 = vsyncpa [#allocation5], 1
    %3241 = vsyncpa [#allocation8], 1

</llo_original>
